<compile_context>
chip_gen: v7x
topology: tpu7x:2x2x1
jax: 0.10.0
libtpu: 0.0.40
codegen_flags: <defaults>
</compile_context>

<pallas_src>
import math

import jax
import jax.numpy as jnp
from jax.experimental import pallas as pl
from jax.experimental.pallas import tpu as pltpu

N_FLOW_LAYERS = 6
HID = 64
NEG_SLOPE = 0.01                      # torch.nn.LeakyReLU default
LOG_2PI = math.log(2.0 * math.pi)
LN2 = math.log(2.0)
N_KPT = 4
MAX_BLOCK_SAMPLES = 1024              # samples per grid step
SINGLE_BLOCK_MAX = 256                # below this, don't split for megacore


def _leaky_relu(x):
    return jnp.where(x >= 0.0, x, NEG_SLOPE * x)


def _round_up(x, m):
    return ((x + m - 1) // m) * m


def _choose_block(n):
    """Samples per grid step.  Multi-block => block % 128 == 0 so both slab
    BlockSpecs stay (8,128)-aligned; >=2 blocks for n > SINGLE_BLOCK_MAX so
    both v7x TensorCores get work via the 'parallel' grid axis."""
    if n <= SINGLE_BLOCK_MAX:
        block = max(8, _round_up(n, 8))
        return block, block
    block = min(MAX_BLOCK_SAMPLES, _round_up((n + 1) // 2, 128))
    return block, _round_up(n, block)


def pfld_loss_kernel(a_ref, b_ref, w2_ref, w3_ref, cols_ref, b3_ref, o_ref):
    """One block of b samples -> partial sums [1, 4] in SMEM.

    a_ref  [8, 4b] f32  per-(kpt,sample) slab (lane order: kpt-major, sample)
    b_ref  [8,  b] f32  per-sample type logits / soft labels
    w2_ref [6,128,128] bf16  fused block-diagonal hidden weight per layer
    w3_ref [6,  8,128] bf16  output-head rows per layer (row0 -> s, row1 -> t)
    cols_ref [6,128,8] f32   col0 fused W1 column, col1 fused b1, col2 fused b2
    b3_ref [6, 2] f32 (SMEM) output-head biases (s, t) per layer
    """
    b = b_ref.shape[1]
    ta = a_ref[...]                               # [8, 4b]

    pred = ta[0:2, :]                             # [2, 4b]
    siglog = ta[2:4, :]
    tgt = ta[4:6, :]
    valid = ta[6:7, :]                            # [1, 4b]

    # ---------------- L1 / per-sample-max losses (lane dense) --------------
    d = jnp.abs(tgt - pred)                       # [2, 4b]  (padded lanes -> 0)
    l1_total = jnp.sum(d)
    dmax2 = jnp.max(d, axis=0, keepdims=True)     # [1, 4b]
    per_sample_max = jnp.maximum(
        jnp.maximum(dmax2[:, 0:b], dmax2[:, b:2 * b]),
        jnp.maximum(dmax2[:, 2 * b:3 * b], dmax2[:, 3 * b:4 * b]))   # [1, b]
    max_total = jnp.sum(per_sample_max)

    # ---------------- RLE residual terms -----------------------------------
    sigma = 1.0 / (1.0 + jnp.exp(-siglog))        # matches torch .sigmoid()
    log_sig = jnp.log(sigma)                      # matches torch.log(sigma)
    err = (pred - tgt) / (sigma + 1e-9)           # [2, 4b]

    # ---------------- RealNVP backward pass, transposed & lane dense -------
    z0 = err[0:1, :]                              # [1, 4b]
    z1 = err[1:2, :]
    log_det = jnp.zeros_like(z0)
    for i in reversed(range(N_FLOW_LAYERS)):
        # mask[i] = [0,1] for even i: MLP input = y (z1), update x (z0)
        ju = 0 if (i % 2 == 0) else 1
        zk = z1 if ju == 0 else z0

        cols_i = cols_ref[i]                      # [128, 8] f32
        w1c = cols_i[:, 0:1]                      # [128, 1] fused W1 column
        b1c = cols_i[:, 1:2]
        b2c = cols_i[:, 2:3]

        # Linear(2,64) x2 fused: outer-product broadcast on the VPU.
        h1 = _leaky_relu(w1c * zk + b1c)          # [128, 4b] f32
        # Linear(64,64) x2 fused: one block-diagonal bf16 MXU matmul.
        h2 = _leaky_relu(
            jnp.dot(w2_ref[i], h1.astype(jnp.bfloat16),
                    preferred_element_type=jnp.float32) + b2c)       # [128,4b]
        # Linear(64,2) x2 fused: one tiny bf16 MXU matmul for both heads.
        st = jnp.dot(w3_ref[i], h2.astype(jnp.bfloat16),
                     preferred_element_type=jnp.float32)             # [8, 4b]
        s = jnp.tanh(st[0:1, :] + b3_ref[i, 0])   # [1, 4b]
        t = st[1:2, :] + b3_ref[i, 1]             # [1, 4b]

        if ju == 0:
            z0 = (z0 - t) * jnp.exp(-s)
        else:
            z1 = (z1 - t) * jnp.exp(-s)
        log_det = log_det - s

    # standard 2-D normal prior
    log_phi = -0.5 * (z0 * z0 + z1 * z1) - LOG_2PI + log_det         # [1, 4b]

    # per-(kpt,sample) RLE contribution:
    #   sum_xy[ 2*log(sigma) + log(2) + |err| ] - 2*log_phi
    l2_lane = (2.0 * jnp.sum(log_sig, axis=0, keepdims=True)
               + 2.0 * LN2
               + jnp.sum(jnp.abs(err), axis=0, keepdims=True)
               - 2.0 * log_phi)                                       # [1, 4b]
    l2_total = jnp.sum(l2_lane * valid)

    # ---------------- CrossEntropy with soft targets ------------------------
    tb = b_ref[...]                                # [8, b]
    logits = tb[0:2, :]
    labels = tb[2:4, :]
    lmax = jnp.max(logits, axis=0, keepdims=True)
    lse = jnp.log(jnp.sum(jnp.exp(logits - lmax), axis=0, keepdims=True)) + lmax
    ce_total = -jnp.sum(labels * (logits - lse))   # padded: labels==0 -> 0

    o_ref[0, 0] = l2_total      # RLE numerator
    o_ref[0, 1] = l1_total      # L1 numerator
    o_ref[0, 2] = max_total     # per-sample-max numerator
    o_ref[0, 3] = ce_total      # CE numerator


def init_realnvp_params(key):
    """Deterministic synthetic RealNVP weights, pre-packed for the fused,
    transposed kernel layout."""
    def linear(k, fan_in, fan_out):
        kw, kb = jax.random.split(k)
        bound = 1.0 / math.sqrt(fan_in)
        w = jax.random.uniform(kw, (fan_out, fan_in), jnp.float32, -bound, bound)
        bv = jax.random.uniform(kb, (fan_out,), jnp.float32, -bound, bound)
        return w, bv

    def make_net(k):
        layers = []
        for _ in range(N_FLOW_LAYERS):
            k, k1, k2, k3 = jax.random.split(k, 4)
            layers.append((linear(k1, 2, HID), linear(k2, HID, HID),
                           linear(k3, HID, 2)))
        return layers

    ks, kt = jax.random.split(key)
    s_net = make_net(ks)                 # scale nets (Tanh head)
    t_net = make_net(kt)                 # translation nets

    w2_list, w3_list, col_list, b3_list = [], [], [], []
    for i in range(N_FLOW_LAYERS):
        jk = 1 if i % 2 == 0 else 0      # masked-in input component fed to MLP
        ju = 0 if i % 2 == 0 else 1      # component updated by this layer
        (sw1, sb1), (sw2, sb2), (sw3, sb3) = s_net[i]
        (tw1, tb1), (tw2, tb2), (tw3, tb3) = t_net[i]

        # fused hidden->hidden, block diagonal (scale | translation), [out,in]
        w2f = jnp.zeros((2 * HID, 2 * HID), jnp.float32)
        w2f = w2f.at[:HID, :HID].set(sw2).at[HID:, HID:].set(tw2)
        w2_list.append(w2f)

        # output-head rows (lhs of the tiny matmul): row 0 -> s, row 1 -> t
        w3f = jnp.zeros((8, 2 * HID), jnp.float32)
        w3f = w3f.at[0, :HID].set(sw3[ju]).at[1, HID:].set(tw3[ju])
        w3_list.append(w3f)

        # column-vector constants: fused W1 column jk, fused b1, fused b2
        cols = jnp.zeros((2 * HID, 8), jnp.float32)
        cols = cols.at[:, 0].set(jnp.concatenate([sw1[:, jk], tw1[:, jk]]))
        cols = cols.at[:, 1].set(jnp.concatenate([sb1, tb1]))
        cols = cols.at[:, 2].set(jnp.concatenate([sb2, tb2]))
        col_list.append(cols)

        b3_list.append(jnp.array([sb3[ju], tb3[ju]], jnp.float32))

    w2_all = jnp.stack(w2_list).astype(jnp.bfloat16)    # [6,128,128]
    w3_all = jnp.stack(w3_list).astype(jnp.bfloat16)    # [6,  8,128]
    cols_all = jnp.stack(col_list)                      # [6,128,  8] f32
    b3_all = jnp.stack(b3_list)                         # [6,  2]     f32
    return w2_all, w3_all, cols_all, b3_all


def pfld_loss(label, out, flow_params):
    """PFLDLoss.forward.  label: [N, 10], out: [N, 18]."""
    w2_all, w3_all, cols_all, b3_all = flow_params
    n = label.shape[0]
    label = label.astype(jnp.float32)
    out = out.astype(jnp.float32)

    box_out = out[:, :16].reshape(n, N_KPT, 4)
    pred = box_out[:, :, 0:2]                    # [N, K, 2]
    siglog = box_out[:, :, 2:4]
    tgt = label[:, :8].reshape(n, N_KPT, 2)
    logits = out[:, 16:18]                       # [N, 2]
    soft_lab = label[:, 8:10]

    block, n_pad = _choose_block(n)
    num_blocks = n_pad // block
    pad = n_pad - n

    valid = jnp.ones((n,), jnp.float32)

    def pad_n(x):
        return jnp.pad(x, ((0, pad),) + ((0, 0),) * (x.ndim - 1))

    pred, siglog, tgt, logits, soft_lab, valid = map(
        pad_n, (pred, siglog, tgt, logits, soft_lab, valid))

    # Slab A [8, 4*n_pad]: SoA rows, lanes ordered (block, kpt, sample-in-block)
    feats_a = jnp.stack([
        pred[:, :, 0], pred[:, :, 1],
        siglog[:, :, 0], siglog[:, :, 1],
        tgt[:, :, 0], tgt[:, :, 1],
        jnp.broadcast_to(valid[:, None], (n_pad, N_KPT)),
        jnp.zeros((n_pad, N_KPT), jnp.float32),
    ], axis=0)                                           # [8, n_pad, K]
    slab_a = (feats_a.reshape(8, num_blocks, block, N_KPT)
              .transpose(0, 1, 3, 2)
              .reshape(8, N_KPT * n_pad))

    # Slab B [8, n_pad]: type logits + soft labels, samples in lanes.
    slab_b = jnp.concatenate(
        [logits.T, soft_lab.T, jnp.zeros((4, n_pad), jnp.float32)], axis=0)

    partials = pl.pallas_call(
        pfld_loss_kernel,
        out_shape=jax.ShapeDtypeStruct((num_blocks, 4), jnp.float32),
        grid=(num_blocks,),
        in_specs=[
            pl.BlockSpec((8, N_KPT * block), lambda i: (0, i)),
            pl.BlockSpec((8, block), lambda i: (0, i)),
            pl.BlockSpec((N_FLOW_LAYERS, 2 * HID, 2 * HID),
                         lambda i: (0, 0, 0)),
            pl.BlockSpec((N_FLOW_LAYERS, 8, 2 * HID), lambda i: (0, 0, 0)),
            pl.BlockSpec((N_FLOW_LAYERS, 2 * HID, 8), lambda i: (0, 0, 0)),
            pl.BlockSpec((N_FLOW_LAYERS, 2), lambda i: (0, 0),
                         memory_space=pltpu.MemorySpace.SMEM),
        ],
        out_specs=pl.BlockSpec((1, 4), lambda i: (i, 0),
                               memory_space=pltpu.MemorySpace.SMEM),
        compiler_params=pltpu.CompilerParams(
            dimension_semantics=("parallel",),
            vmem_limit_bytes=40 * 1024 * 1024),
    )(slab_a, slab_b, w2_all, w3_all, cols_all, b3_all)

    sums = jnp.sum(partials, axis=0)
    # RLELoss(size_average=True): loss [N,4,2] is divided by len(loss)==N.
    l2_loss = sums[0] / n
    l3_loss = sums[1] / n
    max_loss = sums[2] / n
    type_loss = sums[3] / n              # nn.CrossEntropyLoss mean over batch
    all_loss = 0.99 * l2_loss + 0.01 * type_loss
    direction_loss = jnp.array([1], dtype=jnp.int32)     # torch.tensor([1])
    return all_loss, l3_loss, max_loss, type_loss, direction_loss


if __name__ == "__main__":
    key = jax.random.PRNGKey(0)
    k_label, k_out, k_type, k_flow = jax.random.split(key, 4)

    N = 4
    # label: 8 normalized box coords + 2-way soft type label (probabilities)
    box_lab = jax.random.uniform(k_label, (N, 8), jnp.float32)
    type_lab = jax.nn.softmax(
        jax.random.normal(k_type, (N, 2), jnp.float32), axis=1)
    label = jnp.concatenate([box_lab, type_lab], axis=1)           # [N, 10]

    # out: 16 box outputs (4 kpts x (xy + 2 sigma logits)) + 2 type logits
    out = jax.random.normal(k_out, (N, 18), jnp.float32) * 0.5     # [N, 18]

    flow_params = init_realnvp_params(k_flow)

    results = jax.block_until_ready(pfld_loss(label, out, flow_params))
    all_loss, l3_loss, max_loss, type_loss, direction_loss = results
    assert all(bool(jnp.isfinite(x)) for x in
               (all_loss, l3_loss, max_loss, type_loss))
    print("KERNEL_OK")
</pallas_src>

<mosaic_0001>
module attributes {stable_mosaic.version = 11 : i64} {
  func.func @pfld_loss_kernel(%arg0: i32, %arg1: memref<8x32xf32, #tpu.memory_space<vmem>>, %arg2: memref<8x8xf32, #tpu.memory_space<vmem>>, %arg3: memref<6x128x128xbf16, #tpu.memory_space<vmem>>, %arg4: memref<6x8x128xbf16, #tpu.memory_space<vmem>>, %arg5: memref<6x128x8xf32, #tpu.memory_space<vmem>>, %arg6: memref<6x2xf32, #tpu.memory_space<smem>>, %arg7: memref<1x4xf32, #tpu.memory_space<smem>>) attributes {dimension_semantics = [#tpu.dimension_semantics<parallel>], iteration_bounds = array<i64: 1>, scalar_prefetch = 0 : i64, scratch_operands = 0 : i64, tpu.core_type = #tpu.core_type<tc>, window_params = [{transform_indices = @transform_0, window_bounds = array<i64: 8, 32>}, {transform_indices = @transform_1, window_bounds = array<i64: 8, 8>}, {pipeline_mode = #tpu.pipeline_mode<synchronous>, transform_indices = @transform_2, window_bounds = array<i64: 6, 128, 128>}, {pipeline_mode = #tpu.pipeline_mode<synchronous>, transform_indices = @transform_3, window_bounds = array<i64: 6, 8, 128>}, {pipeline_mode = #tpu.pipeline_mode<synchronous>, transform_indices = @transform_4, window_bounds = array<i64: 6, 128, 8>}, {transform_indices = @transform_5, window_bounds = array<i64: 6, 2>}, {transform_indices = @transform_6, window_bounds = array<i64: 1, 4>}]} {
    %c0 = arith.constant 0 : index
    %c0_0 = arith.constant 0 : index
    %0 = vector.load %arg1[%c0, %c0_0] : memref<8x32xf32, #tpu.memory_space<vmem>>, vector<8x32xf32>
    %1 = vector.extract_strided_slice %0 {offsets = [0, 0], sizes = [2, 32], strides = [1, 1]} : vector<8x32xf32> to vector<2x32xf32>
    %2 = vector.extract_strided_slice %0 {offsets = [2, 0], sizes = [2, 32], strides = [1, 1]} : vector<8x32xf32> to vector<2x32xf32>
    %3 = vector.extract_strided_slice %0 {offsets = [4, 0], sizes = [2, 32], strides = [1, 1]} : vector<8x32xf32> to vector<2x32xf32>
    %4 = vector.extract_strided_slice %0 {offsets = [6, 0], sizes = [1, 32], strides = [1, 1]} : vector<8x32xf32> to vector<1x32xf32>
    %5 = arith.subf %3, %1 : vector<2x32xf32>
    %6 = math.absf %5 : vector<2x32xf32>
    %7 = vector.shape_cast %6 : vector<2x32xf32> to vector<1x2x32xf32>
    %cst = arith.constant dense<0.000000e+00> : vector<1xf32>
    %8 = vector.multi_reduction <add>, %7, %cst [1, 2] : vector<1x2x32xf32> to vector<1xf32>
    %9 = vector.shape_cast %8 : vector<1xf32> to vector<1x1x1xf32>
    %10 = vector.extract %9[0, 0, 0] : f32 from vector<1x1x1xf32>
    %cst_1 = arith.constant dense<0xFF800000> : vector<32xf32>
    %11 = vector.multi_reduction <maximumf>, %6, %cst_1 [0] : vector<2x32xf32> to vector<32xf32>
    %12 = vector.shape_cast %11 : vector<32xf32> to vector<1x32xf32>
    %13 = vector.extract_strided_slice %12 {offsets = [0, 0], sizes = [1, 8], strides = [1, 1]} : vector<1x32xf32> to vector<1x8xf32>
    %14 = vector.extract_strided_slice %12 {offsets = [0, 8], sizes = [1, 8], strides = [1, 1]} : vector<1x32xf32> to vector<1x8xf32>
    %15 = arith.maximumf %13, %14 : vector<1x8xf32>
    %16 = vector.extract_strided_slice %12 {offsets = [0, 16], sizes = [1, 8], strides = [1, 1]} : vector<1x32xf32> to vector<1x8xf32>
    %17 = vector.extract_strided_slice %12 {offsets = [0, 24], sizes = [1, 8], strides = [1, 1]} : vector<1x32xf32> to vector<1x8xf32>
    %18 = arith.maximumf %16, %17 : vector<1x8xf32>
    %19 = arith.maximumf %15, %18 : vector<1x8xf32>
    %20 = vector.shape_cast %19 : vector<1x8xf32> to vector<1x1x8xf32>
    %cst_2 = arith.constant dense<0.000000e+00> : vector<1xf32>
    %21 = vector.multi_reduction <add>, %20, %cst_2 [1, 2] : vector<1x1x8xf32> to vector<1xf32>
    %22 = vector.shape_cast %21 : vector<1xf32> to vector<1x1x1xf32>
    %23 = vector.extract %22[0, 0, 0] : f32 from vector<1x1x1xf32>
    %cst_3 = arith.constant 0.000000e+00 : f32
    %24 = vector.broadcast %cst_3 : f32 to vector<2x32xf32>
    %25 = arith.subf %24, %2 : vector<2x32xf32>
    %26 = math.exp %25 : vector<2x32xf32>
    %cst_4 = arith.constant 1.000000e+00 : f32
    %27 = vector.broadcast %cst_4 : f32 to vector<2x32xf32>
    %28 = arith.addf %27, %26 : vector<2x32xf32>
    %cst_5 = arith.constant 1.000000e+00 : f32
    %29 = vector.broadcast %cst_5 : f32 to vector<2x32xf32>
    %30 = arith.divf %29, %28 : vector<2x32xf32>
    %31 = math.log %30 : vector<2x32xf32>
    %32 = arith.subf %1, %3 : vector<2x32xf32>
    %cst_6 = arith.constant 9.99999971E-10 : f32
    %33 = vector.broadcast %cst_6 : f32 to vector<2x32xf32>
    %34 = arith.addf %30, %33 : vector<2x32xf32>
    %35 = arith.divf %32, %34 : vector<2x32xf32>
    %36 = vector.extract_strided_slice %35 {offsets = [0, 0], sizes = [1, 32], strides = [1, 1]} : vector<2x32xf32> to vector<1x32xf32>
    %37 = vector.extract_strided_slice %35 {offsets = [1, 0], sizes = [1, 32], strides = [1, 1]} : vector<2x32xf32> to vector<1x32xf32>
    %cst_7 = arith.constant 0.000000e+00 : f32
    %38 = vector.broadcast %cst_7 : f32 to vector<1x32xf32>
    %c5 = arith.constant 5 : index
    %c0_8 = arith.constant 0 : index
    %c0_9 = arith.constant 0 : index
    %39 = vector.load %arg5[%c5, %c0_8, %c0_9] : memref<6x128x8xf32, #tpu.memory_space<vmem>>, vector<1x128x8xf32>
    %40 = vector.shape_cast %39 : vector<1x128x8xf32> to vector<128x8xf32>
    %41 = vector.extract_strided_slice %40 {offsets = [0, 0], sizes = [128, 1], strides = [1, 1]} : vector<128x8xf32> to vector<128x1xf32>
    %42 = vector.extract_strided_slice %40 {offsets = [0, 1], sizes = [128, 1], strides = [1, 1]} : vector<128x8xf32> to vector<128x1xf32>
    %43 = vector.extract_strided_slice %40 {offsets = [0, 2], sizes = [128, 1], strides = [1, 1]} : vector<128x8xf32> to vector<128x1xf32>
    %44 = vector.broadcast %41 : vector<128x1xf32> to vector<128x32xf32>
    %45 = vector.broadcast %36 : vector<1x32xf32> to vector<128x32xf32>
    %46 = arith.mulf %44, %45 : vector<128x32xf32>
    %47 = vector.broadcast %42 : vector<128x1xf32> to vector<128x32xf32>
    %48 = arith.addf %46, %47 : vector<128x32xf32>
    %cst_10 = arith.constant 0.000000e+00 : f32
    %49 = vector.broadcast %cst_10 : f32 to vector<128x32xf32>
    %50 = arith.cmpf oge, %48, %49 : vector<128x32xf32>
    %cst_11 = arith.constant 0.00999999977 : f32
    %51 = vector.broadcast %cst_11 : f32 to vector<128x32xf32>
    %52 = arith.mulf %51, %48 : vector<128x32xf32>
    %53 = arith.select %50, %48, %52 : vector<128x32xi1>, vector<128x32xf32>
    %c5_12 = arith.constant 5 : index
    %c0_13 = arith.constant 0 : index
    %c0_14 = arith.constant 0 : index
    %54 = vector.load %arg3[%c5_12, %c0_13, %c0_14] : memref<6x128x128xbf16, #tpu.memory_space<vmem>>, vector<1x128x128xbf16>
    %55 = vector.shape_cast %54 : vector<1x128x128xbf16> to vector<128x128xbf16>
    %56 = arith.truncf %53 : vector<128x32xf32> to vector<128x32xbf16>
    %cst_15 = arith.constant dense<0.000000e+00> : vector<128x32xf32>
    %57 = tpu.matmul %55, %56, %cst_15 {dimension_numbers = #tpu.dot_dimension_numbers<[1], [0], [0], [1], [0, 0, 1, 1], [], []>} : vector<128x128xbf16>, vector<128x32xbf16>, vector<128x32xf32> -> vector<128x32xf32>
    %58 = vector.broadcast %43 : vector<128x1xf32> to vector<128x32xf32>
    %59 = arith.addf %57, %58 : vector<128x32xf32>
    %cst_16 = arith.constant 0.000000e+00 : f32
    %60 = vector.broadcast %cst_16 : f32 to vector<128x32xf32>
    %61 = arith.cmpf oge, %59, %60 : vector<128x32xf32>
    %cst_17 = arith.constant 0.00999999977 : f32
    %62 = vector.broadcast %cst_17 : f32 to vector<128x32xf32>
    %63 = arith.mulf %62, %59 : vector<128x32xf32>
    %64 = arith.select %61, %59, %63 : vector<128x32xi1>, vector<128x32xf32>
    %c5_18 = arith.constant 5 : index
    %c0_19 = arith.constant 0 : index
    %c0_20 = arith.constant 0 : index
    %65 = vector.load %arg4[%c5_18, %c0_19, %c0_20] : memref<6x8x128xbf16, #tpu.memory_space<vmem>>, vector<1x8x128xbf16>
    %66 = vector.shape_cast %65 : vector<1x8x128xbf16> to vector<8x128xbf16>
    %67 = arith.truncf %64 : vector<128x32xf32> to vector<128x32xbf16>
    %cst_21 = arith.constant dense<0.000000e+00> : vector<8x32xf32>
    %68 = tpu.matmul %66, %67, %cst_21 {dimension_numbers = #tpu.dot_dimension_numbers<[1], [0], [0], [1], [0, 0, 1, 1], [], []>} : vector<8x128xbf16>, vector<128x32xbf16>, vector<8x32xf32> -> vector<8x32xf32>
    %69 = vector.extract_strided_slice %68 {offsets = [0, 0], sizes = [1, 32], strides = [1, 1]} : vector<8x32xf32> to vector<1x32xf32>
    %c5_22 = arith.constant 5 : index
    %c0_23 = arith.constant 0 : index
    %70 = memref.load %arg6[%c5_22, %c0_23] : memref<6x2xf32, #tpu.memory_space<smem>>
    %71 = vector.broadcast %70 : f32 to vector<1x32xf32>
    %72 = arith.addf %69, %71 : vector<1x32xf32>
    %73 = math.tanh %72 : vector<1x32xf32>
    %74 = vector.extract_strided_slice %68 {offsets = [1, 0], sizes = [1, 32], strides = [1, 1]} : vector<8x32xf32> to vector<1x32xf32>
    %c5_24 = arith.constant 5 : index
    %c1 = arith.constant 1 : index
    %75 = memref.load %arg6[%c5_24, %c1] : memref<6x2xf32, #tpu.memory_space<smem>>
    %76 = vector.broadcast %75 : f32 to vector<1x32xf32>
    %77 = arith.addf %74, %76 : vector<1x32xf32>
    %78 = arith.subf %37, %77 : vector<1x32xf32>
    %cst_25 = arith.constant 0.000000e+00 : f32
    %79 = vector.broadcast %cst_25 : f32 to vector<1x32xf32>
    %80 = arith.subf %79, %73 : vector<1x32xf32>
    %81 = math.exp %80 : vector<1x32xf32>
    %82 = arith.mulf %78, %81 : vector<1x32xf32>
    %83 = arith.subf %38, %73 : vector<1x32xf32>
    %c4 = arith.constant 4 : index
    %c0_26 = arith.constant 0 : index
    %c0_27 = arith.constant 0 : index
    %84 = vector.load %arg5[%c4, %c0_26, %c0_27] : memref<6x128x8xf32, #tpu.memory_space<vmem>>, vector<1x128x8xf32>
    %85 = vector.shape_cast %84 : vector<1x128x8xf32> to vector<128x8xf32>
    %86 = vector.extract_strided_slice %85 {offsets = [0, 0], sizes = [128, 1], strides = [1, 1]} : vector<128x8xf32> to vector<128x1xf32>
    %87 = vector.extract_strided_slice %85 {offsets = [0, 1], sizes = [128, 1], strides = [1, 1]} : vector<128x8xf32> to vector<128x1xf32>
    %88 = vector.extract_strided_slice %85 {offsets = [0, 2], sizes = [128, 1], strides = [1, 1]} : vector<128x8xf32> to vector<128x1xf32>
    %89 = vector.broadcast %86 : vector<128x1xf32> to vector<128x32xf32>
    %90 = vector.broadcast %82 : vector<1x32xf32> to vector<128x32xf32>
    %91 = arith.mulf %89, %90 : vector<128x32xf32>
    %92 = vector.broadcast %87 : vector<128x1xf32> to vector<128x32xf32>
    %93 = arith.addf %91, %92 : vector<128x32xf32>
    %cst_28 = arith.constant 0.000000e+00 : f32
    %94 = vector.broadcast %cst_28 : f32 to vector<128x32xf32>
    %95 = arith.cmpf oge, %93, %94 : vector<128x32xf32>
    %cst_29 = arith.constant 0.00999999977 : f32
    %96 = vector.broadcast %cst_29 : f32 to vector<128x32xf32>
    %97 = arith.mulf %96, %93 : vector<128x32xf32>
    %98 = arith.select %95, %93, %97 : vector<128x32xi1>, vector<128x32xf32>
    %c4_30 = arith.constant 4 : index
    %c0_31 = arith.constant 0 : index
    %c0_32 = arith.constant 0 : index
    %99 = vector.load %arg3[%c4_30, %c0_31, %c0_32] : memref<6x128x128xbf16, #tpu.memory_space<vmem>>, vector<1x128x128xbf16>
    %100 = vector.shape_cast %99 : vector<1x128x128xbf16> to vector<128x128xbf16>
    %101 = arith.truncf %98 : vector<128x32xf32> to vector<128x32xbf16>
    %cst_33 = arith.constant dense<0.000000e+00> : vector<128x32xf32>
    %102 = tpu.matmul %100, %101, %cst_33 {dimension_numbers = #tpu.dot_dimension_numbers<[1], [0], [0], [1], [0, 0, 1, 1], [], []>} : vector<128x128xbf16>, vector<128x32xbf16>, vector<128x32xf32> -> vector<128x32xf32>
    %103 = vector.broadcast %88 : vector<128x1xf32> to vector<128x32xf32>
    %104 = arith.addf %102, %103 : vector<128x32xf32>
    %cst_34 = arith.constant 0.000000e+00 : f32
    %105 = vector.broadcast %cst_34 : f32 to vector<128x32xf32>
    %106 = arith.cmpf oge, %104, %105 : vector<128x32xf32>
    %cst_35 = arith.constant 0.00999999977 : f32
    %107 = vector.broadcast %cst_35 : f32 to vector<128x32xf32>
    %108 = arith.mulf %107, %104 : vector<128x32xf32>
    %109 = arith.select %106, %104, %108 : vector<128x32xi1>, vector<128x32xf32>
    %c4_36 = arith.constant 4 : index
    %c0_37 = arith.constant 0 : index
    %c0_38 = arith.constant 0 : index
    %110 = vector.load %arg4[%c4_36, %c0_37, %c0_38] : memref<6x8x128xbf16, #tpu.memory_space<vmem>>, vector<1x8x128xbf16>
    %111 = vector.shape_cast %110 : vector<1x8x128xbf16> to vector<8x128xbf16>
    %112 = arith.truncf %109 : vector<128x32xf32> to vector<128x32xbf16>
    %cst_39 = arith.constant dense<0.000000e+00> : vector<8x32xf32>
    %113 = tpu.matmul %111, %112, %cst_39 {dimension_numbers = #tpu.dot_dimension_numbers<[1], [0], [0], [1], [0, 0, 1, 1], [], []>} : vector<8x128xbf16>, vector<128x32xbf16>, vector<8x32xf32> -> vector<8x32xf32>
    %114 = vector.extract_strided_slice %113 {offsets = [0, 0], sizes = [1, 32], strides = [1, 1]} : vector<8x32xf32> to vector<1x32xf32>
    %c4_40 = arith.constant 4 : index
    %c0_41 = arith.constant 0 : index
    %115 = memref.load %arg6[%c4_40, %c0_41] : memref<6x2xf32, #tpu.memory_space<smem>>
    %116 = vector.broadcast %115 : f32 to vector<1x32xf32>
    %117 = arith.addf %114, %116 : vector<1x32xf32>
    %118 = math.tanh %117 : vector<1x32xf32>
    %119 = vector.extract_strided_slice %113 {offsets = [1, 0], sizes = [1, 32], strides = [1, 1]} : vector<8x32xf32> to vector<1x32xf32>
    %c4_42 = arith.constant 4 : index
    %c1_43 = arith.constant 1 : index
    %120 = memref.load %arg6[%c4_42, %c1_43] : memref<6x2xf32, #tpu.memory_space<smem>>
    %121 = vector.broadcast %120 : f32 to vector<1x32xf32>
    %122 = arith.addf %119, %121 : vector<1x32xf32>
    %123 = arith.subf %36, %122 : vector<1x32xf32>
    %cst_44 = arith.constant 0.000000e+00 : f32
    %124 = vector.broadcast %cst_44 : f32 to vector<1x32xf32>
    %125 = arith.subf %124, %118 : vector<1x32xf32>
    %126 = math.exp %125 : vector<1x32xf32>
    %127 = arith.mulf %123, %126 : vector<1x32xf32>
    %128 = arith.subf %83, %118 : vector<1x32xf32>
    %c3 = arith.constant 3 : index
    %c0_45 = arith.constant 0 : index
    %c0_46 = arith.constant 0 : index
    %129 = vector.load %arg5[%c3, %c0_45, %c0_46] : memref<6x128x8xf32, #tpu.memory_space<vmem>>, vector<1x128x8xf32>
    %130 = vector.shape_cast %129 : vector<1x128x8xf32> to vector<128x8xf32>
    %131 = vector.extract_strided_slice %130 {offsets = [0, 0], sizes = [128, 1], strides = [1, 1]} : vector<128x8xf32> to vector<128x1xf32>
    %132 = vector.extract_strided_slice %130 {offsets = [0, 1], sizes = [128, 1], strides = [1, 1]} : vector<128x8xf32> to vector<128x1xf32>
    %133 = vector.extract_strided_slice %130 {offsets = [0, 2], sizes = [128, 1], strides = [1, 1]} : vector<128x8xf32> to vector<128x1xf32>
    %134 = vector.broadcast %131 : vector<128x1xf32> to vector<128x32xf32>
    %135 = vector.broadcast %127 : vector<1x32xf32> to vector<128x32xf32>
    %136 = arith.mulf %134, %135 : vector<128x32xf32>
    %137 = vector.broadcast %132 : vector<128x1xf32> to vector<128x32xf32>
    %138 = arith.addf %136, %137 : vector<128x32xf32>
    %cst_47 = arith.constant 0.000000e+00 : f32
    %139 = vector.broadcast %cst_47 : f32 to vector<128x32xf32>
    %140 = arith.cmpf oge, %138, %139 : vector<128x32xf32>
    %cst_48 = arith.constant 0.00999999977 : f32
    %141 = vector.broadcast %cst_48 : f32 to vector<128x32xf32>
    %142 = arith.mulf %141, %138 : vector<128x32xf32>
    %143 = arith.select %140, %138, %142 : vector<128x32xi1>, vector<128x32xf32>
    %c3_49 = arith.constant 3 : index
    %c0_50 = arith.constant 0 : index
    %c0_51 = arith.constant 0 : index
    %144 = vector.load %arg3[%c3_49, %c0_50, %c0_51] : memref<6x128x128xbf16, #tpu.memory_space<vmem>>, vector<1x128x128xbf16>
    %145 = vector.shape_cast %144 : vector<1x128x128xbf16> to vector<128x128xbf16>
    %146 = arith.truncf %143 : vector<128x32xf32> to vector<128x32xbf16>
    %cst_52 = arith.constant dense<0.000000e+00> : vector<128x32xf32>
    %147 = tpu.matmul %145, %146, %cst_52 {dimension_numbers = #tpu.dot_dimension_numbers<[1], [0], [0], [1], [0, 0, 1, 1], [], []>} : vector<128x128xbf16>, vector<128x32xbf16>, vector<128x32xf32> -> vector<128x32xf32>
    %148 = vector.broadcast %133 : vector<128x1xf32> to vector<128x32xf32>
    %149 = arith.addf %147, %148 : vector<128x32xf32>
    %cst_53 = arith.constant 0.000000e+00 : f32
    %150 = vector.broadcast %cst_53 : f32 to vector<128x32xf32>
    %151 = arith.cmpf oge, %149, %150 : vector<128x32xf32>
    %cst_54 = arith.constant 0.00999999977 : f32
    %152 = vector.broadcast %cst_54 : f32 to vector<128x32xf32>
    %153 = arith.mulf %152, %149 : vector<128x32xf32>
    %154 = arith.select %151, %149, %153 : vector<128x32xi1>, vector<128x32xf32>
    %c3_55 = arith.constant 3 : index
    %c0_56 = arith.constant 0 : index
    %c0_57 = arith.constant 0 : index
    %155 = vector.load %arg4[%c3_55, %c0_56, %c0_57] : memref<6x8x128xbf16, #tpu.memory_space<vmem>>, vector<1x8x128xbf16>
    %156 = vector.shape_cast %155 : vector<1x8x128xbf16> to vector<8x128xbf16>
    %157 = arith.truncf %154 : vector<128x32xf32> to vector<128x32xbf16>
    %cst_58 = arith.constant dense<0.000000e+00> : vector<8x32xf32>
    %158 = tpu.matmul %156, %157, %cst_58 {dimension_numbers = #tpu.dot_dimension_numbers<[1], [0], [0], [1], [0, 0, 1, 1], [], []>} : vector<8x128xbf16>, vector<128x32xbf16>, vector<8x32xf32> -> vector<8x32xf32>
    %159 = vector.extract_strided_slice %158 {offsets = [0, 0], sizes = [1, 32], strides = [1, 1]} : vector<8x32xf32> to vector<1x32xf32>
    %c3_59 = arith.constant 3 : index
    %c0_60 = arith.constant 0 : index
    %160 = memref.load %arg6[%c3_59, %c0_60] : memref<6x2xf32, #tpu.memory_space<smem>>
    %161 = vector.broadcast %160 : f32 to vector<1x32xf32>
    %162 = arith.addf %159, %161 : vector<1x32xf32>
    %163 = math.tanh %162 : vector<1x32xf32>
    %164 = vector.extract_strided_slice %158 {offsets = [1, 0], sizes = [1, 32], strides = [1, 1]} : vector<8x32xf32> to vector<1x32xf32>
    %c3_61 = arith.constant 3 : index
    %c1_62 = arith.constant 1 : index
    %165 = memref.load %arg6[%c3_61, %c1_62] : memref<6x2xf32, #tpu.memory_space<smem>>
    %166 = vector.broadcast %165 : f32 to vector<1x32xf32>
    %167 = arith.addf %164, %166 : vector<1x32xf32>
    %168 = arith.subf %82, %167 : vector<1x32xf32>
    %cst_63 = arith.constant 0.000000e+00 : f32
    %169 = vector.broadcast %cst_63 : f32 to vector<1x32xf32>
    %170 = arith.subf %169, %163 : vector<1x32xf32>
    %171 = math.exp %170 : vector<1x32xf32>
    %172 = arith.mulf %168, %171 : vector<1x32xf32>
    %173 = arith.subf %128, %163 : vector<1x32xf32>
    %c2 = arith.constant 2 : index
    %c0_64 = arith.constant 0 : index
    %c0_65 = arith.constant 0 : index
    %174 = vector.load %arg5[%c2, %c0_64, %c0_65] : memref<6x128x8xf32, #tpu.memory_space<vmem>>, vector<1x128x8xf32>
    %175 = vector.shape_cast %174 : vector<1x128x8xf32> to vector<128x8xf32>
    %176 = vector.extract_strided_slice %175 {offsets = [0, 0], sizes = [128, 1], strides = [1, 1]} : vector<128x8xf32> to vector<128x1xf32>
    %177 = vector.extract_strided_slice %175 {offsets = [0, 1], sizes = [128, 1], strides = [1, 1]} : vector<128x8xf32> to vector<128x1xf32>
    %178 = vector.extract_strided_slice %175 {offsets = [0, 2], sizes = [128, 1], strides = [1, 1]} : vector<128x8xf32> to vector<128x1xf32>
    %179 = vector.broadcast %176 : vector<128x1xf32> to vector<128x32xf32>
    %180 = vector.broadcast %172 : vector<1x32xf32> to vector<128x32xf32>
    %181 = arith.mulf %179, %180 : vector<128x32xf32>
    %182 = vector.broadcast %177 : vector<128x1xf32> to vector<128x32xf32>
    %183 = arith.addf %181, %182 : vector<128x32xf32>
    %cst_66 = arith.constant 0.000000e+00 : f32
    %184 = vector.broadcast %cst_66 : f32 to vector<128x32xf32>
    %185 = arith.cmpf oge, %183, %184 : vector<128x32xf32>
    %cst_67 = arith.constant 0.00999999977 : f32
    %186 = vector.broadcast %cst_67 : f32 to vector<128x32xf32>
    %187 = arith.mulf %186, %183 : vector<128x32xf32>
    %188 = arith.select %185, %183, %187 : vector<128x32xi1>, vector<128x32xf32>
    %c2_68 = arith.constant 2 : index
    %c0_69 = arith.constant 0 : index
    %c0_70 = arith.constant 0 : index
    %189 = vector.load %arg3[%c2_68, %c0_69, %c0_70] : memref<6x128x128xbf16, #tpu.memory_space<vmem>>, vector<1x128x128xbf16>
    %190 = vector.shape_cast %189 : vector<1x128x128xbf16> to vector<128x128xbf16>
    %191 = arith.truncf %188 : vector<128x32xf32> to vector<128x32xbf16>
    %cst_71 = arith.constant dense<0.000000e+00> : vector<128x32xf32>
    %192 = tpu.matmul %190, %191, %cst_71 {dimension_numbers = #tpu.dot_dimension_numbers<[1], [0], [0], [1], [0, 0, 1, 1], [], []>} : vector<128x128xbf16>, vector<128x32xbf16>, vector<128x32xf32> -> vector<128x32xf32>
    %193 = vector.broadcast %178 : vector<128x1xf32> to vector<128x32xf32>
    %194 = arith.addf %192, %193 : vector<128x32xf32>
    %cst_72 = arith.constant 0.000000e+00 : f32
    %195 = vector.broadcast %cst_72 : f32 to vector<128x32xf32>
    %196 = arith.cmpf oge, %194, %195 : vector<128x32xf32>
    %cst_73 = arith.constant 0.00999999977 : f32
    %197 = vector.broadcast %cst_73 : f32 to vector<128x32xf32>
    %198 = arith.mulf %197, %194 : vector<128x32xf32>
    %199 = arith.select %196, %194, %198 : vector<128x32xi1>, vector<128x32xf32>
    %c2_74 = arith.constant 2 : index
    %c0_75 = arith.constant 0 : index
    %c0_76 = arith.constant 0 : index
    %200 = vector.load %arg4[%c2_74, %c0_75, %c0_76] : memref<6x8x128xbf16, #tpu.memory_space<vmem>>, vector<1x8x128xbf16>
    %201 = vector.shape_cast %200 : vector<1x8x128xbf16> to vector<8x128xbf16>
    %202 = arith.truncf %199 : vector<128x32xf32> to vector<128x32xbf16>
    %cst_77 = arith.constant dense<0.000000e+00> : vector<8x32xf32>
    %203 = tpu.matmul %201, %202, %cst_77 {dimension_numbers = #tpu.dot_dimension_numbers<[1], [0], [0], [1], [0, 0, 1, 1], [], []>} : vector<8x128xbf16>, vector<128x32xbf16>, vector<8x32xf32> -> vector<8x32xf32>
    %204 = vector.extract_strided_slice %203 {offsets = [0, 0], sizes = [1, 32], strides = [1, 1]} : vector<8x32xf32> to vector<1x32xf32>
    %c2_78 = arith.constant 2 : index
    %c0_79 = arith.constant 0 : index
    %205 = memref.load %arg6[%c2_78, %c0_79] : memref<6x2xf32, #tpu.memory_space<smem>>
    %206 = vector.broadcast %205 : f32 to vector<1x32xf32>
    %207 = arith.addf %204, %206 : vector<1x32xf32>
    %208 = math.tanh %207 : vector<1x32xf32>
    %209 = vector.extract_strided_slice %203 {offsets = [1, 0], sizes = [1, 32], strides = [1, 1]} : vector<8x32xf32> to vector<1x32xf32>
    %c2_80 = arith.constant 2 : index
    %c1_81 = arith.constant 1 : index
    %210 = memref.load %arg6[%c2_80, %c1_81] : memref<6x2xf32, #tpu.memory_space<smem>>
    %211 = vector.broadcast %210 : f32 to vector<1x32xf32>
    %212 = arith.addf %209, %211 : vector<1x32xf32>
    %213 = arith.subf %127, %212 : vector<1x32xf32>
    %cst_82 = arith.constant 0.000000e+00 : f32
    %214 = vector.broadcast %cst_82 : f32 to vector<1x32xf32>
    %215 = arith.subf %214, %208 : vector<1x32xf32>
    %216 = math.exp %215 : vector<1x32xf32>
    %217 = arith.mulf %213, %216 : vector<1x32xf32>
    %218 = arith.subf %173, %208 : vector<1x32xf32>
    %c1_83 = arith.constant 1 : index
    %c0_84 = arith.constant 0 : index
    %c0_85 = arith.constant 0 : index
    %219 = vector.load %arg5[%c1_83, %c0_84, %c0_85] : memref<6x128x8xf32, #tpu.memory_space<vmem>>, vector<1x128x8xf32>
    %220 = vector.shape_cast %219 : vector<1x128x8xf32> to vector<128x8xf32>
    %221 = vector.extract_strided_slice %220 {offsets = [0, 0], sizes = [128, 1], strides = [1, 1]} : vector<128x8xf32> to vector<128x1xf32>
    %222 = vector.extract_strided_slice %220 {offsets = [0, 1], sizes = [128, 1], strides = [1, 1]} : vector<128x8xf32> to vector<128x1xf32>
    %223 = vector.extract_strided_slice %220 {offsets = [0, 2], sizes = [128, 1], strides = [1, 1]} : vector<128x8xf32> to vector<128x1xf32>
    %224 = vector.broadcast %221 : vector<128x1xf32> to vector<128x32xf32>
    %225 = vector.broadcast %217 : vector<1x32xf32> to vector<128x32xf32>
    %226 = arith.mulf %224, %225 : vector<128x32xf32>
    %227 = vector.broadcast %222 : vector<128x1xf32> to vector<128x32xf32>
    %228 = arith.addf %226, %227 : vector<128x32xf32>
    %cst_86 = arith.constant 0.000000e+00 : f32
    %229 = vector.broadcast %cst_86 : f32 to vector<128x32xf32>
    %230 = arith.cmpf oge, %228, %229 : vector<128x32xf32>
    %cst_87 = arith.constant 0.00999999977 : f32
    %231 = vector.broadcast %cst_87 : f32 to vector<128x32xf32>
    %232 = arith.mulf %231, %228 : vector<128x32xf32>
    %233 = arith.select %230, %228, %232 : vector<128x32xi1>, vector<128x32xf32>
    %c1_88 = arith.constant 1 : index
    %c0_89 = arith.constant 0 : index
    %c0_90 = arith.constant 0 : index
    %234 = vector.load %arg3[%c1_88, %c0_89, %c0_90] : memref<6x128x128xbf16, #tpu.memory_space<vmem>>, vector<1x128x128xbf16>
    %235 = vector.shape_cast %234 : vector<1x128x128xbf16> to vector<128x128xbf16>
    %236 = arith.truncf %233 : vector<128x32xf32> to vector<128x32xbf16>
    %cst_91 = arith.constant dense<0.000000e+00> : vector<128x32xf32>
    %237 = tpu.matmul %235, %236, %cst_91 {dimension_numbers = #tpu.dot_dimension_numbers<[1], [0], [0], [1], [0, 0, 1, 1], [], []>} : vector<128x128xbf16>, vector<128x32xbf16>, vector<128x32xf32> -> vector<128x32xf32>
    %238 = vector.broadcast %223 : vector<128x1xf32> to vector<128x32xf32>
    %239 = arith.addf %237, %238 : vector<128x32xf32>
    %cst_92 = arith.constant 0.000000e+00 : f32
    %240 = vector.broadcast %cst_92 : f32 to vector<128x32xf32>
    %241 = arith.cmpf oge, %239, %240 : vector<128x32xf32>
    %cst_93 = arith.constant 0.00999999977 : f32
    %242 = vector.broadcast %cst_93 : f32 to vector<128x32xf32>
    %243 = arith.mulf %242, %239 : vector<128x32xf32>
    %244 = arith.select %241, %239, %243 : vector<128x32xi1>, vector<128x32xf32>
    %c1_94 = arith.constant 1 : index
    %c0_95 = arith.constant 0 : index
    %c0_96 = arith.constant 0 : index
    %245 = vector.load %arg4[%c1_94, %c0_95, %c0_96] : memref<6x8x128xbf16, #tpu.memory_space<vmem>>, vector<1x8x128xbf16>
    %246 = vector.shape_cast %245 : vector<1x8x128xbf16> to vector<8x128xbf16>
    %247 = arith.truncf %244 : vector<128x32xf32> to vector<128x32xbf16>
    %cst_97 = arith.constant dense<0.000000e+00> : vector<8x32xf32>
    %248 = tpu.matmul %246, %247, %cst_97 {dimension_numbers = #tpu.dot_dimension_numbers<[1], [0], [0], [1], [0, 0, 1, 1], [], []>} : vector<8x128xbf16>, vector<128x32xbf16>, vector<8x32xf32> -> vector<8x32xf32>
    %249 = vector.extract_strided_slice %248 {offsets = [0, 0], sizes = [1, 32], strides = [1, 1]} : vector<8x32xf32> to vector<1x32xf32>
    %c1_98 = arith.constant 1 : index
    %c0_99 = arith.constant 0 : index
    %250 = memref.load %arg6[%c1_98, %c0_99] : memref<6x2xf32, #tpu.memory_space<smem>>
    %251 = vector.broadcast %250 : f32 to vector<1x32xf32>
    %252 = arith.addf %249, %251 : vector<1x32xf32>
    %253 = math.tanh %252 : vector<1x32xf32>
    %254 = vector.extract_strided_slice %248 {offsets = [1, 0], sizes = [1, 32], strides = [1, 1]} : vector<8x32xf32> to vector<1x32xf32>
    %c1_100 = arith.constant 1 : index
    %c1_101 = arith.constant 1 : index
    %255 = memref.load %arg6[%c1_100, %c1_101] : memref<6x2xf32, #tpu.memory_space<smem>>
    %256 = vector.broadcast %255 : f32 to vector<1x32xf32>
    %257 = arith.addf %254, %256 : vector<1x32xf32>
    %258 = arith.subf %172, %257 : vector<1x32xf32>
    %cst_102 = arith.constant 0.000000e+00 : f32
    %259 = vector.broadcast %cst_102 : f32 to vector<1x32xf32>
    %260 = arith.subf %259, %253 : vector<1x32xf32>
    %261 = math.exp %260 : vector<1x32xf32>
    %262 = arith.mulf %258, %261 : vector<1x32xf32>
    %263 = arith.subf %218, %253 : vector<1x32xf32>
    %c0_103 = arith.constant 0 : index
    %c0_104 = arith.constant 0 : index
    %c0_105 = arith.constant 0 : index
    %264 = vector.load %arg5[%c0_103, %c0_104, %c0_105] : memref<6x128x8xf32, #tpu.memory_space<vmem>>, vector<1x128x8xf32>
    %265 = vector.shape_cast %264 : vector<1x128x8xf32> to vector<128x8xf32>
    %266 = vector.extract_strided_slice %265 {offsets = [0, 0], sizes = [128, 1], strides = [1, 1]} : vector<128x8xf32> to vector<128x1xf32>
    %267 = vector.extract_strided_slice %265 {offsets = [0, 1], sizes = [128, 1], strides = [1, 1]} : vector<128x8xf32> to vector<128x1xf32>
    %268 = vector.extract_strided_slice %265 {offsets = [0, 2], sizes = [128, 1], strides = [1, 1]} : vector<128x8xf32> to vector<128x1xf32>
    %269 = vector.broadcast %266 : vector<128x1xf32> to vector<128x32xf32>
    %270 = vector.broadcast %262 : vector<1x32xf32> to vector<128x32xf32>
    %271 = arith.mulf %269, %270 : vector<128x32xf32>
    %272 = vector.broadcast %267 : vector<128x1xf32> to vector<128x32xf32>
    %273 = arith.addf %271, %272 : vector<128x32xf32>
    %cst_106 = arith.constant 0.000000e+00 : f32
    %274 = vector.broadcast %cst_106 : f32 to vector<128x32xf32>
    %275 = arith.cmpf oge, %273, %274 : vector<128x32xf32>
    %cst_107 = arith.constant 0.00999999977 : f32
    %276 = vector.broadcast %cst_107 : f32 to vector<128x32xf32>
    %277 = arith.mulf %276, %273 : vector<128x32xf32>
    %278 = arith.select %275, %273, %277 : vector<128x32xi1>, vector<128x32xf32>
    %c0_108 = arith.constant 0 : index
    %c0_109 = arith.constant 0 : index
    %c0_110 = arith.constant 0 : index
    %279 = vector.load %arg3[%c0_108, %c0_109, %c0_110] : memref<6x128x128xbf16, #tpu.memory_space<vmem>>, vector<1x128x128xbf16>
    %280 = vector.shape_cast %279 : vector<1x128x128xbf16> to vector<128x128xbf16>
    %281 = arith.truncf %278 : vector<128x32xf32> to vector<128x32xbf16>
    %cst_111 = arith.constant dense<0.000000e+00> : vector<128x32xf32>
    %282 = tpu.matmul %280, %281, %cst_111 {dimension_numbers = #tpu.dot_dimension_numbers<[1], [0], [0], [1], [0, 0, 1, 1], [], []>} : vector<128x128xbf16>, vector<128x32xbf16>, vector<128x32xf32> -> vector<128x32xf32>
    %283 = vector.broadcast %268 : vector<128x1xf32> to vector<128x32xf32>
    %284 = arith.addf %282, %283 : vector<128x32xf32>
    %cst_112 = arith.constant 0.000000e+00 : f32
    %285 = vector.broadcast %cst_112 : f32 to vector<128x32xf32>
    %286 = arith.cmpf oge, %284, %285 : vector<128x32xf32>
    %cst_113 = arith.constant 0.00999999977 : f32
    %287 = vector.broadcast %cst_113 : f32 to vector<128x32xf32>
    %288 = arith.mulf %287, %284 : vector<128x32xf32>
    %289 = arith.select %286, %284, %288 : vector<128x32xi1>, vector<128x32xf32>
    %c0_114 = arith.constant 0 : index
    %c0_115 = arith.constant 0 : index
    %c0_116 = arith.constant 0 : index
    %290 = vector.load %arg4[%c0_114, %c0_115, %c0_116] : memref<6x8x128xbf16, #tpu.memory_space<vmem>>, vector<1x8x128xbf16>
    %291 = vector.shape_cast %290 : vector<1x8x128xbf16> to vector<8x128xbf16>
    %292 = arith.truncf %289 : vector<128x32xf32> to vector<128x32xbf16>
    %cst_117 = arith.constant dense<0.000000e+00> : vector<8x32xf32>
    %293 = tpu.matmul %291, %292, %cst_117 {dimension_numbers = #tpu.dot_dimension_numbers<[1], [0], [0], [1], [0, 0, 1, 1], [], []>} : vector<8x128xbf16>, vector<128x32xbf16>, vector<8x32xf32> -> vector<8x32xf32>
    %294 = vector.extract_strided_slice %293 {offsets = [0, 0], sizes = [1, 32], strides = [1, 1]} : vector<8x32xf32> to vector<1x32xf32>
    %c0_118 = arith.constant 0 : index
    %c0_119 = arith.constant 0 : index
    %295 = memref.load %arg6[%c0_118, %c0_119] : memref<6x2xf32, #tpu.memory_space<smem>>
    %296 = vector.broadcast %295 : f32 to vector<1x32xf32>
    %297 = arith.addf %294, %296 : vector<1x32xf32>
    %298 = math.tanh %297 : vector<1x32xf32>
    %299 = vector.extract_strided_slice %293 {offsets = [1, 0], sizes = [1, 32], strides = [1, 1]} : vector<8x32xf32> to vector<1x32xf32>
    %c0_120 = arith.constant 0 : index
    %c1_121 = arith.constant 1 : index
    %300 = memref.load %arg6[%c0_120, %c1_121] : memref<6x2xf32, #tpu.memory_space<smem>>
    %301 = vector.broadcast %300 : f32 to vector<1x32xf32>
    %302 = arith.addf %299, %301 : vector<1x32xf32>
    %303 = arith.subf %217, %302 : vector<1x32xf32>
    %cst_122 = arith.constant 0.000000e+00 : f32
    %304 = vector.broadcast %cst_122 : f32 to vector<1x32xf32>
    %305 = arith.subf %304, %298 : vector<1x32xf32>
    %306 = math.exp %305 : vector<1x32xf32>
    %307 = arith.mulf %303, %306 : vector<1x32xf32>
    %308 = arith.subf %263, %298 : vector<1x32xf32>
    %309 = arith.mulf %307, %307 : vector<1x32xf32>
    %310 = arith.mulf %262, %262 : vector<1x32xf32>
    %311 = arith.addf %309, %310 : vector<1x32xf32>
    %cst_123 = arith.constant -5.000000e-01 : f32
    %312 = vector.broadcast %cst_123 : f32 to vector<1x32xf32>
    %313 = arith.mulf %312, %311 : vector<1x32xf32>
    %cst_124 = arith.constant 1.83787704 : f32
    %314 = vector.broadcast %cst_124 : f32 to vector<1x32xf32>
    %315 = arith.subf %313, %314 : vector<1x32xf32>
    %316 = arith.addf %315, %308 : vector<1x32xf32>
    %cst_125 = arith.constant dense<0.000000e+00> : vector<32xf32>
    %317 = vector.multi_reduction <add>, %31, %cst_125 [0] : vector<2x32xf32> to vector<32xf32>
    %318 = vector.shape_cast %317 : vector<32xf32> to vector<1x32xf32>
    %cst_126 = arith.constant 2.000000e+00 : f32
    %319 = vector.broadcast %cst_126 : f32 to vector<1x32xf32>
    %320 = arith.mulf %319, %318 : vector<1x32xf32>
    %cst_127 = arith.constant 1.38629436 : f32
    %321 = vector.broadcast %cst_127 : f32 to vector<1x32xf32>
    %322 = arith.addf %320, %321 : vector<1x32xf32>
    %323 = math.absf %35 : vector<2x32xf32>
    %cst_128 = arith.constant dense<0.000000e+00> : vector<32xf32>
    %324 = vector.multi_reduction <add>, %323, %cst_128 [0] : vector<2x32xf32> to vector<32xf32>
    %325 = vector.shape_cast %324 : vector<32xf32> to vector<1x32xf32>
    %326 = arith.addf %322, %325 : vector<1x32xf32>
    %cst_129 = arith.constant 2.000000e+00 : f32
    %327 = vector.broadcast %cst_129 : f32 to vector<1x32xf32>
    %328 = arith.mulf %327, %316 : vector<1x32xf32>
    %329 = arith.subf %326, %328 : vector<1x32xf32>
    %330 = arith.mulf %329, %4 : vector<1x32xf32>
    %331 = vector.shape_cast %330 : vector<1x32xf32> to vector<1x1x32xf32>
    %cst_130 = arith.constant dense<0.000000e+00> : vector<1xf32>
    %332 = vector.multi_reduction <add>, %331, %cst_130 [1, 2] : vector<1x1x32xf32> to vector<1xf32>
    %333 = vector.shape_cast %332 : vector<1xf32> to vector<1x1x1xf32>
    %334 = vector.extract %333[0, 0, 0] : f32 from vector<1x1x1xf32>
    %c0_131 = arith.constant 0 : index
    %c0_132 = arith.constant 0 : index
    %335 = vector.load %arg2[%c0_131, %c0_132] : memref<8x8xf32, #tpu.memory_space<vmem>>, vector<8x8xf32>
    %336 = vector.extract_strided_slice %335 {offsets = [0, 0], sizes = [2, 8], strides = [1, 1]} : vector<8x8xf32> to vector<2x8xf32>
    %337 = vector.extract_strided_slice %335 {offsets = [2, 0], sizes = [2, 8], strides = [1, 1]} : vector<8x8xf32> to vector<2x8xf32>
    %cst_133 = arith.constant dense<0xFF800000> : vector<8xf32>
    %338 = vector.multi_reduction <maximumf>, %336, %cst_133 [0] : vector<2x8xf32> to vector<8xf32>
    %339 = vector.shape_cast %338 : vector<8xf32> to vector<1x8xf32>
    %340 = vector.broadcast %339 : vector<1x8xf32> to vector<2x8xf32>
    %341 = arith.subf %336, %340 : vector<2x8xf32>
    %342 = math.exp %341 : vector<2x8xf32>
    %cst_134 = arith.constant dense<0.000000e+00> : vector<8xf32>
    %343 = vector.multi_reduction <add>, %342, %cst_134 [0] : vector<2x8xf32> to vector<8xf32>
    %344 = vector.shape_cast %343 : vector<8xf32> to vector<1x8xf32>
    %345 = math.log %344 : vector<1x8xf32>
    %346 = arith.addf %345, %339 : vector<1x8xf32>
    %347 = vector.broadcast %346 : vector<1x8xf32> to vector<2x8xf32>
    %348 = arith.subf %336, %347 : vector<2x8xf32>
    %349 = arith.mulf %337, %348 : vector<2x8xf32>
    %350 = vector.shape_cast %349 : vector<2x8xf32> to vector<1x2x8xf32>
    %cst_135 = arith.constant dense<0.000000e+00> : vector<1xf32>
    %351 = vector.multi_reduction <add>, %350, %cst_135 [1, 2] : vector<1x2x8xf32> to vector<1xf32>
    %352 = vector.shape_cast %351 : vector<1xf32> to vector<1x1x1xf32>
    %353 = vector.extract %352[0, 0, 0] : f32 from vector<1x1x1xf32>
    %cst_136 = arith.constant 0.000000e+00 : f32
    %354 = arith.subf %cst_136, %353 : f32
    %c0_137 = arith.constant 0 : index
    %c0_138 = arith.constant 0 : index
    %355 = memref.load %arg7[%c0_137, %c0_138] : memref<1x4xf32, #tpu.memory_space<smem>>
    memref.store %334, %arg7[%c0_137, %c0_138] : memref<1x4xf32, #tpu.memory_space<smem>>
    %c0_139 = arith.constant 0 : index
    %c1_140 = arith.constant 1 : index
    %356 = memref.load %arg7[%c0_139, %c1_140] : memref<1x4xf32, #tpu.memory_space<smem>>
    memref.store %10, %arg7[%c0_139, %c1_140] : memref<1x4xf32, #tpu.memory_space<smem>>
    %c0_141 = arith.constant 0 : index
    %c2_142 = arith.constant 2 : index
    %357 = memref.load %arg7[%c0_141, %c2_142] : memref<1x4xf32, #tpu.memory_space<smem>>
    memref.store %23, %arg7[%c0_141, %c2_142] : memref<1x4xf32, #tpu.memory_space<smem>>
    %c0_143 = arith.constant 0 : index
    %c3_144 = arith.constant 3 : index
    %358 = memref.load %arg7[%c0_143, %c3_144] : memref<1x4xf32, #tpu.memory_space<smem>>
    memref.store %354, %arg7[%c0_143, %c3_144] : memref<1x4xf32, #tpu.memory_space<smem>>
    return
  }
  func.func @transform_0(%arg0: i32) -> (i32, i32) {
    %c0_i32 = arith.constant 0 : i32
    %c0_i32_0 = arith.constant 0 : i32
    return %c0_i32, %arg0 : i32, i32
  }
  func.func @transform_1(%arg0: i32) -> (i32, i32) {
    %c0_i32 = arith.constant 0 : i32
    %c0_i32_0 = arith.constant 0 : i32
    return %c0_i32, %arg0 : i32, i32
  }
  func.func @transform_2(%arg0: i32) -> (i32, i32, i32) {
    %c0_i32 = arith.constant 0 : i32
    %c0_i32_0 = arith.constant 0 : i32
    %c0_i32_1 = arith.constant 0 : i32
    %c0_i32_2 = arith.constant 0 : i32
    return %c0_i32, %c0_i32_0, %c0_i32_1 : i32, i32, i32
  }
  func.func @transform_3(%arg0: i32) -> (i32, i32, i32) {
    %c0_i32 = arith.constant 0 : i32
    %c0_i32_0 = arith.constant 0 : i32
    %c0_i32_1 = arith.constant 0 : i32
    %c0_i32_2 = arith.constant 0 : i32
    return %c0_i32, %c0_i32_0, %c0_i32_1 : i32, i32, i32
  }
  func.func @transform_4(%arg0: i32) -> (i32, i32, i32) {
    %c0_i32 = arith.constant 0 : i32
    %c0_i32_0 = arith.constant 0 : i32
    %c0_i32_1 = arith.constant 0 : i32
    %c0_i32_2 = arith.constant 0 : i32
    return %c0_i32, %c0_i32_0, %c0_i32_1 : i32, i32, i32
  }
  func.func @transform_5(%arg0: i32) -> (i32, i32) {
    %c0_i32 = arith.constant 0 : i32
    %c0_i32_0 = arith.constant 0 : i32
    %c0_i32_1 = arith.constant 0 : i32
    return %c0_i32, %c0_i32_0 : i32, i32
  }
  func.func @transform_6(%arg0: i32) -> (i32, i32) {
    %c0_i32 = arith.constant 0 : i32
    %c0_i32_0 = arith.constant 0 : i32
    return %arg0, %c0_i32 : i32, i32
  }
}

</mosaic_0001>

<llo_original>
// kernel: tpu_custom_call.1
$region0: #{tpu_custom_call.1}
  #allocation0 [shape = 'u32[]', space=smem, size = 0x4, offset = 0x4, fixed_abs, tag = 'smem constant byte address 0x4 - core index']
  #allocation1 [shape = 'u32[144,128]{1,0:T(1,128)}', space=vmem, size = 0x12000, scoped, tag = 'internal scratch']
  %s0 = inlined_call_operand.vmem [shape: f32[8,32], index: 0, kind: input, shape index: {}]
  %s1 = inlined_call_operand.vmem [shape: f32[8,8], index: 1, kind: input, shape index: {}]
  %s2 = inlined_call_operand.vmem [shape: bf16[6,128,128], index: 2, kind: input, shape index: {}]
  %s3 = inlined_call_operand.vmem [shape: bf16[6,8,128], index: 3, kind: input, shape index: {}]
  %s4 = inlined_call_operand.vmem [shape: f32[6,128,8], index: 4, kind: input, shape index: {}]
  %s5 = inlined_call_operand.vmem [shape: f32[6,2], index: 5, kind: input, shape index: {}]
  %s6 = inlined_call_operand.hbm [shape: f32[1,4], index: 6, kind: output, shape index: {}]
  %s7 = sld [smem:[#allocation0]]
  $region38: #{tpu_custom_call.1} parent=0
    _
  %s9 = ssub.s32 1, %s7
  %s10 = scalar_select 0, %s9, %s7
  $region1: #{tpu_custom_call.1} parent=0
    #allocation2 [shape = 'u8[4096]{0}', space=smem, size = 0x1000, scoped, tag = 'input window, operand 5, single buffered']
    #allocation3 [shape = 's32[1]{0}', space=sflag, size = 0x4, scoped, tag = 'scoped memory for tpu_custom_call.1']
    #allocation4 [shape = 's32[1]{0}', space=sflag, size = 0x4, scoped, tag = 'scoped memory for tpu_custom_call.1']
    #allocation5 [shape = 'u8[512]{0}', space=smem, size = 0x200, scoped, tag = 'output window, operand 0, single buffered']
    %11 = vsyncpa [#allocation4], 0
    %12 = vsyncpa [#allocation3], 0
    // Predicated region
    $region2: #{tpu_custom_call.1} parent=1 // pred_check
      _
    $region3: #{tpu_custom_call.1} parent=1 // pred_check_branch
      %14 = sbr.rel (0) target = $region5
    $region4: #{tpu_custom_call.1} parent=1 // pred_region
      _
    $region5: #{tpu_custom_call.1} parent=1 // pred_fallthru
      _
    // Predicated region
    $region6: #{tpu_custom_call.1} parent=1 // pred_check
      _
    $region7: #{tpu_custom_call.1} parent=1 // pred_check_branch
      %16 = sbr.rel (0) target = $region9
    $region8: #{tpu_custom_call.1} parent=1 // pred_region
      _
    $region9: #{tpu_custom_call.1} parent=1 // pred_fallthru
      _
    // Predicated region
    $region10: #{tpu_custom_call.1} parent=1 // pred_check
      _
    $region11: #{tpu_custom_call.1} parent=1 // pred_check_branch
      %18 = sbr.rel (0) target = $region13
    $region12: #{tpu_custom_call.1} parent=1 // pred_region
      _
    $region13: #{tpu_custom_call.1} parent=1 // pred_fallthru
      _
    // Predicated region
    $region14: #{tpu_custom_call.1} parent=1 // pred_check
      _
    $region15: #{tpu_custom_call.1} parent=1 // pred_check_branch
      %20 = sbr.rel (0) target = $region17
    $region16: #{tpu_custom_call.1} parent=1 // pred_region
      _
    $region17: #{tpu_custom_call.1} parent=1 // pred_fallthru
      _
    // Predicated region
    $region18: #{tpu_custom_call.1} parent=1 // pred_check
      _
    $region19: #{tpu_custom_call.1} parent=1 // pred_check_branch
      %22 = sbr.rel (0) target = $region21
    $region20: #{tpu_custom_call.1} parent=1 // pred_region
      _
    $region21: #{tpu_custom_call.1} parent=1 // pred_fallthru
      _
    // Predicated region
    $region22: #{tpu_custom_call.1} parent=1 // pred_check
      _
    $region23: #{tpu_custom_call.1} parent=1 // pred_check_branch
      %24 = sbr.rel (0) target = $region25
    $region24: #{tpu_custom_call.1} parent=1 // pred_region
      %s26 = ssub.s32 128, 128
      %27 = vsyncadd [#allocation4], %s26
      %s29 = sshll.u32 %s5, 4
      %s30 = int_to_ptr.vmem [resolvable:$true] %s29
      %32 = dma.vmem_to_smem %s30, 128, [#allocation2], [#allocation4]
    $region25: #{tpu_custom_call.1} parent=1 // pred_fallthru
      _
    // Predicated region
    $region26: #{tpu_custom_call.1} parent=1 // pred_check
      _
    $region27: #{tpu_custom_call.1} parent=1 // pred_check_branch
      %34 = sbr.rel (0) target = $region29
    $region28: #{tpu_custom_call.1} parent=1 // pred_region
      %35 = dma.done [#allocation4], 128
    $region29: #{tpu_custom_call.1} parent=1 // pred_fallthru
      _
    %36 = sfence
    %v38 = vld [vmem:[%s0] sm:$0xff]
    %v40 = vrot.slane %v38, 4
    %v42 = vsub.f32 %v38, %v40
    %v43 = vand.u32 2147483647, %v42
    %v45 = vrot.slane %v43, 4
    %vm47 = vcmask 254976
    %v48 = vsel %vm47, %v45, 0.0
    %49 = vadd.xlane.f32.xlu0 %v48
    %v50 = vpop.xlane.xlu0 %49
    %v51 = vrot.slane %v50, 4
    %v52 = vadd.f32 %v50, %v51
    %v53 = vrot.slane %v52, 2
    %v54 = vadd.f32 %v52, %v53
    %v55 = vrot.slane %v54, 1
    %v56 = vadd.f32 %v54, %v55
    %s57 = vtos %v56
    %vm58 = vcmask 259076
    %v59 = vsel %vm58, %v43, -inf
    %v60 = vrot.slane %v59, 4
    %v61 = vmax.f32 %v59, %v60
    %v62 = vrot.slane %v61, 2
    %v63 = vmax.f32 %v61, %v62
    %v64 = vrot.slane %v63, 1
    %v65 = vmax.f32 %v63, %v64
    %67 = vrot.lane.b32.xlu0 %v65, 120
    %v68 = vpop.permute.xlu0 %67
    %v70 = vmax.f32 %v65, %v68
    %72 = vrot.lane.b32.xlu0 %v70, 112
    %v73 = vpop.permute.xlu0 %72
    %v75 = vmax.f32 %v70, %v73
    %vm76 = vcmask 57344
    %v77 = vsel %vm76, %v75, 0.0
    %78 = vadd.xlane.f32.xlu0 %v77
    %v79 = vpop.xlane.xlu0 %78
    %v80 = vrot.slane %v79, 4
    %v81 = vadd.f32 %v79, %v80
    %v82 = vrot.slane %v81, 2
    %v83 = vadd.f32 %v81, %v82
    %v84 = vrot.slane %v83, 1
    %v85 = vadd.f32 %v83, %v84
    %s86 = vtos %v85
    %v87 = vsub.f32 0.0, %v38
    %v88 = vmul.f32 %v87, 1.442695
    %v89 = vpow.pop %v88
    %v90 = vadd.f32 %v89, 1.0
    %v91 = vrcp.pop %v90
    %v92 = vmul.f32 1.0, %v91
    %v93 = vlog2.pop %v92
    %v94 = vmul.f32 %v93, 0.6931472
    %v95 = vadd.f32 %v92, 1e-09
    %v97 = vrot.slane %v95, 2
    %v99 = vrcp.pop %v97
    %v100 = vmul.f32 %v42, %v99
    %s101 = scalar_lea.vmem %s4, 640
    %v102 = vld [vmem:[%s101] sm:$0xff]
    %v103 = vld [vmem:[%s101 + $0x8] sm:$0xff]
    %v104 = vld [vmem:[%s101 + $0x10] sm:$0xff]
    %v105 = vld [vmem:[%s101 + $0x18] sm:$0xff]
    %v106 = vld [vmem:[%s101 + $0x20] sm:$0xff]
    %v107 = vld [vmem:[%s101 + $0x28] sm:$0xff]
    %v108 = vld [vmem:[%s101 + $0x30] sm:$0xff]
    %v109 = vld [vmem:[%s101 + $0x38] sm:$0xff]
    %v110 = vld [vmem:[%s101 + $0x40] sm:$0xff]
    %v111 = vld [vmem:[%s101 + $0x48] sm:$0xff]
    %v112 = vld [vmem:[%s101 + $0x50] sm:$0xff]
    %v113 = vld [vmem:[%s101 + $0x58] sm:$0xff]
    %v114 = vld [vmem:[%s101 + $0x60] sm:$0xff]
    %v115 = vld [vmem:[%s101 + $0x68] sm:$0xff]
    %v116 = vld [vmem:[%s101 + $0x70] sm:$0xff]
    %v117 = vld [vmem:[%s101 + $0x78] sm:$0xff]
    %119 = vset.pattern.permute.xlu0 0
    %120 = vperm.xlu0 %119, %v102
    %v121 = vpop.permute.xlu0 %120
    %124 = vset.pattern.permute.xlu0 0
    %125 = vperm.xlu0 %124, %v103
    %v126 = vpop.permute.xlu0 %125
    %129 = vset.pattern.permute.xlu0 0
    %130 = vperm.xlu0 %129, %v104
    %v131 = vpop.permute.xlu0 %130
    %134 = vset.pattern.permute.xlu0 0
    %135 = vperm.xlu0 %134, %v105
    %v136 = vpop.permute.xlu0 %135
    %139 = vset.pattern.permute.xlu0 0
    %140 = vperm.xlu0 %139, %v106
    %v141 = vpop.permute.xlu0 %140
    %144 = vset.pattern.permute.xlu0 0
    %145 = vperm.xlu0 %144, %v107
    %v146 = vpop.permute.xlu0 %145
    %149 = vset.pattern.permute.xlu0 0
    %150 = vperm.xlu0 %149, %v108
    %v151 = vpop.permute.xlu0 %150
    %154 = vset.pattern.permute.xlu0 0
    %155 = vperm.xlu0 %154, %v109
    %v156 = vpop.permute.xlu0 %155
    %159 = vset.pattern.permute.xlu0 0
    %160 = vperm.xlu0 %159, %v110
    %v161 = vpop.permute.xlu0 %160
    %164 = vset.pattern.permute.xlu0 0
    %165 = vperm.xlu0 %164, %v111
    %v166 = vpop.permute.xlu0 %165
    %169 = vset.pattern.permute.xlu0 0
    %170 = vperm.xlu0 %169, %v112
    %v171 = vpop.permute.xlu0 %170
    %174 = vset.pattern.permute.xlu0 0
    %175 = vperm.xlu0 %174, %v113
    %v176 = vpop.permute.xlu0 %175
    %179 = vset.pattern.permute.xlu0 0
    %180 = vperm.xlu0 %179, %v114
    %v181 = vpop.permute.xlu0 %180
    %184 = vset.pattern.permute.xlu0 0
    %185 = vperm.xlu0 %184, %v115
    %v186 = vpop.permute.xlu0 %185
    %189 = vset.pattern.permute.xlu0 0
    %190 = vperm.xlu0 %189, %v116
    %v191 = vpop.permute.xlu0 %190
    %194 = vset.pattern.permute.xlu0 0
    %195 = vperm.xlu0 %194, %v117
    %v196 = vpop.permute.xlu0 %195
    %v198 = vlaneseq
    %v199 = vshrl.u32 %v198, 7
    %v200 = vsub.s32 0, %v199
    %v201 = vrot.slane %v100, %v200
    %v202 = vmul.f32 %v121, %v201
    %v203 = vmul.f32 %v126, %v201
    %v204 = vmul.f32 %v131, %v201
    %v205 = vmul.f32 %v136, %v201
    %v206 = vmul.f32 %v141, %v201
    %v207 = vmul.f32 %v146, %v201
    %v208 = vmul.f32 %v151, %v201
    %v209 = vmul.f32 %v156, %v201
    %v210 = vmul.f32 %v161, %v201
    %v211 = vmul.f32 %v166, %v201
    %v212 = vmul.f32 %v171, %v201
    %v213 = vmul.f32 %v176, %v201
    %v214 = vmul.f32 %v181, %v201
    %v215 = vmul.f32 %v186, %v201
    %v216 = vmul.f32 %v191, %v201
    %v217 = vmul.f32 %v196, %v201
    %218 = vset.pattern.permute.xlu0 1
    %219 = vperm.xlu0 %218, %v102
    %v220 = vpop.permute.xlu0 %219
    %222 = vset.pattern.permute.xlu0 1
    %223 = vperm.xlu0 %222, %v103
    %v224 = vpop.permute.xlu0 %223
    %226 = vset.pattern.permute.xlu0 1
    %227 = vperm.xlu0 %226, %v104
    %v228 = vpop.permute.xlu0 %227
    %230 = vset.pattern.permute.xlu0 1
    %231 = vperm.xlu0 %230, %v105
    %v232 = vpop.permute.xlu0 %231
    %234 = vset.pattern.permute.xlu0 1
    %235 = vperm.xlu0 %234, %v106
    %v236 = vpop.permute.xlu0 %235
    %238 = vset.pattern.permute.xlu0 1
    %239 = vperm.xlu0 %238, %v107
    %v240 = vpop.permute.xlu0 %239
    %242 = vset.pattern.permute.xlu0 1
    %243 = vperm.xlu0 %242, %v108
    %v244 = vpop.permute.xlu0 %243
    %246 = vset.pattern.permute.xlu0 1
    %247 = vperm.xlu0 %246, %v109
    %v248 = vpop.permute.xlu0 %247
    %250 = vset.pattern.permute.xlu0 1
    %251 = vperm.xlu0 %250, %v110
    %v252 = vpop.permute.xlu0 %251
    %254 = vset.pattern.permute.xlu0 1
    %255 = vperm.xlu0 %254, %v111
    %v256 = vpop.permute.xlu0 %255
    %258 = vset.pattern.permute.xlu0 1
    %259 = vperm.xlu0 %258, %v112
    %v260 = vpop.permute.xlu0 %259
    %262 = vset.pattern.permute.xlu0 1
    %263 = vperm.xlu0 %262, %v113
    %v264 = vpop.permute.xlu0 %263
    %266 = vset.pattern.permute.xlu0 1
    %267 = vperm.xlu0 %266, %v114
    %v268 = vpop.permute.xlu0 %267
    %270 = vset.pattern.permute.xlu0 1
    %271 = vperm.xlu0 %270, %v115
    %v272 = vpop.permute.xlu0 %271
    %274 = vset.pattern.permute.xlu0 1
    %275 = vperm.xlu0 %274, %v116
    %v276 = vpop.permute.xlu0 %275
    %278 = vset.pattern.permute.xlu0 1
    %279 = vperm.xlu0 %278, %v117
    %v280 = vpop.permute.xlu0 %279
    %v282 = vadd.f32 %v202, %v220
    %v283 = vadd.f32 %v203, %v224
    %v284 = vadd.f32 %v204, %v228
    %v285 = vadd.f32 %v205, %v232
    %v286 = vadd.f32 %v206, %v236
    %v287 = vadd.f32 %v207, %v240
    %v288 = vadd.f32 %v208, %v244
    %v289 = vadd.f32 %v209, %v248
    %v290 = vadd.f32 %v210, %v252
    %v291 = vadd.f32 %v211, %v256
    %v292 = vadd.f32 %v212, %v260
    %v293 = vadd.f32 %v213, %v264
    %v294 = vadd.f32 %v214, %v268
    %v295 = vadd.f32 %v215, %v272
    %v296 = vadd.f32 %v216, %v276
    %v297 = vadd.f32 %v217, %v280
    %vm298 = vcmp.ge.f32.partialorder %v282, 0.0
    %vm299 = vcmp.ge.f32.partialorder %v283, 0.0
    %vm300 = vcmp.ge.f32.partialorder %v284, 0.0
    %vm301 = vcmp.ge.f32.partialorder %v285, 0.0
    %vm302 = vcmp.ge.f32.partialorder %v286, 0.0
    %vm303 = vcmp.ge.f32.partialorder %v287, 0.0
    %vm304 = vcmp.ge.f32.partialorder %v288, 0.0
    %vm305 = vcmp.ge.f32.partialorder %v289, 0.0
    %vm306 = vcmp.ge.f32.partialorder %v290, 0.0
    %vm307 = vcmp.ge.f32.partialorder %v291, 0.0
    %vm308 = vcmp.ge.f32.partialorder %v292, 0.0
    %vm309 = vcmp.ge.f32.partialorder %v293, 0.0
    %vm310 = vcmp.ge.f32.partialorder %v294, 0.0
    %vm311 = vcmp.ge.f32.partialorder %v295, 0.0
    %vm312 = vcmp.ge.f32.partialorder %v296, 0.0
    %vm313 = vcmp.ge.f32.partialorder %v297, 0.0
    %v314 = vmul.f32 %v282, 0.01
    %v315 = vmul.f32 %v283, 0.01
    %v316 = vmul.f32 %v284, 0.01
    %v317 = vmul.f32 %v285, 0.01
    %v318 = vmul.f32 %v286, 0.01
    %v319 = vmul.f32 %v287, 0.01
    %v320 = vmul.f32 %v288, 0.01
    %v321 = vmul.f32 %v289, 0.01
    %v322 = vmul.f32 %v290, 0.01
    %v323 = vmul.f32 %v291, 0.01
    %v324 = vmul.f32 %v292, 0.01
    %v325 = vmul.f32 %v293, 0.01
    %v326 = vmul.f32 %v294, 0.01
    %v327 = vmul.f32 %v295, 0.01
    %v328 = vmul.f32 %v296, 0.01
    %v329 = vmul.f32 %v297, 0.01
    %v330 = vsel %vm298, %v282, %v314
    %v331 = vsel %vm299, %v283, %v315
    %v332 = vsel %vm300, %v284, %v316
    %v333 = vsel %vm301, %v285, %v317
    %v334 = vsel %vm302, %v286, %v318
    %v335 = vsel %vm303, %v287, %v319
    %v336 = vsel %vm304, %v288, %v320
    %v337 = vsel %vm305, %v289, %v321
    %v338 = vsel %vm306, %v290, %v322
    %v339 = vsel %vm307, %v291, %v323
    %v340 = vsel %vm308, %v292, %v324
    %v341 = vsel %vm309, %v293, %v325
    %v342 = vsel %vm310, %v294, %v326
    %v343 = vsel %vm311, %v295, %v327
    %v344 = vsel %vm312, %v296, %v328
    %v345 = vsel %vm313, %v297, %v329
    %s346 = scalar_lea.vmem %s2, 320
    %v347 = vld [vmem:[%s346] sm:$0xf]
    %v348 = vld [vmem:[%s346 + $0x4] sm:$0xf]
    %v349 = vld [vmem:[%s346 + $0x8] sm:$0xf]
    %v350 = vld [vmem:[%s346 + $0xc] sm:$0xf]
    %v351 = vld [vmem:[%s346 + $0x10] sm:$0xf]
    %v352 = vld [vmem:[%s346 + $0x14] sm:$0xf]
    %v353 = vld [vmem:[%s346 + $0x18] sm:$0xf]
    %v354 = vld [vmem:[%s346 + $0x1c] sm:$0xf]
    %v355 = vld [vmem:[%s346 + $0x20] sm:$0xf]
    %v356 = vld [vmem:[%s346 + $0x24] sm:$0xf]
    %v357 = vld [vmem:[%s346 + $0x28] sm:$0xf]
    %v358 = vld [vmem:[%s346 + $0x2c] sm:$0xf]
    %v359 = vld [vmem:[%s346 + $0x30] sm:$0xf]
    %v360 = vld [vmem:[%s346 + $0x34] sm:$0xf]
    %v361 = vld [vmem:[%s346 + $0x38] sm:$0xf]
    %v362 = vld [vmem:[%s346 + $0x3c] sm:$0xf]
    %v363 = vpack.c.bf16 %v331, %v330
    %v364 = vpack.c.bf16 %v333, %v332
    %v365 = vpack.c.bf16 %v335, %v334
    %v366 = vpack.c.bf16 %v337, %v336
    %v367 = vpack.c.bf16 %v339, %v338
    %v368 = vpack.c.bf16 %v341, %v340
    %v369 = vpack.c.bf16 %v343, %v342
    %v370 = vpack.c.bf16 %v345, %v344
    %371 = vset.pattern.permute.xlu0 2
    %372 = vperm.xlu0 %371, %v102
    %v373 = vpop.permute.xlu0 %372
    %375 = vset.pattern.permute.xlu0 2
    %376 = vperm.xlu0 %375, %v103
    %v377 = vpop.permute.xlu0 %376
    %379 = vset.pattern.permute.xlu0 2
    %380 = vperm.xlu0 %379, %v104
    %v381 = vpop.permute.xlu0 %380
    %383 = vset.pattern.permute.xlu0 2
    %384 = vperm.xlu0 %383, %v105
    %v385 = vpop.permute.xlu0 %384
    %387 = vset.pattern.permute.xlu0 2
    %388 = vperm.xlu0 %387, %v106
    %v389 = vpop.permute.xlu0 %388
    %391 = vset.pattern.permute.xlu0 2
    %392 = vperm.xlu0 %391, %v107
    %v393 = vpop.permute.xlu0 %392
    %395 = vset.pattern.permute.xlu0 2
    %396 = vperm.xlu0 %395, %v108
    %v397 = vpop.permute.xlu0 %396
    %399 = vset.pattern.permute.xlu0 2
    %400 = vperm.xlu0 %399, %v109
    %v401 = vpop.permute.xlu0 %400
    %403 = vset.pattern.permute.xlu0 2
    %404 = vperm.xlu0 %403, %v110
    %v405 = vpop.permute.xlu0 %404
    %407 = vset.pattern.permute.xlu0 2
    %408 = vperm.xlu0 %407, %v111
    %v409 = vpop.permute.xlu0 %408
    %411 = vset.pattern.permute.xlu0 2
    %412 = vperm.xlu0 %411, %v112
    %v413 = vpop.permute.xlu0 %412
    %415 = vset.pattern.permute.xlu0 2
    %416 = vperm.xlu0 %415, %v113
    %v417 = vpop.permute.xlu0 %416
    %419 = vset.pattern.permute.xlu0 2
    %420 = vperm.xlu0 %419, %v114
    %v421 = vpop.permute.xlu0 %420
    %423 = vset.pattern.permute.xlu0 2
    %424 = vperm.xlu0 %423, %v115
    %v425 = vpop.permute.xlu0 %424
    %427 = vset.pattern.permute.xlu0 2
    %428 = vperm.xlu0 %427, %v116
    %v429 = vpop.permute.xlu0 %428
    %431 = vset.pattern.permute.xlu0 2
    %432 = vperm.xlu0 %431, %v117
    %v433 = vpop.permute.xlu0 %432
    %v451 = vunpack.c.l.b16 %v347
    %v452 = vunpack.c.l.b16 %v348
    %v453 = vunpack.c.l.b16 %v349
    %v454 = vunpack.c.l.b16 %v350
    %v455 = vunpack.c.l.b16 %v351
    %v456 = vunpack.c.l.b16 %v352
    %v457 = vunpack.c.l.b16 %v353
    %v458 = vunpack.c.l.b16 %v354
    %v459 = vunpack.c.l.b16 %v355
    %v460 = vunpack.c.l.b16 %v356
    %v461 = vunpack.c.l.b16 %v357
    %v462 = vunpack.c.l.b16 %v358
    %v463 = vunpack.c.l.b16 %v359
    %v464 = vunpack.c.l.b16 %v360
    %v465 = vunpack.c.l.b16 %v361
    %v466 = vunpack.c.l.b16 %v362
    %v467 = vpack.c.b16 %v452, %v451
    %v468 = vpack.c.b16 %v454, %v453
    %v469 = vpack.c.b16 %v456, %v455
    %v470 = vpack.c.b16 %v458, %v457
    %v471 = vpack.c.b16 %v460, %v459
    %v472 = vpack.c.b16 %v462, %v461
    %v473 = vpack.c.b16 %v464, %v463
    %v474 = vpack.c.b16 %v466, %v465
    %483 = vmatprep.subr.bf16.mxu0 0
    %484 = vmatpush1.bf16.msra.mxu0 %v363
    %485 = vmatprep.subr.bf16.mxu0 0
    %486 = vmatpush1.bf16.msra.mxu0 %v364
    %487 = vmatprep.subr.bf16.mxu0 0
    %488 = vmatpush1.bf16.msra.mxu0 %v365
    %489 = vmatprep.subr.bf16.mxu0 0
    %490 = vmatpush1.bf16.msra.mxu0 %v366
    %491 = vmatprep.subr.bf16.mxu0 0
    %492 = vmatpush1.bf16.msra.mxu0 %v367
    %493 = vmatprep.subr.bf16.mxu0 0
    %494 = vmatpush1.bf16.msra.mxu0 %v368
    %495 = vmatprep.subr.bf16.mxu0 0
    %496 = vmatpush1.bf16.msra.mxu0 %v369
    %497 = vmatprep.subr.bf16.mxu0 0
    %498 = vmatpush1.bf16.msra.mxu0 %v370
    %499 = vmatprep.subr.bf16.mxu0 0
    %500 = vmatpush1.bf16.msra.mxu0 0
    %501 = vmatprep.subr.bf16.mxu0 0
    %502 = vmatpush1.bf16.msra.mxu0 0
    %503 = vmatprep.subr.bf16.mxu0 0
    %504 = vmatpush1.bf16.msra.mxu0 0
    %505 = vmatprep.subr.bf16.mxu0 0
    %506 = vmatpush1.bf16.msra.mxu0 0
    %507 = vmatprep.subr.bf16.mxu0 0
    %508 = vmatpush1.bf16.msra.mxu0 0
    %509 = vmatprep.subr.bf16.mxu0 0
    %510 = vmatpush1.bf16.msra.mxu0 0
    %511 = vmatprep.subr.bf16.mxu0 0
    %512 = vmatpush1.bf16.msra.mxu0 0
    %513 = vmatprep.subr.bf16.mxu0 0
    %514 = vmatpush1.bf16.msra.mxu0 0
    %515 = vmatprep.mubr.bf16.mxu0 0
    %516 = vmatmul.mubr.bf16.gmra.mrb[0].mxu0 %v467
    %v517 = vpop.f32.mrb[0].mxu0
    %v518 = vadd.f32 %v373, %v517
    %v519 = vpop.f32.mrb[0].mxu0
    %v520 = vpop.f32.mrb[0].mxu0
    %v521 = vadd.f32 %v377, %v520
    %v522 = vpop.f32.mrb[0].mxu0
    %523 = vmatprep.mubr.bf16.mxu0 0
    %524 = vmatmul.mubr.bf16.gmra.mrb[0].mxu0 %v468
    %v525 = vpop.f32.mrb[0].mxu0
    %v526 = vadd.f32 %v381, %v525
    %v527 = vpop.f32.mrb[0].mxu0
    %v528 = vpop.f32.mrb[0].mxu0
    %v529 = vadd.f32 %v385, %v528
    %v530 = vpop.f32.mrb[0].mxu0
    %531 = vmatprep.mubr.bf16.mxu0 0
    %532 = vmatmul.mubr.bf16.gmra.mrb[0].mxu0 %v469
    %v533 = vpop.f32.mrb[0].mxu0
    %v534 = vadd.f32 %v389, %v533
    %v535 = vpop.f32.mrb[0].mxu0
    %v536 = vpop.f32.mrb[0].mxu0
    %v537 = vadd.f32 %v393, %v536
    %v538 = vpop.f32.mrb[0].mxu0
    %539 = vmatprep.mubr.bf16.mxu0 0
    %540 = vmatmul.mubr.bf16.gmra.mrb[0].mxu0 %v470
    %v541 = vpop.f32.mrb[0].mxu0
    %v542 = vadd.f32 %v397, %v541
    %v543 = vpop.f32.mrb[0].mxu0
    %v544 = vpop.f32.mrb[0].mxu0
    %v545 = vadd.f32 %v401, %v544
    %v546 = vpop.f32.mrb[0].mxu0
    %547 = vmatprep.mubr.bf16.mxu0 0
    %548 = vmatmul.mubr.bf16.gmra.mrb[0].mxu0 %v471
    %v549 = vpop.f32.mrb[0].mxu0
    %v550 = vadd.f32 %v405, %v549
    %v551 = vpop.f32.mrb[0].mxu0
    %v552 = vpop.f32.mrb[0].mxu0
    %v553 = vadd.f32 %v409, %v552
    %v554 = vpop.f32.mrb[0].mxu0
    %555 = vmatprep.mubr.bf16.mxu0 0
    %556 = vmatmul.mubr.bf16.gmra.mrb[0].mxu0 %v472
    %v557 = vpop.f32.mrb[0].mxu0
    %v558 = vadd.f32 %v413, %v557
    %v559 = vpop.f32.mrb[0].mxu0
    %v560 = vpop.f32.mrb[0].mxu0
    %v561 = vadd.f32 %v417, %v560
    %v562 = vpop.f32.mrb[0].mxu0
    %563 = vmatprep.mubr.bf16.mxu0 0
    %564 = vmatmul.mubr.bf16.gmra.mrb[0].mxu0 %v473
    %v565 = vpop.f32.mrb[0].mxu0
    %v566 = vadd.f32 %v421, %v565
    %v567 = vpop.f32.mrb[0].mxu0
    %v568 = vpop.f32.mrb[0].mxu0
    %v569 = vadd.f32 %v425, %v568
    %v570 = vpop.f32.mrb[0].mxu0
    %571 = vmatprep.mubr.bf16.mxu0 0
    %572 = vmatmul.mubr.bf16.gmra.mrb[0].mxu0 %v474
    %v573 = vpop.f32.mrb[0].mxu0
    %v574 = vadd.f32 %v429, %v573
    %v575 = vpop.f32.mrb[0].mxu0
    %v576 = vpop.f32.mrb[0].mxu0
    %v577 = vadd.f32 %v433, %v576
    %v578 = vpop.f32.mrb[0].mxu0
    %579 = vdwg.mxu0
    %vm580 = vcmp.ge.f32.partialorder %v518, 0.0
    %vm581 = vcmp.ge.f32.partialorder %v521, 0.0
    %vm582 = vcmp.ge.f32.partialorder %v526, 0.0
    %vm583 = vcmp.ge.f32.partialorder %v529, 0.0
    %vm584 = vcmp.ge.f32.partialorder %v534, 0.0
    %vm585 = vcmp.ge.f32.partialorder %v537, 0.0
    %vm586 = vcmp.ge.f32.partialorder %v542, 0.0
    %vm587 = vcmp.ge.f32.partialorder %v545, 0.0
    %vm588 = vcmp.ge.f32.partialorder %v550, 0.0
    %vm589 = vcmp.ge.f32.partialorder %v553, 0.0
    %vm590 = vcmp.ge.f32.partialorder %v558, 0.0
    %vm591 = vcmp.ge.f32.partialorder %v561, 0.0
    %vm592 = vcmp.ge.f32.partialorder %v566, 0.0
    %vm593 = vcmp.ge.f32.partialorder %v569, 0.0
    %vm594 = vcmp.ge.f32.partialorder %v574, 0.0
    %vm595 = vcmp.ge.f32.partialorder %v577, 0.0
    %v596 = vmul.f32 %v518, 0.01
    %v597 = vmul.f32 %v521, 0.01
    %v598 = vmul.f32 %v526, 0.01
    %v599 = vmul.f32 %v529, 0.01
    %v600 = vmul.f32 %v534, 0.01
    %v601 = vmul.f32 %v537, 0.01
    %v602 = vmul.f32 %v542, 0.01
    %v603 = vmul.f32 %v545, 0.01
    %v604 = vmul.f32 %v550, 0.01
    %v605 = vmul.f32 %v553, 0.01
    %v606 = vmul.f32 %v558, 0.01
    %v607 = vmul.f32 %v561, 0.01
    %v608 = vmul.f32 %v566, 0.01
    %v609 = vmul.f32 %v569, 0.01
    %v610 = vmul.f32 %v574, 0.01
    %v611 = vmul.f32 %v577, 0.01
    %v612 = vsel %vm580, %v518, %v596
    %v613 = vsel %vm581, %v521, %v597
    %v614 = vsel %vm582, %v526, %v598
    %v615 = vsel %vm583, %v529, %v599
    %v616 = vsel %vm584, %v534, %v600
    %v617 = vsel %vm585, %v537, %v601
    %v618 = vsel %vm586, %v542, %v602
    %v619 = vsel %vm587, %v545, %v603
    %v620 = vsel %vm588, %v550, %v604
    %v621 = vsel %vm589, %v553, %v605
    %v622 = vsel %vm590, %v558, %v606
    %v623 = vsel %vm591, %v561, %v607
    %v624 = vsel %vm592, %v566, %v608
    %v625 = vsel %vm593, %v569, %v609
    %v626 = vsel %vm594, %v574, %v610
    %v627 = vsel %vm595, %v577, %v611
    %s628 = scalar_lea.vmem %s3, 20
    %v629 = vld [vmem:[%s628] sm:$0xf]
    %v630 = vpack.c.bf16 %v613, %v612
    %v631 = vpack.c.bf16 %v615, %v614
    %v632 = vpack.c.bf16 %v617, %v616
    %v633 = vpack.c.bf16 %v619, %v618
    %v634 = vpack.c.bf16 %v621, %v620
    %v635 = vpack.c.bf16 %v623, %v622
    %v636 = vpack.c.bf16 %v625, %v624
    %v637 = vpack.c.bf16 %v627, %v626
    %638 = vmatprep.subr.bf16.mxu0 0
    %639 = vmatpush1.bf16.msra.mxu0 %v630
    %640 = vmatprep.subr.bf16.mxu0 0
    %641 = vmatpush1.bf16.msra.mxu0 %v631
    %642 = vmatprep.subr.bf16.mxu0 0
    %643 = vmatpush1.bf16.msra.mxu0 %v632
    %644 = vmatprep.subr.bf16.mxu0 0
    %645 = vmatpush1.bf16.msra.mxu0 %v633
    %646 = vmatprep.subr.bf16.mxu0 0
    %647 = vmatpush1.bf16.msra.mxu0 %v634
    %648 = vmatprep.subr.bf16.mxu0 0
    %649 = vmatpush1.bf16.msra.mxu0 %v635
    %650 = vmatprep.subr.bf16.mxu0 0
    %651 = vmatpush1.bf16.msra.mxu0 %v636
    %652 = vmatprep.subr.bf16.mxu0 0
    %653 = vmatpush1.bf16.msra.mxu0 %v637
    %654 = vmatprep.subr.bf16.mxu0 0
    %655 = vmatpush1.bf16.msra.mxu0 0
    %656 = vmatprep.subr.bf16.mxu0 0
    %657 = vmatpush1.bf16.msra.mxu0 0
    %658 = vmatprep.subr.bf16.mxu0 0
    %659 = vmatpush1.bf16.msra.mxu0 0
    %660 = vmatprep.subr.bf16.mxu0 0
    %661 = vmatpush1.bf16.msra.mxu0 0
    %662 = vmatprep.subr.bf16.mxu0 0
    %663 = vmatpush1.bf16.msra.mxu0 0
    %664 = vmatprep.subr.bf16.mxu0 0
    %665 = vmatpush1.bf16.msra.mxu0 0
    %666 = vmatprep.subr.bf16.mxu0 0
    %667 = vmatpush1.bf16.msra.mxu0 0
    %668 = vmatprep.subr.bf16.mxu0 0
    %669 = vmatpush1.bf16.msra.mxu0 0
    %670 = vmatprep.mubr.bf16.mxu0 0
    %671 = vmatmul.mubr.bf16.gmra.mrb[0].mxu0 %v629
    %v672 = vpop.f32.mrb[0].mxu0
    %v673 = vadd.f32 0.0, %v672
    %v674 = vpop.f32.mrb[0].mxu0
    %v675 = vpop.f32.mrb[0].mxu0
    %v676 = vpop.f32.mrb[0].mxu0
    %677 = vdwg.mxu0
    %s678 = sld [smem:[#allocation2 + $0x280]]
    %v679 = vstv %s678
    %v680 = vadd.f32 %v673, %v679
    %v681 = vtanh.pop %v680
    %s682 = sld [smem:[#allocation2 + $0x281]]
    %v683 = vstv %s682
    %v684 = vadd.f32 %v673, %v683
    %v685 = vsub.f32 %v100, %v684
    %v686 = vsub.f32 0.0, %v681
    %v687 = vmul.f32 %v686, 1.442695
    %v688 = vpow.pop %v687
    %v690 = vrot.slane %v688, 7
    %v692 = vmul.f32 %v685, %v690
    %s693 = scalar_lea.vmem %s4, 512
    %v694 = vld [vmem:[%s693] sm:$0xff]
    %v695 = vld [vmem:[%s693 + $0x8] sm:$0xff]
    %v696 = vld [vmem:[%s693 + $0x10] sm:$0xff]
    %v697 = vld [vmem:[%s693 + $0x18] sm:$0xff]
    %v698 = vld [vmem:[%s693 + $0x20] sm:$0xff]
    %v699 = vld [vmem:[%s693 + $0x28] sm:$0xff]
    %v700 = vld [vmem:[%s693 + $0x30] sm:$0xff]
    %v701 = vld [vmem:[%s693 + $0x38] sm:$0xff]
    %v702 = vld [vmem:[%s693 + $0x40] sm:$0xff]
    %v703 = vld [vmem:[%s693 + $0x48] sm:$0xff]
    %v704 = vld [vmem:[%s693 + $0x50] sm:$0xff]
    %v705 = vld [vmem:[%s693 + $0x58] sm:$0xff]
    %v706 = vld [vmem:[%s693 + $0x60] sm:$0xff]
    %v707 = vld [vmem:[%s693 + $0x68] sm:$0xff]
    %v708 = vld [vmem:[%s693 + $0x70] sm:$0xff]
    %v709 = vld [vmem:[%s693 + $0x78] sm:$0xff]
    %711 = vset.pattern.permute.xlu0 0
    %712 = vperm.xlu0 %711, %v694
    %v713 = vpop.permute.xlu0 %712
    %716 = vset.pattern.permute.xlu0 0
    %717 = vperm.xlu0 %716, %v695
    %v718 = vpop.permute.xlu0 %717
    %721 = vset.pattern.permute.xlu0 0
    %722 = vperm.xlu0 %721, %v696
    %v723 = vpop.permute.xlu0 %722
    %726 = vset.pattern.permute.xlu0 0
    %727 = vperm.xlu0 %726, %v697
    %v728 = vpop.permute.xlu0 %727
    %731 = vset.pattern.permute.xlu0 0
    %732 = vperm.xlu0 %731, %v698
    %v733 = vpop.permute.xlu0 %732
    %736 = vset.pattern.permute.xlu0 0
    %737 = vperm.xlu0 %736, %v699
    %v738 = vpop.permute.xlu0 %737
    %741 = vset.pattern.permute.xlu0 0
    %742 = vperm.xlu0 %741, %v700
    %v743 = vpop.permute.xlu0 %742
    %746 = vset.pattern.permute.xlu0 0
    %747 = vperm.xlu0 %746, %v701
    %v748 = vpop.permute.xlu0 %747
    %751 = vset.pattern.permute.xlu0 0
    %752 = vperm.xlu0 %751, %v702
    %v753 = vpop.permute.xlu0 %752
    %756 = vset.pattern.permute.xlu0 0
    %757 = vperm.xlu0 %756, %v703
    %v758 = vpop.permute.xlu0 %757
    %761 = vset.pattern.permute.xlu0 0
    %762 = vperm.xlu0 %761, %v704
    %v763 = vpop.permute.xlu0 %762
    %766 = vset.pattern.permute.xlu0 0
    %767 = vperm.xlu0 %766, %v705
    %v768 = vpop.permute.xlu0 %767
    %771 = vset.pattern.permute.xlu0 0
    %772 = vperm.xlu0 %771, %v706
    %v773 = vpop.permute.xlu0 %772
    %776 = vset.pattern.permute.xlu0 0
    %777 = vperm.xlu0 %776, %v707
    %v778 = vpop.permute.xlu0 %777
    %781 = vset.pattern.permute.xlu0 0
    %782 = vperm.xlu0 %781, %v708
    %v783 = vpop.permute.xlu0 %782
    %786 = vset.pattern.permute.xlu0 0
    %787 = vperm.xlu0 %786, %v709
    %v788 = vpop.permute.xlu0 %787
    %v790 = vlaneseq
    %v791 = vshrl.u32 %v790, 7
    %v792 = vsub.s32 1, %v791
    %v793 = vrot.slane %v692, %v792
    %v794 = vmul.f32 %v713, %v793
    %v795 = vmul.f32 %v718, %v793
    %v796 = vmul.f32 %v723, %v793
    %v797 = vmul.f32 %v728, %v793
    %v798 = vmul.f32 %v733, %v793
    %v799 = vmul.f32 %v738, %v793
    %v800 = vmul.f32 %v743, %v793
    %v801 = vmul.f32 %v748, %v793
    %v802 = vmul.f32 %v753, %v793
    %v803 = vmul.f32 %v758, %v793
    %v804 = vmul.f32 %v763, %v793
    %v805 = vmul.f32 %v768, %v793
    %v806 = vmul.f32 %v773, %v793
    %v807 = vmul.f32 %v778, %v793
    %v808 = vmul.f32 %v783, %v793
    %v809 = vmul.f32 %v788, %v793
    %810 = vset.pattern.permute.xlu0 1
    %811 = vperm.xlu0 %810, %v694
    %v812 = vpop.permute.xlu0 %811
    %814 = vset.pattern.permute.xlu0 1
    %815 = vperm.xlu0 %814, %v695
    %v816 = vpop.permute.xlu0 %815
    %818 = vset.pattern.permute.xlu0 1
    %819 = vperm.xlu0 %818, %v696
    %v820 = vpop.permute.xlu0 %819
    %822 = vset.pattern.permute.xlu0 1
    %823 = vperm.xlu0 %822, %v697
    %v824 = vpop.permute.xlu0 %823
    %826 = vset.pattern.permute.xlu0 1
    %827 = vperm.xlu0 %826, %v698
    %v828 = vpop.permute.xlu0 %827
    %830 = vset.pattern.permute.xlu0 1
    %831 = vperm.xlu0 %830, %v699
    %v832 = vpop.permute.xlu0 %831
    %834 = vset.pattern.permute.xlu0 1
    %835 = vperm.xlu0 %834, %v700
    %v836 = vpop.permute.xlu0 %835
    %838 = vset.pattern.permute.xlu0 1
    %839 = vperm.xlu0 %838, %v701
    %v840 = vpop.permute.xlu0 %839
    %842 = vset.pattern.permute.xlu0 1
    %843 = vperm.xlu0 %842, %v702
    %v844 = vpop.permute.xlu0 %843
    %846 = vset.pattern.permute.xlu0 1
    %847 = vperm.xlu0 %846, %v703
    %v848 = vpop.permute.xlu0 %847
    %850 = vset.pattern.permute.xlu0 1
    %851 = vperm.xlu0 %850, %v704
    %v852 = vpop.permute.xlu0 %851
    %854 = vset.pattern.permute.xlu0 1
    %855 = vperm.xlu0 %854, %v705
    %v856 = vpop.permute.xlu0 %855
    %858 = vset.pattern.permute.xlu0 1
    %859 = vperm.xlu0 %858, %v706
    %v860 = vpop.permute.xlu0 %859
    %862 = vset.pattern.permute.xlu0 1
    %863 = vperm.xlu0 %862, %v707
    %v864 = vpop.permute.xlu0 %863
    %866 = vset.pattern.permute.xlu0 1
    %867 = vperm.xlu0 %866, %v708
    %v868 = vpop.permute.xlu0 %867
    %870 = vset.pattern.permute.xlu0 1
    %871 = vperm.xlu0 %870, %v709
    %v872 = vpop.permute.xlu0 %871
    %v874 = vadd.f32 %v794, %v812
    %v875 = vadd.f32 %v795, %v816
    %v876 = vadd.f32 %v796, %v820
    %v877 = vadd.f32 %v797, %v824
    %v878 = vadd.f32 %v798, %v828
    %v879 = vadd.f32 %v799, %v832
    %v880 = vadd.f32 %v800, %v836
    %v881 = vadd.f32 %v801, %v840
    %v882 = vadd.f32 %v802, %v844
    %v883 = vadd.f32 %v803, %v848
    %v884 = vadd.f32 %v804, %v852
    %v885 = vadd.f32 %v805, %v856
    %v886 = vadd.f32 %v806, %v860
    %v887 = vadd.f32 %v807, %v864
    %v888 = vadd.f32 %v808, %v868
    %v889 = vadd.f32 %v809, %v872
    %vm890 = vcmp.ge.f32.partialorder %v874, 0.0
    %vm891 = vcmp.ge.f32.partialorder %v875, 0.0
    %vm892 = vcmp.ge.f32.partialorder %v876, 0.0
    %vm893 = vcmp.ge.f32.partialorder %v877, 0.0
    %vm894 = vcmp.ge.f32.partialorder %v878, 0.0
    %vm895 = vcmp.ge.f32.partialorder %v879, 0.0
    %vm896 = vcmp.ge.f32.partialorder %v880, 0.0
    %vm897 = vcmp.ge.f32.partialorder %v881, 0.0
    %vm898 = vcmp.ge.f32.partialorder %v882, 0.0
    %vm899 = vcmp.ge.f32.partialorder %v883, 0.0
    %vm900 = vcmp.ge.f32.partialorder %v884, 0.0
    %vm901 = vcmp.ge.f32.partialorder %v885, 0.0
    %vm902 = vcmp.ge.f32.partialorder %v886, 0.0
    %vm903 = vcmp.ge.f32.partialorder %v887, 0.0
    %vm904 = vcmp.ge.f32.partialorder %v888, 0.0
    %vm905 = vcmp.ge.f32.partialorder %v889, 0.0
    %v906 = vmul.f32 %v874, 0.01
    %v907 = vmul.f32 %v875, 0.01
    %v908 = vmul.f32 %v876, 0.01
    %v909 = vmul.f32 %v877, 0.01
    %v910 = vmul.f32 %v878, 0.01
    %v911 = vmul.f32 %v879, 0.01
    %v912 = vmul.f32 %v880, 0.01
    %v913 = vmul.f32 %v881, 0.01
    %v914 = vmul.f32 %v882, 0.01
    %v915 = vmul.f32 %v883, 0.01
    %v916 = vmul.f32 %v884, 0.01
    %v917 = vmul.f32 %v885, 0.01
    %v918 = vmul.f32 %v886, 0.01
    %v919 = vmul.f32 %v887, 0.01
    %v920 = vmul.f32 %v888, 0.01
    %v921 = vmul.f32 %v889, 0.01
    %v922 = vsel %vm890, %v874, %v906
    %v923 = vsel %vm891, %v875, %v907
    %v924 = vsel %vm892, %v876, %v908
    %v925 = vsel %vm893, %v877, %v909
    %v926 = vsel %vm894, %v878, %v910
    %v927 = vsel %vm895, %v879, %v911
    %v928 = vsel %vm896, %v880, %v912
    %v929 = vsel %vm897, %v881, %v913
    %v930 = vsel %vm898, %v882, %v914
    %v931 = vsel %vm899, %v883, %v915
    %v932 = vsel %vm900, %v884, %v916
    %v933 = vsel %vm901, %v885, %v917
    %v934 = vsel %vm902, %v886, %v918
    %v935 = vsel %vm903, %v887, %v919
    %v936 = vsel %vm904, %v888, %v920
    %v937 = vsel %vm905, %v889, %v921
    %s938 = scalar_lea.vmem %s2, 256
    %v939 = vld [vmem:[%s938] sm:$0xf]
    %v940 = vld [vmem:[%s938 + $0x4] sm:$0xf]
    %v941 = vld [vmem:[%s938 + $0x8] sm:$0xf]
    %v942 = vld [vmem:[%s938 + $0xc] sm:$0xf]
    %v943 = vld [vmem:[%s938 + $0x10] sm:$0xf]
    %v944 = vld [vmem:[%s938 + $0x14] sm:$0xf]
    %v945 = vld [vmem:[%s938 + $0x18] sm:$0xf]
    %v946 = vld [vmem:[%s938 + $0x1c] sm:$0xf]
    %v947 = vld [vmem:[%s938 + $0x20] sm:$0xf]
    %v948 = vld [vmem:[%s938 + $0x24] sm:$0xf]
    %v949 = vld [vmem:[%s938 + $0x28] sm:$0xf]
    %v950 = vld [vmem:[%s938 + $0x2c] sm:$0xf]
    %v951 = vld [vmem:[%s938 + $0x30] sm:$0xf]
    %v952 = vld [vmem:[%s938 + $0x34] sm:$0xf]
    %v953 = vld [vmem:[%s938 + $0x38] sm:$0xf]
    %v954 = vld [vmem:[%s938 + $0x3c] sm:$0xf]
    %v955 = vpack.c.bf16 %v923, %v922
    %v956 = vpack.c.bf16 %v925, %v924
    %v957 = vpack.c.bf16 %v927, %v926
    %v958 = vpack.c.bf16 %v929, %v928
    %v959 = vpack.c.bf16 %v931, %v930
    %v960 = vpack.c.bf16 %v933, %v932
    %v961 = vpack.c.bf16 %v935, %v934
    %v962 = vpack.c.bf16 %v937, %v936
    %963 = vset.pattern.permute.xlu0 2
    %964 = vperm.xlu0 %963, %v694
    %v965 = vpop.permute.xlu0 %964
    %967 = vset.pattern.permute.xlu0 2
    %968 = vperm.xlu0 %967, %v695
    %v969 = vpop.permute.xlu0 %968
    %971 = vset.pattern.permute.xlu0 2
    %972 = vperm.xlu0 %971, %v696
    %v973 = vpop.permute.xlu0 %972
    %975 = vset.pattern.permute.xlu0 2
    %976 = vperm.xlu0 %975, %v697
    %v977 = vpop.permute.xlu0 %976
    %979 = vset.pattern.permute.xlu0 2
    %980 = vperm.xlu0 %979, %v698
    %v981 = vpop.permute.xlu0 %980
    %983 = vset.pattern.permute.xlu0 2
    %984 = vperm.xlu0 %983, %v699
    %v985 = vpop.permute.xlu0 %984
    %987 = vset.pattern.permute.xlu0 2
    %988 = vperm.xlu0 %987, %v700
    %v989 = vpop.permute.xlu0 %988
    %991 = vset.pattern.permute.xlu0 2
    %992 = vperm.xlu0 %991, %v701
    %v993 = vpop.permute.xlu0 %992
    %995 = vset.pattern.permute.xlu0 2
    %996 = vperm.xlu0 %995, %v702
    %v997 = vpop.permute.xlu0 %996
    %999 = vset.pattern.permute.xlu0 2
    %1000 = vperm.xlu0 %999, %v703
    %v1001 = vpop.permute.xlu0 %1000
    %1003 = vset.pattern.permute.xlu0 2
    %1004 = vperm.xlu0 %1003, %v704
    %v1005 = vpop.permute.xlu0 %1004
    %1007 = vset.pattern.permute.xlu0 2
    %1008 = vperm.xlu0 %1007, %v705
    %v1009 = vpop.permute.xlu0 %1008
    %1011 = vset.pattern.permute.xlu0 2
    %1012 = vperm.xlu0 %1011, %v706
    %v1013 = vpop.permute.xlu0 %1012
    %1015 = vset.pattern.permute.xlu0 2
    %1016 = vperm.xlu0 %1015, %v707
    %v1017 = vpop.permute.xlu0 %1016
    %1019 = vset.pattern.permute.xlu0 2
    %1020 = vperm.xlu0 %1019, %v708
    %v1021 = vpop.permute.xlu0 %1020
    %1023 = vset.pattern.permute.xlu0 2
    %1024 = vperm.xlu0 %1023, %v709
    %v1025 = vpop.permute.xlu0 %1024
    %v1043 = vunpack.c.l.b16 %v939
    %v1044 = vunpack.c.l.b16 %v940
    %v1045 = vunpack.c.l.b16 %v941
    %v1046 = vunpack.c.l.b16 %v942
    %v1047 = vunpack.c.l.b16 %v943
    %v1048 = vunpack.c.l.b16 %v944
    %v1049 = vunpack.c.l.b16 %v945
    %v1050 = vunpack.c.l.b16 %v946
    %v1051 = vunpack.c.l.b16 %v947
    %v1052 = vunpack.c.l.b16 %v948
    %v1053 = vunpack.c.l.b16 %v949
    %v1054 = vunpack.c.l.b16 %v950
    %v1055 = vunpack.c.l.b16 %v951
    %v1056 = vunpack.c.l.b16 %v952
    %v1057 = vunpack.c.l.b16 %v953
    %v1058 = vunpack.c.l.b16 %v954
    %v1059 = vpack.c.b16 %v1044, %v1043
    %v1060 = vpack.c.b16 %v1046, %v1045
    %v1061 = vpack.c.b16 %v1048, %v1047
    %v1062 = vpack.c.b16 %v1050, %v1049
    %v1063 = vpack.c.b16 %v1052, %v1051
    %v1064 = vpack.c.b16 %v1054, %v1053
    %v1065 = vpack.c.b16 %v1056, %v1055
    %v1066 = vpack.c.b16 %v1058, %v1057
    %1075 = vmatprep.subr.bf16.mxu0 0
    %1076 = vmatpush1.bf16.msra.mxu0 %v955
    %1077 = vmatprep.subr.bf16.mxu0 0
    %1078 = vmatpush1.bf16.msra.mxu0 %v956
    %1079 = vmatprep.subr.bf16.mxu0 0
    %1080 = vmatpush1.bf16.msra.mxu0 %v957
    %1081 = vmatprep.subr.bf16.mxu0 0
    %1082 = vmatpush1.bf16.msra.mxu0 %v958
    %1083 = vmatprep.subr.bf16.mxu0 0
    %1084 = vmatpush1.bf16.msra.mxu0 %v959
    %1085 = vmatprep.subr.bf16.mxu0 0
    %1086 = vmatpush1.bf16.msra.mxu0 %v960
    %1087 = vmatprep.subr.bf16.mxu0 0
    %1088 = vmatpush1.bf16.msra.mxu0 %v961
    %1089 = vmatprep.subr.bf16.mxu0 0
    %1090 = vmatpush1.bf16.msra.mxu0 %v962
    %1091 = vmatprep.subr.bf16.mxu0 0
    %1092 = vmatpush1.bf16.msra.mxu0 0
    %1093 = vmatprep.subr.bf16.mxu0 0
    %1094 = vmatpush1.bf16.msra.mxu0 0
    %1095 = vmatprep.subr.bf16.mxu0 0
    %1096 = vmatpush1.bf16.msra.mxu0 0
    %1097 = vmatprep.subr.bf16.mxu0 0
    %1098 = vmatpush1.bf16.msra.mxu0 0
    %1099 = vmatprep.subr.bf16.mxu0 0
    %1100 = vmatpush1.bf16.msra.mxu0 0
    %1101 = vmatprep.subr.bf16.mxu0 0
    %1102 = vmatpush1.bf16.msra.mxu0 0
    %1103 = vmatprep.subr.bf16.mxu0 0
    %1104 = vmatpush1.bf16.msra.mxu0 0
    %1105 = vmatprep.subr.bf16.mxu0 0
    %1106 = vmatpush1.bf16.msra.mxu0 0
    %1107 = vmatprep.mubr.bf16.mxu0 0
    %1108 = vmatmul.mubr.bf16.gmra.mrb[0].mxu0 %v1059
    %v1109 = vpop.f32.mrb[0].mxu0
    %v1110 = vadd.f32 %v965, %v1109
    %v1111 = vpop.f32.mrb[0].mxu0
    %v1112 = vpop.f32.mrb[0].mxu0
    %v1113 = vadd.f32 %v969, %v1112
    %v1114 = vpop.f32.mrb[0].mxu0
    %1115 = vmatprep.mubr.bf16.mxu0 0
    %1116 = vmatmul.mubr.bf16.gmra.mrb[0].mxu0 %v1060
    %v1117 = vpop.f32.mrb[0].mxu0
    %v1118 = vadd.f32 %v973, %v1117
    %v1119 = vpop.f32.mrb[0].mxu0
    %v1120 = vpop.f32.mrb[0].mxu0
    %v1121 = vadd.f32 %v977, %v1120
    %v1122 = vpop.f32.mrb[0].mxu0
    %1123 = vmatprep.mubr.bf16.mxu0 0
    %1124 = vmatmul.mubr.bf16.gmra.mrb[0].mxu0 %v1061
    %v1125 = vpop.f32.mrb[0].mxu0
    %v1126 = vadd.f32 %v981, %v1125
    %v1127 = vpop.f32.mrb[0].mxu0
    %v1128 = vpop.f32.mrb[0].mxu0
    %v1129 = vadd.f32 %v985, %v1128
    %v1130 = vpop.f32.mrb[0].mxu0
    %1131 = vmatprep.mubr.bf16.mxu0 0
    %1132 = vmatmul.mubr.bf16.gmra.mrb[0].mxu0 %v1062
    %v1133 = vpop.f32.mrb[0].mxu0
    %v1134 = vadd.f32 %v989, %v1133
    %v1135 = vpop.f32.mrb[0].mxu0
    %v1136 = vpop.f32.mrb[0].mxu0
    %v1137 = vadd.f32 %v993, %v1136
    %v1138 = vpop.f32.mrb[0].mxu0
    %1139 = vmatprep.mubr.bf16.mxu0 0
    %1140 = vmatmul.mubr.bf16.gmra.mrb[0].mxu0 %v1063
    %v1141 = vpop.f32.mrb[0].mxu0
    %v1142 = vadd.f32 %v997, %v1141
    %v1143 = vpop.f32.mrb[0].mxu0
    %v1144 = vpop.f32.mrb[0].mxu0
    %v1145 = vadd.f32 %v1001, %v1144
    %v1146 = vpop.f32.mrb[0].mxu0
    %1147 = vmatprep.mubr.bf16.mxu0 0
    %1148 = vmatmul.mubr.bf16.gmra.mrb[0].mxu0 %v1064
    %v1149 = vpop.f32.mrb[0].mxu0
    %v1150 = vadd.f32 %v1005, %v1149
    %v1151 = vpop.f32.mrb[0].mxu0
    %v1152 = vpop.f32.mrb[0].mxu0
    %v1153 = vadd.f32 %v1009, %v1152
    %v1154 = vpop.f32.mrb[0].mxu0
    %1155 = vmatprep.mubr.bf16.mxu0 0
    %1156 = vmatmul.mubr.bf16.gmra.mrb[0].mxu0 %v1065
    %v1157 = vpop.f32.mrb[0].mxu0
    %v1158 = vadd.f32 %v1013, %v1157
    %v1159 = vpop.f32.mrb[0].mxu0
    %v1160 = vpop.f32.mrb[0].mxu0
    %v1161 = vadd.f32 %v1017, %v1160
    %v1162 = vpop.f32.mrb[0].mxu0
    %1163 = vmatprep.mubr.bf16.mxu0 0
    %1164 = vmatmul.mubr.bf16.gmra.mrb[0].mxu0 %v1066
    %v1165 = vpop.f32.mrb[0].mxu0
    %v1166 = vadd.f32 %v1021, %v1165
    %v1167 = vpop.f32.mrb[0].mxu0
    %v1168 = vpop.f32.mrb[0].mxu0
    %v1169 = vadd.f32 %v1025, %v1168
    %v1170 = vpop.f32.mrb[0].mxu0
    %1171 = vdwg.mxu0
    %vm1172 = vcmp.ge.f32.partialorder %v1110, 0.0
    %vm1173 = vcmp.ge.f32.partialorder %v1113, 0.0
    %vm1174 = vcmp.ge.f32.partialorder %v1118, 0.0
    %vm1175 = vcmp.ge.f32.partialorder %v1121, 0.0
    %vm1176 = vcmp.ge.f32.partialorder %v1126, 0.0
    %vm1177 = vcmp.ge.f32.partialorder %v1129, 0.0
    %vm1178 = vcmp.ge.f32.partialorder %v1134, 0.0
    %vm1179 = vcmp.ge.f32.partialorder %v1137, 0.0
    %vm1180 = vcmp.ge.f32.partialorder %v1142, 0.0
    %vm1181 = vcmp.ge.f32.partialorder %v1145, 0.0
    %vm1182 = vcmp.ge.f32.partialorder %v1150, 0.0
    %vm1183 = vcmp.ge.f32.partialorder %v1153, 0.0
    %vm1184 = vcmp.ge.f32.partialorder %v1158, 0.0
    %vm1185 = vcmp.ge.f32.partialorder %v1161, 0.0
    %vm1186 = vcmp.ge.f32.partialorder %v1166, 0.0
    %vm1187 = vcmp.ge.f32.partialorder %v1169, 0.0
    %v1188 = vmul.f32 %v1110, 0.01
    %v1189 = vmul.f32 %v1113, 0.01
    %v1190 = vmul.f32 %v1118, 0.01
    %v1191 = vmul.f32 %v1121, 0.01
    %v1192 = vmul.f32 %v1126, 0.01
    %v1193 = vmul.f32 %v1129, 0.01
    %v1194 = vmul.f32 %v1134, 0.01
    %v1195 = vmul.f32 %v1137, 0.01
    %v1196 = vmul.f32 %v1142, 0.01
    %v1197 = vmul.f32 %v1145, 0.01
    %v1198 = vmul.f32 %v1150, 0.01
    %v1199 = vmul.f32 %v1153, 0.01
    %v1200 = vmul.f32 %v1158, 0.01
    %v1201 = vmul.f32 %v1161, 0.01
    %v1202 = vmul.f32 %v1166, 0.01
    %v1203 = vmul.f32 %v1169, 0.01
    %v1204 = vsel %vm1172, %v1110, %v1188
    %v1205 = vsel %vm1173, %v1113, %v1189
    %v1206 = vsel %vm1174, %v1118, %v1190
    %v1207 = vsel %vm1175, %v1121, %v1191
    %v1208 = vsel %vm1176, %v1126, %v1192
    %v1209 = vsel %vm1177, %v1129, %v1193
    %v1210 = vsel %vm1178, %v1134, %v1194
    %v1211 = vsel %vm1179, %v1137, %v1195
    %v1212 = vsel %vm1180, %v1142, %v1196
    %v1213 = vsel %vm1181, %v1145, %v1197
    %v1214 = vsel %vm1182, %v1150, %v1198
    %v1215 = vsel %vm1183, %v1153, %v1199
    %v1216 = vsel %vm1184, %v1158, %v1200
    %v1217 = vsel %vm1185, %v1161, %v1201
    %v1218 = vsel %vm1186, %v1166, %v1202
    %v1219 = vsel %vm1187, %v1169, %v1203
    %s1220 = scalar_lea.vmem %s3, 16
    %v1221 = vld [vmem:[%s1220] sm:$0xf]
    %v1222 = vpack.c.bf16 %v1205, %v1204
    %v1223 = vpack.c.bf16 %v1207, %v1206
    %v1224 = vpack.c.bf16 %v1209, %v1208
    %v1225 = vpack.c.bf16 %v1211, %v1210
    %v1226 = vpack.c.bf16 %v1213, %v1212
    %v1227 = vpack.c.bf16 %v1215, %v1214
    %v1228 = vpack.c.bf16 %v1217, %v1216
    %v1229 = vpack.c.bf16 %v1219, %v1218
    %1230 = vmatprep.subr.bf16.mxu0 0
    %1231 = vmatpush1.bf16.msra.mxu0 %v1222
    %1232 = vmatprep.subr.bf16.mxu0 0
    %1233 = vmatpush1.bf16.msra.mxu0 %v1223
    %1234 = vmatprep.subr.bf16.mxu0 0
    %1235 = vmatpush1.bf16.msra.mxu0 %v1224
    %1236 = vmatprep.subr.bf16.mxu0 0
    %1237 = vmatpush1.bf16.msra.mxu0 %v1225
    %1238 = vmatprep.subr.bf16.mxu0 0
    %1239 = vmatpush1.bf16.msra.mxu0 %v1226
    %1240 = vmatprep.subr.bf16.mxu0 0
    %1241 = vmatpush1.bf16.msra.mxu0 %v1227
    %1242 = vmatprep.subr.bf16.mxu0 0
    %1243 = vmatpush1.bf16.msra.mxu0 %v1228
    %1244 = vmatprep.subr.bf16.mxu0 0
    %1245 = vmatpush1.bf16.msra.mxu0 %v1229
    %1246 = vmatprep.subr.bf16.mxu0 0
    %1247 = vmatpush1.bf16.msra.mxu0 0
    %1248 = vmatprep.subr.bf16.mxu0 0
    %1249 = vmatpush1.bf16.msra.mxu0 0
    %1250 = vmatprep.subr.bf16.mxu0 0
    %1251 = vmatpush1.bf16.msra.mxu0 0
    %1252 = vmatprep.subr.bf16.mxu0 0
    %1253 = vmatpush1.bf16.msra.mxu0 0
    %1254 = vmatprep.subr.bf16.mxu0 0
    %1255 = vmatpush1.bf16.msra.mxu0 0
    %1256 = vmatprep.subr.bf16.mxu0 0
    %1257 = vmatpush1.bf16.msra.mxu0 0
    %1258 = vmatprep.subr.bf16.mxu0 0
    %1259 = vmatpush1.bf16.msra.mxu0 0
    %1260 = vmatprep.subr.bf16.mxu0 0
    %1261 = vmatpush1.bf16.msra.mxu0 0
    %1262 = vmatprep.mubr.bf16.mxu0 0
    %1263 = vmatmul.mubr.bf16.gmra.mrb[0].mxu0 %v1221
    %v1264 = vpop.f32.mrb[0].mxu0
    %v1265 = vadd.f32 0.0, %v1264
    %v1266 = vpop.f32.mrb[0].mxu0
    %v1267 = vpop.f32.mrb[0].mxu0
    %v1268 = vpop.f32.mrb[0].mxu0
    %1269 = vdwg.mxu0
    %s1270 = sld [smem:[#allocation2 + $0x200]]
    %v1271 = vstv %s1270
    %v1272 = vadd.f32 %v1265, %v1271
    %v1273 = vtanh.pop %v1272
    %s1274 = sld [smem:[#allocation2 + $0x201]]
    %v1275 = vstv %s1274
    %v1276 = vadd.f32 %v1265, %v1275
    %v1278 = vrot.slane %v1276, 1
    %v1280 = vsub.f32 %v100, %v1278
    %v1281 = vsub.f32 0.0, %v1273
    %v1282 = vmul.f32 %v1281, 1.442695
    %v1283 = vpow.pop %v1282
    %v1284 = vmul.f32 %v1280, %v1283
    %v1285 = vsub.f32 %v686, %v1273
    %s1286 = scalar_lea.vmem %s4, 384
    %v1287 = vld [vmem:[%s1286] sm:$0xff]
    %v1288 = vld [vmem:[%s1286 + $0x8] sm:$0xff]
    %v1289 = vld [vmem:[%s1286 + $0x10] sm:$0xff]
    %v1290 = vld [vmem:[%s1286 + $0x18] sm:$0xff]
    %v1291 = vld [vmem:[%s1286 + $0x20] sm:$0xff]
    %v1292 = vld [vmem:[%s1286 + $0x28] sm:$0xff]
    %v1293 = vld [vmem:[%s1286 + $0x30] sm:$0xff]
    %v1294 = vld [vmem:[%s1286 + $0x38] sm:$0xff]
    %v1295 = vld [vmem:[%s1286 + $0x40] sm:$0xff]
    %v1296 = vld [vmem:[%s1286 + $0x48] sm:$0xff]
    %v1297 = vld [vmem:[%s1286 + $0x50] sm:$0xff]
    %v1298 = vld [vmem:[%s1286 + $0x58] sm:$0xff]
    %v1299 = vld [vmem:[%s1286 + $0x60] sm:$0xff]
    %v1300 = vld [vmem:[%s1286 + $0x68] sm:$0xff]
    %v1301 = vld [vmem:[%s1286 + $0x70] sm:$0xff]
    %v1302 = vld [vmem:[%s1286 + $0x78] sm:$0xff]
    %1304 = vset.pattern.permute.xlu0 0
    %1305 = vperm.xlu0 %1304, %v1287
    %v1306 = vpop.permute.xlu0 %1305
    %1309 = vset.pattern.permute.xlu0 0
    %1310 = vperm.xlu0 %1309, %v1288
    %v1311 = vpop.permute.xlu0 %1310
    %1314 = vset.pattern.permute.xlu0 0
    %1315 = vperm.xlu0 %1314, %v1289
    %v1316 = vpop.permute.xlu0 %1315
    %1319 = vset.pattern.permute.xlu0 0
    %1320 = vperm.xlu0 %1319, %v1290
    %v1321 = vpop.permute.xlu0 %1320
    %1324 = vset.pattern.permute.xlu0 0
    %1325 = vperm.xlu0 %1324, %v1291
    %v1326 = vpop.permute.xlu0 %1325
    %1329 = vset.pattern.permute.xlu0 0
    %1330 = vperm.xlu0 %1329, %v1292
    %v1331 = vpop.permute.xlu0 %1330
    %1334 = vset.pattern.permute.xlu0 0
    %1335 = vperm.xlu0 %1334, %v1293
    %v1336 = vpop.permute.xlu0 %1335
    %1339 = vset.pattern.permute.xlu0 0
    %1340 = vperm.xlu0 %1339, %v1294
    %v1341 = vpop.permute.xlu0 %1340
    %1344 = vset.pattern.permute.xlu0 0
    %1345 = vperm.xlu0 %1344, %v1295
    %v1346 = vpop.permute.xlu0 %1345
    %1349 = vset.pattern.permute.xlu0 0
    %1350 = vperm.xlu0 %1349, %v1296
    %v1351 = vpop.permute.xlu0 %1350
    %1354 = vset.pattern.permute.xlu0 0
    %1355 = vperm.xlu0 %1354, %v1297
    %v1356 = vpop.permute.xlu0 %1355
    %1359 = vset.pattern.permute.xlu0 0
    %1360 = vperm.xlu0 %1359, %v1298
    %v1361 = vpop.permute.xlu0 %1360
    %1364 = vset.pattern.permute.xlu0 0
    %1365 = vperm.xlu0 %1364, %v1299
    %v1366 = vpop.permute.xlu0 %1365
    %1369 = vset.pattern.permute.xlu0 0
    %1370 = vperm.xlu0 %1369, %v1300
    %v1371 = vpop.permute.xlu0 %1370
    %1374 = vset.pattern.permute.xlu0 0
    %1375 = vperm.xlu0 %1374, %v1301
    %v1376 = vpop.permute.xlu0 %1375
    %1379 = vset.pattern.permute.xlu0 0
    %1380 = vperm.xlu0 %1379, %v1302
    %v1381 = vpop.permute.xlu0 %1380
    %v1383 = vlaneseq
    %v1384 = vshrl.u32 %v1383, 7
    %v1385 = vsub.s32 0, %v1384
    %v1386 = vrot.slane %v1284, %v1385
    %v1387 = vmul.f32 %v1306, %v1386
    %v1388 = vmul.f32 %v1311, %v1386
    %v1389 = vmul.f32 %v1316, %v1386
    %v1390 = vmul.f32 %v1321, %v1386
    %v1391 = vmul.f32 %v1326, %v1386
    %v1392 = vmul.f32 %v1331, %v1386
    %v1393 = vmul.f32 %v1336, %v1386
    %v1394 = vmul.f32 %v1341, %v1386
    %v1395 = vmul.f32 %v1346, %v1386
    %v1396 = vmul.f32 %v1351, %v1386
    %v1397 = vmul.f32 %v1356, %v1386
    %v1398 = vmul.f32 %v1361, %v1386
    %v1399 = vmul.f32 %v1366, %v1386
    %v1400 = vmul.f32 %v1371, %v1386
    %v1401 = vmul.f32 %v1376, %v1386
    %v1402 = vmul.f32 %v1381, %v1386
    %1403 = vset.pattern.permute.xlu0 1
    %1404 = vperm.xlu0 %1403, %v1287
    %v1405 = vpop.permute.xlu0 %1404
    %1407 = vset.pattern.permute.xlu0 1
    %1408 = vperm.xlu0 %1407, %v1288
    %v1409 = vpop.permute.xlu0 %1408
    %1411 = vset.pattern.permute.xlu0 1
    %1412 = vperm.xlu0 %1411, %v1289
    %v1413 = vpop.permute.xlu0 %1412
    %1415 = vset.pattern.permute.xlu0 1
    %1416 = vperm.xlu0 %1415, %v1290
    %v1417 = vpop.permute.xlu0 %1416
    %1419 = vset.pattern.permute.xlu0 1
    %1420 = vperm.xlu0 %1419, %v1291
    %v1421 = vpop.permute.xlu0 %1420
    %1423 = vset.pattern.permute.xlu0 1
    %1424 = vperm.xlu0 %1423, %v1292
    %v1425 = vpop.permute.xlu0 %1424
    %1427 = vset.pattern.permute.xlu0 1
    %1428 = vperm.xlu0 %1427, %v1293
    %v1429 = vpop.permute.xlu0 %1428
    %1431 = vset.pattern.permute.xlu0 1
    %1432 = vperm.xlu0 %1431, %v1294
    %v1433 = vpop.permute.xlu0 %1432
    %1435 = vset.pattern.permute.xlu0 1
    %1436 = vperm.xlu0 %1435, %v1295
    %v1437 = vpop.permute.xlu0 %1436
    %1439 = vset.pattern.permute.xlu0 1
    %1440 = vperm.xlu0 %1439, %v1296
    %v1441 = vpop.permute.xlu0 %1440
    %1443 = vset.pattern.permute.xlu0 1
    %1444 = vperm.xlu0 %1443, %v1297
    %v1445 = vpop.permute.xlu0 %1444
    %1447 = vset.pattern.permute.xlu0 1
    %1448 = vperm.xlu0 %1447, %v1298
    %v1449 = vpop.permute.xlu0 %1448
    %1451 = vset.pattern.permute.xlu0 1
    %1452 = vperm.xlu0 %1451, %v1299
    %v1453 = vpop.permute.xlu0 %1452
    %1455 = vset.pattern.permute.xlu0 1
    %1456 = vperm.xlu0 %1455, %v1300
    %v1457 = vpop.permute.xlu0 %1456
    %1459 = vset.pattern.permute.xlu0 1
    %1460 = vperm.xlu0 %1459, %v1301
    %v1461 = vpop.permute.xlu0 %1460
    %1463 = vset.pattern.permute.xlu0 1
    %1464 = vperm.xlu0 %1463, %v1302
    %v1465 = vpop.permute.xlu0 %1464
    %v1467 = vadd.f32 %v1387, %v1405
    %v1468 = vadd.f32 %v1388, %v1409
    %v1469 = vadd.f32 %v1389, %v1413
    %v1470 = vadd.f32 %v1390, %v1417
    %v1471 = vadd.f32 %v1391, %v1421
    %v1472 = vadd.f32 %v1392, %v1425
    %v1473 = vadd.f32 %v1393, %v1429
    %v1474 = vadd.f32 %v1394, %v1433
    %v1475 = vadd.f32 %v1395, %v1437
    %v1476 = vadd.f32 %v1396, %v1441
    %v1477 = vadd.f32 %v1397, %v1445
    %v1478 = vadd.f32 %v1398, %v1449
    %v1479 = vadd.f32 %v1399, %v1453
    %v1480 = vadd.f32 %v1400, %v1457
    %v1481 = vadd.f32 %v1401, %v1461
    %v1482 = vadd.f32 %v1402, %v1465
    %vm1483 = vcmp.ge.f32.partialorder %v1467, 0.0
    %vm1484 = vcmp.ge.f32.partialorder %v1468, 0.0
    %vm1485 = vcmp.ge.f32.partialorder %v1469, 0.0
    %vm1486 = vcmp.ge.f32.partialorder %v1470, 0.0
    %vm1487 = vcmp.ge.f32.partialorder %v1471, 0.0
    %vm1488 = vcmp.ge.f32.partialorder %v1472, 0.0
    %vm1489 = vcmp.ge.f32.partialorder %v1473, 0.0
    %vm1490 = vcmp.ge.f32.partialorder %v1474, 0.0
    %vm1491 = vcmp.ge.f32.partialorder %v1475, 0.0
    %vm1492 = vcmp.ge.f32.partialorder %v1476, 0.0
    %vm1493 = vcmp.ge.f32.partialorder %v1477, 0.0
    %vm1494 = vcmp.ge.f32.partialorder %v1478, 0.0
    %vm1495 = vcmp.ge.f32.partialorder %v1479, 0.0
    %vm1496 = vcmp.ge.f32.partialorder %v1480, 0.0
    %vm1497 = vcmp.ge.f32.partialorder %v1481, 0.0
    %vm1498 = vcmp.ge.f32.partialorder %v1482, 0.0
    %v1499 = vmul.f32 %v1467, 0.01
    %v1500 = vmul.f32 %v1468, 0.01
    %v1501 = vmul.f32 %v1469, 0.01
    %v1502 = vmul.f32 %v1470, 0.01
    %v1503 = vmul.f32 %v1471, 0.01
    %v1504 = vmul.f32 %v1472, 0.01
    %v1505 = vmul.f32 %v1473, 0.01
    %v1506 = vmul.f32 %v1474, 0.01
    %v1507 = vmul.f32 %v1475, 0.01
    %v1508 = vmul.f32 %v1476, 0.01
    %v1509 = vmul.f32 %v1477, 0.01
    %v1510 = vmul.f32 %v1478, 0.01
    %v1511 = vmul.f32 %v1479, 0.01
    %v1512 = vmul.f32 %v1480, 0.01
    %v1513 = vmul.f32 %v1481, 0.01
    %v1514 = vmul.f32 %v1482, 0.01
    %v1515 = vsel %vm1483, %v1467, %v1499
    %v1516 = vsel %vm1484, %v1468, %v1500
    %v1517 = vsel %vm1485, %v1469, %v1501
    %v1518 = vsel %vm1486, %v1470, %v1502
    %v1519 = vsel %vm1487, %v1471, %v1503
    %v1520 = vsel %vm1488, %v1472, %v1504
    %v1521 = vsel %vm1489, %v1473, %v1505
    %v1522 = vsel %vm1490, %v1474, %v1506
    %v1523 = vsel %vm1491, %v1475, %v1507
    %v1524 = vsel %vm1492, %v1476, %v1508
    %v1525 = vsel %vm1493, %v1477, %v1509
    %v1526 = vsel %vm1494, %v1478, %v1510
    %v1527 = vsel %vm1495, %v1479, %v1511
    %v1528 = vsel %vm1496, %v1480, %v1512
    %v1529 = vsel %vm1497, %v1481, %v1513
    %v1530 = vsel %vm1498, %v1482, %v1514
    %s1531 = scalar_lea.vmem %s2, 192
    %v1532 = vld [vmem:[%s1531] sm:$0xf]
    %v1533 = vld [vmem:[%s1531 + $0x4] sm:$0xf]
    %v1534 = vld [vmem:[%s1531 + $0x8] sm:$0xf]
    %v1535 = vld [vmem:[%s1531 + $0xc] sm:$0xf]
    %v1536 = vld [vmem:[%s1531 + $0x10] sm:$0xf]
    %v1537 = vld [vmem:[%s1531 + $0x14] sm:$0xf]
    %v1538 = vld [vmem:[%s1531 + $0x18] sm:$0xf]
    %v1539 = vld [vmem:[%s1531 + $0x1c] sm:$0xf]
    %v1540 = vld [vmem:[%s1531 + $0x20] sm:$0xf]
    %v1541 = vld [vmem:[%s1531 + $0x24] sm:$0xf]
    %v1542 = vld [vmem:[%s1531 + $0x28] sm:$0xf]
    %v1543 = vld [vmem:[%s1531 + $0x2c] sm:$0xf]
    %v1544 = vld [vmem:[%s1531 + $0x30] sm:$0xf]
    %v1545 = vld [vmem:[%s1531 + $0x34] sm:$0xf]
    %v1546 = vld [vmem:[%s1531 + $0x38] sm:$0xf]
    %v1547 = vld [vmem:[%s1531 + $0x3c] sm:$0xf]
    %v1548 = vpack.c.bf16 %v1516, %v1515
    %v1549 = vpack.c.bf16 %v1518, %v1517
    %v1550 = vpack.c.bf16 %v1520, %v1519
    %v1551 = vpack.c.bf16 %v1522, %v1521
    %v1552 = vpack.c.bf16 %v1524, %v1523
    %v1553 = vpack.c.bf16 %v1526, %v1525
    %v1554 = vpack.c.bf16 %v1528, %v1527
    %v1555 = vpack.c.bf16 %v1530, %v1529
    %1556 = vset.pattern.permute.xlu0 2
    %1557 = vperm.xlu0 %1556, %v1287
    %v1558 = vpop.permute.xlu0 %1557
    %1560 = vset.pattern.permute.xlu0 2
    %1561 = vperm.xlu0 %1560, %v1288
    %v1562 = vpop.permute.xlu0 %1561
    %1564 = vset.pattern.permute.xlu0 2
    %1565 = vperm.xlu0 %1564, %v1289
    %v1566 = vpop.permute.xlu0 %1565
    %1568 = vset.pattern.permute.xlu0 2
    %1569 = vperm.xlu0 %1568, %v1290
    %v1570 = vpop.permute.xlu0 %1569
    %1572 = vset.pattern.permute.xlu0 2
    %1573 = vperm.xlu0 %1572, %v1291
    %v1574 = vpop.permute.xlu0 %1573
    %1576 = vset.pattern.permute.xlu0 2
    %1577 = vperm.xlu0 %1576, %v1292
    %v1578 = vpop.permute.xlu0 %1577
    %1580 = vset.pattern.permute.xlu0 2
    %1581 = vperm.xlu0 %1580, %v1293
    %v1582 = vpop.permute.xlu0 %1581
    %1584 = vset.pattern.permute.xlu0 2
    %1585 = vperm.xlu0 %1584, %v1294
    %v1586 = vpop.permute.xlu0 %1585
    %1588 = vset.pattern.permute.xlu0 2
    %1589 = vperm.xlu0 %1588, %v1295
    %v1590 = vpop.permute.xlu0 %1589
    %1592 = vset.pattern.permute.xlu0 2
    %1593 = vperm.xlu0 %1592, %v1296
    %v1594 = vpop.permute.xlu0 %1593
    %1596 = vset.pattern.permute.xlu0 2
    %1597 = vperm.xlu0 %1596, %v1297
    %v1598 = vpop.permute.xlu0 %1597
    %1600 = vset.pattern.permute.xlu0 2
    %1601 = vperm.xlu0 %1600, %v1298
    %v1602 = vpop.permute.xlu0 %1601
    %1604 = vset.pattern.permute.xlu0 2
    %1605 = vperm.xlu0 %1604, %v1299
    %v1606 = vpop.permute.xlu0 %1605
    %1608 = vset.pattern.permute.xlu0 2
    %1609 = vperm.xlu0 %1608, %v1300
    %v1610 = vpop.permute.xlu0 %1609
    %1612 = vset.pattern.permute.xlu0 2
    %1613 = vperm.xlu0 %1612, %v1301
    %v1614 = vpop.permute.xlu0 %1613
    %1616 = vset.pattern.permute.xlu0 2
    %1617 = vperm.xlu0 %1616, %v1302
    %v1618 = vpop.permute.xlu0 %1617
    %v1636 = vunpack.c.l.b16 %v1532
    %v1637 = vunpack.c.l.b16 %v1533
    %v1638 = vunpack.c.l.b16 %v1534
    %v1639 = vunpack.c.l.b16 %v1535
    %v1640 = vunpack.c.l.b16 %v1536
    %v1641 = vunpack.c.l.b16 %v1537
    %v1642 = vunpack.c.l.b16 %v1538
    %v1643 = vunpack.c.l.b16 %v1539
    %v1644 = vunpack.c.l.b16 %v1540
    %v1645 = vunpack.c.l.b16 %v1541
    %v1646 = vunpack.c.l.b16 %v1542
    %v1647 = vunpack.c.l.b16 %v1543
    %v1648 = vunpack.c.l.b16 %v1544
    %v1649 = vunpack.c.l.b16 %v1545
    %v1650 = vunpack.c.l.b16 %v1546
    %v1651 = vunpack.c.l.b16 %v1547
    %v1652 = vpack.c.b16 %v1637, %v1636
    %v1653 = vpack.c.b16 %v1639, %v1638
    %v1654 = vpack.c.b16 %v1641, %v1640
    %v1655 = vpack.c.b16 %v1643, %v1642
    %v1656 = vpack.c.b16 %v1645, %v1644
    %v1657 = vpack.c.b16 %v1647, %v1646
    %v1658 = vpack.c.b16 %v1649, %v1648
    %v1659 = vpack.c.b16 %v1651, %v1650
    %1668 = vmatprep.subr.bf16.mxu0 0
    %1669 = vmatpush1.bf16.msra.mxu0 %v1548
    %1670 = vmatprep.subr.bf16.mxu0 0
    %1671 = vmatpush1.bf16.msra.mxu0 %v1549
    %1672 = vmatprep.subr.bf16.mxu0 0
    %1673 = vmatpush1.bf16.msra.mxu0 %v1550
    %1674 = vmatprep.subr.bf16.mxu0 0
    %1675 = vmatpush1.bf16.msra.mxu0 %v1551
    %1676 = vmatprep.subr.bf16.mxu0 0
    %1677 = vmatpush1.bf16.msra.mxu0 %v1552
    %1678 = vmatprep.subr.bf16.mxu0 0
    %1679 = vmatpush1.bf16.msra.mxu0 %v1553
    %1680 = vmatprep.subr.bf16.mxu0 0
    %1681 = vmatpush1.bf16.msra.mxu0 %v1554
    %1682 = vmatprep.subr.bf16.mxu0 0
    %1683 = vmatpush1.bf16.msra.mxu0 %v1555
    %1684 = vmatprep.subr.bf16.mxu0 0
    %1685 = vmatpush1.bf16.msra.mxu0 0
    %1686 = vmatprep.subr.bf16.mxu0 0
    %1687 = vmatpush1.bf16.msra.mxu0 0
    %1688 = vmatprep.subr.bf16.mxu0 0
    %1689 = vmatpush1.bf16.msra.mxu0 0
    %1690 = vmatprep.subr.bf16.mxu0 0
    %1691 = vmatpush1.bf16.msra.mxu0 0
    %1692 = vmatprep.subr.bf16.mxu0 0
    %1693 = vmatpush1.bf16.msra.mxu0 0
    %1694 = vmatprep.subr.bf16.mxu0 0
    %1695 = vmatpush1.bf16.msra.mxu0 0
    %1696 = vmatprep.subr.bf16.mxu0 0
    %1697 = vmatpush1.bf16.msra.mxu0 0
    %1698 = vmatprep.subr.bf16.mxu0 0
    %1699 = vmatpush1.bf16.msra.mxu0 0
    %1700 = vmatprep.mubr.bf16.mxu0 0
    %1701 = vmatmul.mubr.bf16.gmra.mrb[0].mxu0 %v1652
    %v1702 = vpop.f32.mrb[0].mxu0
    %v1703 = vadd.f32 %v1558, %v1702
    %v1704 = vpop.f32.mrb[0].mxu0
    %v1705 = vpop.f32.mrb[0].mxu0
    %v1706 = vadd.f32 %v1562, %v1705
    %v1707 = vpop.f32.mrb[0].mxu0
    %1708 = vmatprep.mubr.bf16.mxu0 0
    %1709 = vmatmul.mubr.bf16.gmra.mrb[0].mxu0 %v1653
    %v1710 = vpop.f32.mrb[0].mxu0
    %v1711 = vadd.f32 %v1566, %v1710
    %v1712 = vpop.f32.mrb[0].mxu0
    %v1713 = vpop.f32.mrb[0].mxu0
    %v1714 = vadd.f32 %v1570, %v1713
    %v1715 = vpop.f32.mrb[0].mxu0
    %1716 = vmatprep.mubr.bf16.mxu0 0
    %1717 = vmatmul.mubr.bf16.gmra.mrb[0].mxu0 %v1654
    %v1718 = vpop.f32.mrb[0].mxu0
    %v1719 = vadd.f32 %v1574, %v1718
    %v1720 = vpop.f32.mrb[0].mxu0
    %v1721 = vpop.f32.mrb[0].mxu0
    %v1722 = vadd.f32 %v1578, %v1721
    %v1723 = vpop.f32.mrb[0].mxu0
    %1724 = vmatprep.mubr.bf16.mxu0 0
    %1725 = vmatmul.mubr.bf16.gmra.mrb[0].mxu0 %v1655
    %v1726 = vpop.f32.mrb[0].mxu0
    %v1727 = vadd.f32 %v1582, %v1726
    %v1728 = vpop.f32.mrb[0].mxu0
    %v1729 = vpop.f32.mrb[0].mxu0
    %v1730 = vadd.f32 %v1586, %v1729
    %v1731 = vpop.f32.mrb[0].mxu0
    %1732 = vmatprep.mubr.bf16.mxu0 0
    %1733 = vmatmul.mubr.bf16.gmra.mrb[0].mxu0 %v1656
    %v1734 = vpop.f32.mrb[0].mxu0
    %v1735 = vadd.f32 %v1590, %v1734
    %v1736 = vpop.f32.mrb[0].mxu0
    %v1737 = vpop.f32.mrb[0].mxu0
    %v1738 = vadd.f32 %v1594, %v1737
    %v1739 = vpop.f32.mrb[0].mxu0
    %1740 = vmatprep.mubr.bf16.mxu0 0
    %1741 = vmatmul.mubr.bf16.gmra.mrb[0].mxu0 %v1657
    %v1742 = vpop.f32.mrb[0].mxu0
    %v1743 = vadd.f32 %v1598, %v1742
    %v1744 = vpop.f32.mrb[0].mxu0
    %v1745 = vpop.f32.mrb[0].mxu0
    %v1746 = vadd.f32 %v1602, %v1745
    %v1747 = vpop.f32.mrb[0].mxu0
    %1748 = vmatprep.mubr.bf16.mxu0 0
    %1749 = vmatmul.mubr.bf16.gmra.mrb[0].mxu0 %v1658
    %v1750 = vpop.f32.mrb[0].mxu0
    %v1751 = vadd.f32 %v1606, %v1750
    %v1752 = vpop.f32.mrb[0].mxu0
    %v1753 = vpop.f32.mrb[0].mxu0
    %v1754 = vadd.f32 %v1610, %v1753
    %v1755 = vpop.f32.mrb[0].mxu0
    %1756 = vmatprep.mubr.bf16.mxu0 0
    %1757 = vmatmul.mubr.bf16.gmra.mrb[0].mxu0 %v1659
    %v1758 = vpop.f32.mrb[0].mxu0
    %v1759 = vadd.f32 %v1614, %v1758
    %v1760 = vpop.f32.mrb[0].mxu0
    %v1761 = vpop.f32.mrb[0].mxu0
    %v1762 = vadd.f32 %v1618, %v1761
    %v1763 = vpop.f32.mrb[0].mxu0
    %1764 = vdwg.mxu0
    %vm1765 = vcmp.ge.f32.partialorder %v1703, 0.0
    %vm1766 = vcmp.ge.f32.partialorder %v1706, 0.0
    %vm1767 = vcmp.ge.f32.partialorder %v1711, 0.0
    %vm1768 = vcmp.ge.f32.partialorder %v1714, 0.0
    %vm1769 = vcmp.ge.f32.partialorder %v1719, 0.0
    %vm1770 = vcmp.ge.f32.partialorder %v1722, 0.0
    %vm1771 = vcmp.ge.f32.partialorder %v1727, 0.0
    %vm1772 = vcmp.ge.f32.partialorder %v1730, 0.0
    %vm1773 = vcmp.ge.f32.partialorder %v1735, 0.0
    %vm1774 = vcmp.ge.f32.partialorder %v1738, 0.0
    %vm1775 = vcmp.ge.f32.partialorder %v1743, 0.0
    %vm1776 = vcmp.ge.f32.partialorder %v1746, 0.0
    %vm1777 = vcmp.ge.f32.partialorder %v1751, 0.0
    %vm1778 = vcmp.ge.f32.partialorder %v1754, 0.0
    %vm1779 = vcmp.ge.f32.partialorder %v1759, 0.0
    %vm1780 = vcmp.ge.f32.partialorder %v1762, 0.0
    %v1781 = vmul.f32 %v1703, 0.01
    %v1782 = vmul.f32 %v1706, 0.01
    %v1783 = vmul.f32 %v1711, 0.01
    %v1784 = vmul.f32 %v1714, 0.01
    %v1785 = vmul.f32 %v1719, 0.01
    %v1786 = vmul.f32 %v1722, 0.01
    %v1787 = vmul.f32 %v1727, 0.01
    %v1788 = vmul.f32 %v1730, 0.01
    %v1789 = vmul.f32 %v1735, 0.01
    %v1790 = vmul.f32 %v1738, 0.01
    %v1791 = vmul.f32 %v1743, 0.01
    %v1792 = vmul.f32 %v1746, 0.01
    %v1793 = vmul.f32 %v1751, 0.01
    %v1794 = vmul.f32 %v1754, 0.01
    %v1795 = vmul.f32 %v1759, 0.01
    %v1796 = vmul.f32 %v1762, 0.01
    %v1797 = vsel %vm1765, %v1703, %v1781
    %v1798 = vsel %vm1766, %v1706, %v1782
    %v1799 = vsel %vm1767, %v1711, %v1783
    %v1800 = vsel %vm1768, %v1714, %v1784
    %v1801 = vsel %vm1769, %v1719, %v1785
    %v1802 = vsel %vm1770, %v1722, %v1786
    %v1803 = vsel %vm1771, %v1727, %v1787
    %v1804 = vsel %vm1772, %v1730, %v1788
    %v1805 = vsel %vm1773, %v1735, %v1789
    %v1806 = vsel %vm1774, %v1738, %v1790
    %v1807 = vsel %vm1775, %v1743, %v1791
    %v1808 = vsel %vm1776, %v1746, %v1792
    %v1809 = vsel %vm1777, %v1751, %v1793
    %v1810 = vsel %vm1778, %v1754, %v1794
    %v1811 = vsel %vm1779, %v1759, %v1795
    %v1812 = vsel %vm1780, %v1762, %v1796
    %s1813 = scalar_lea.vmem %s3, 12
    %v1814 = vld [vmem:[%s1813] sm:$0xf]
    %v1815 = vpack.c.bf16 %v1798, %v1797
    %v1816 = vpack.c.bf16 %v1800, %v1799
    %v1817 = vpack.c.bf16 %v1802, %v1801
    %v1818 = vpack.c.bf16 %v1804, %v1803
    %v1819 = vpack.c.bf16 %v1806, %v1805
    %v1820 = vpack.c.bf16 %v1808, %v1807
    %v1821 = vpack.c.bf16 %v1810, %v1809
    %v1822 = vpack.c.bf16 %v1812, %v1811
    %1823 = vmatprep.subr.bf16.mxu0 0
    %1824 = vmatpush1.bf16.msra.mxu0 %v1815
    %1825 = vmatprep.subr.bf16.mxu0 0
    %1826 = vmatpush1.bf16.msra.mxu0 %v1816
    %1827 = vmatprep.subr.bf16.mxu0 0
    %1828 = vmatpush1.bf16.msra.mxu0 %v1817
    %1829 = vmatprep.subr.bf16.mxu0 0
    %1830 = vmatpush1.bf16.msra.mxu0 %v1818
    %1831 = vmatprep.subr.bf16.mxu0 0
    %1832 = vmatpush1.bf16.msra.mxu0 %v1819
    %1833 = vmatprep.subr.bf16.mxu0 0
    %1834 = vmatpush1.bf16.msra.mxu0 %v1820
    %1835 = vmatprep.subr.bf16.mxu0 0
    %1836 = vmatpush1.bf16.msra.mxu0 %v1821
    %1837 = vmatprep.subr.bf16.mxu0 0
    %1838 = vmatpush1.bf16.msra.mxu0 %v1822
    %1839 = vmatprep.subr.bf16.mxu0 0
    %1840 = vmatpush1.bf16.msra.mxu0 0
    %1841 = vmatprep.subr.bf16.mxu0 0
    %1842 = vmatpush1.bf16.msra.mxu0 0
    %1843 = vmatprep.subr.bf16.mxu0 0
    %1844 = vmatpush1.bf16.msra.mxu0 0
    %1845 = vmatprep.subr.bf16.mxu0 0
    %1846 = vmatpush1.bf16.msra.mxu0 0
    %1847 = vmatprep.subr.bf16.mxu0 0
    %1848 = vmatpush1.bf16.msra.mxu0 0
    %1849 = vmatprep.subr.bf16.mxu0 0
    %1850 = vmatpush1.bf16.msra.mxu0 0
    %1851 = vmatprep.subr.bf16.mxu0 0
    %1852 = vmatpush1.bf16.msra.mxu0 0
    %1853 = vmatprep.subr.bf16.mxu0 0
    %1854 = vmatpush1.bf16.msra.mxu0 0
    %1855 = vmatprep.mubr.bf16.mxu0 0
    %1856 = vmatmul.mubr.bf16.gmra.mrb[0].mxu0 %v1814
    %v1857 = vpop.f32.mrb[0].mxu0
    %v1858 = vadd.f32 0.0, %v1857
    %v1859 = vpop.f32.mrb[0].mxu0
    %v1860 = vpop.f32.mrb[0].mxu0
    %v1861 = vpop.f32.mrb[0].mxu0
    %1862 = vdwg.mxu0
    %s1863 = sld [smem:[#allocation2 + $0x180]]
    %v1864 = vstv %s1863
    %v1865 = vadd.f32 %v1858, %v1864
    %v1866 = vtanh.pop %v1865
    %s1867 = sld [smem:[#allocation2 + $0x181]]
    %v1868 = vstv %s1867
    %v1869 = vadd.f32 %v1858, %v1868
    %v1870 = vsub.f32 %v692, %v1869
    %v1871 = vsub.f32 0.0, %v1866
    %v1872 = vmul.f32 %v1871, 1.442695
    %v1873 = vpow.pop %v1872
    %v1875 = vrot.slane %v1873, 7
    %v1877 = vmul.f32 %v1870, %v1875
    %v1878 = vsub.f32 %v1285, %v1866
    %s1879 = scalar_lea.vmem %s4, 256
    %v1880 = vld [vmem:[%s1879] sm:$0xff]
    %v1881 = vld [vmem:[%s1879 + $0x8] sm:$0xff]
    %v1882 = vld [vmem:[%s1879 + $0x10] sm:$0xff]
    %v1883 = vld [vmem:[%s1879 + $0x18] sm:$0xff]
    %v1884 = vld [vmem:[%s1879 + $0x20] sm:$0xff]
    %v1885 = vld [vmem:[%s1879 + $0x28] sm:$0xff]
    %v1886 = vld [vmem:[%s1879 + $0x30] sm:$0xff]
    %v1887 = vld [vmem:[%s1879 + $0x38] sm:$0xff]
    %v1888 = vld [vmem:[%s1879 + $0x40] sm:$0xff]
    %v1889 = vld [vmem:[%s1879 + $0x48] sm:$0xff]
    %v1890 = vld [vmem:[%s1879 + $0x50] sm:$0xff]
    %v1891 = vld [vmem:[%s1879 + $0x58] sm:$0xff]
    %v1892 = vld [vmem:[%s1879 + $0x60] sm:$0xff]
    %v1893 = vld [vmem:[%s1879 + $0x68] sm:$0xff]
    %v1894 = vld [vmem:[%s1879 + $0x70] sm:$0xff]
    %v1895 = vld [vmem:[%s1879 + $0x78] sm:$0xff]
    %1897 = vset.pattern.permute.xlu0 0
    %1898 = vperm.xlu0 %1897, %v1880
    %v1899 = vpop.permute.xlu0 %1898
    %1902 = vset.pattern.permute.xlu0 0
    %1903 = vperm.xlu0 %1902, %v1881
    %v1904 = vpop.permute.xlu0 %1903
    %1907 = vset.pattern.permute.xlu0 0
    %1908 = vperm.xlu0 %1907, %v1882
    %v1909 = vpop.permute.xlu0 %1908
    %1912 = vset.pattern.permute.xlu0 0
    %1913 = vperm.xlu0 %1912, %v1883
    %v1914 = vpop.permute.xlu0 %1913
    %1917 = vset.pattern.permute.xlu0 0
    %1918 = vperm.xlu0 %1917, %v1884
    %v1919 = vpop.permute.xlu0 %1918
    %1922 = vset.pattern.permute.xlu0 0
    %1923 = vperm.xlu0 %1922, %v1885
    %v1924 = vpop.permute.xlu0 %1923
    %1927 = vset.pattern.permute.xlu0 0
    %1928 = vperm.xlu0 %1927, %v1886
    %v1929 = vpop.permute.xlu0 %1928
    %1932 = vset.pattern.permute.xlu0 0
    %1933 = vperm.xlu0 %1932, %v1887
    %v1934 = vpop.permute.xlu0 %1933
    %1937 = vset.pattern.permute.xlu0 0
    %1938 = vperm.xlu0 %1937, %v1888
    %v1939 = vpop.permute.xlu0 %1938
    %1942 = vset.pattern.permute.xlu0 0
    %1943 = vperm.xlu0 %1942, %v1889
    %v1944 = vpop.permute.xlu0 %1943
    %1947 = vset.pattern.permute.xlu0 0
    %1948 = vperm.xlu0 %1947, %v1890
    %v1949 = vpop.permute.xlu0 %1948
    %1952 = vset.pattern.permute.xlu0 0
    %1953 = vperm.xlu0 %1952, %v1891
    %v1954 = vpop.permute.xlu0 %1953
    %1957 = vset.pattern.permute.xlu0 0
    %1958 = vperm.xlu0 %1957, %v1892
    %v1959 = vpop.permute.xlu0 %1958
    %1962 = vset.pattern.permute.xlu0 0
    %1963 = vperm.xlu0 %1962, %v1893
    %v1964 = vpop.permute.xlu0 %1963
    %1967 = vset.pattern.permute.xlu0 0
    %1968 = vperm.xlu0 %1967, %v1894
    %v1969 = vpop.permute.xlu0 %1968
    %1972 = vset.pattern.permute.xlu0 0
    %1973 = vperm.xlu0 %1972, %v1895
    %v1974 = vpop.permute.xlu0 %1973
    %v1976 = vlaneseq
    %v1977 = vshrl.u32 %v1976, 7
    %v1978 = vsub.s32 1, %v1977
    %v1979 = vrot.slane %v1877, %v1978
    %v1980 = vmul.f32 %v1899, %v1979
    %v1981 = vmul.f32 %v1904, %v1979
    %v1982 = vmul.f32 %v1909, %v1979
    %v1983 = vmul.f32 %v1914, %v1979
    %v1984 = vmul.f32 %v1919, %v1979
    %v1985 = vmul.f32 %v1924, %v1979
    %v1986 = vmul.f32 %v1929, %v1979
    %v1987 = vmul.f32 %v1934, %v1979
    %v1988 = vmul.f32 %v1939, %v1979
    %v1989 = vmul.f32 %v1944, %v1979
    %v1990 = vmul.f32 %v1949, %v1979
    %v1991 = vmul.f32 %v1954, %v1979
    %v1992 = vmul.f32 %v1959, %v1979
    %v1993 = vmul.f32 %v1964, %v1979
    %v1994 = vmul.f32 %v1969, %v1979
    %v1995 = vmul.f32 %v1974, %v1979
    %1996 = vset.pattern.permute.xlu0 1
    %1997 = vperm.xlu0 %1996, %v1880
    %v1998 = vpop.permute.xlu0 %1997
    %2000 = vset.pattern.permute.xlu0 1
    %2001 = vperm.xlu0 %2000, %v1881
    %v2002 = vpop.permute.xlu0 %2001
    %2004 = vset.pattern.permute.xlu0 1
    %2005 = vperm.xlu0 %2004, %v1882
    %v2006 = vpop.permute.xlu0 %2005
    %2008 = vset.pattern.permute.xlu0 1
    %2009 = vperm.xlu0 %2008, %v1883
    %v2010 = vpop.permute.xlu0 %2009
    %2012 = vset.pattern.permute.xlu0 1
    %2013 = vperm.xlu0 %2012, %v1884
    %v2014 = vpop.permute.xlu0 %2013
    %2016 = vset.pattern.permute.xlu0 1
    %2017 = vperm.xlu0 %2016, %v1885
    %v2018 = vpop.permute.xlu0 %2017
    %2020 = vset.pattern.permute.xlu0 1
    %2021 = vperm.xlu0 %2020, %v1886
    %v2022 = vpop.permute.xlu0 %2021
    %2024 = vset.pattern.permute.xlu0 1
    %2025 = vperm.xlu0 %2024, %v1887
    %v2026 = vpop.permute.xlu0 %2025
    %2028 = vset.pattern.permute.xlu0 1
    %2029 = vperm.xlu0 %2028, %v1888
    %v2030 = vpop.permute.xlu0 %2029
    %2032 = vset.pattern.permute.xlu0 1
    %2033 = vperm.xlu0 %2032, %v1889
    %v2034 = vpop.permute.xlu0 %2033
    %2036 = vset.pattern.permute.xlu0 1
    %2037 = vperm.xlu0 %2036, %v1890
    %v2038 = vpop.permute.xlu0 %2037
    %2040 = vset.pattern.permute.xlu0 1
    %2041 = vperm.xlu0 %2040, %v1891
    %v2042 = vpop.permute.xlu0 %2041
    %2044 = vset.pattern.permute.xlu0 1
    %2045 = vperm.xlu0 %2044, %v1892
    %v2046 = vpop.permute.xlu0 %2045
    %2048 = vset.pattern.permute.xlu0 1
    %2049 = vperm.xlu0 %2048, %v1893
    %v2050 = vpop.permute.xlu0 %2049
    %2052 = vset.pattern.permute.xlu0 1
    %2053 = vperm.xlu0 %2052, %v1894
    %v2054 = vpop.permute.xlu0 %2053
    %2056 = vset.pattern.permute.xlu0 1
    %2057 = vperm.xlu0 %2056, %v1895
    %v2058 = vpop.permute.xlu0 %2057
    %v2060 = vadd.f32 %v1980, %v1998
    %v2061 = vadd.f32 %v1981, %v2002
    %v2062 = vadd.f32 %v1982, %v2006
    %v2063 = vadd.f32 %v1983, %v2010
    %v2064 = vadd.f32 %v1984, %v2014
    %v2065 = vadd.f32 %v1985, %v2018
    %v2066 = vadd.f32 %v1986, %v2022
    %v2067 = vadd.f32 %v1987, %v2026
    %v2068 = vadd.f32 %v1988, %v2030
    %v2069 = vadd.f32 %v1989, %v2034
    %v2070 = vadd.f32 %v1990, %v2038
    %v2071 = vadd.f32 %v1991, %v2042
    %v2072 = vadd.f32 %v1992, %v2046
    %v2073 = vadd.f32 %v1993, %v2050
    %v2074 = vadd.f32 %v1994, %v2054
    %v2075 = vadd.f32 %v1995, %v2058
    %vm2076 = vcmp.ge.f32.partialorder %v2060, 0.0
    %vm2077 = vcmp.ge.f32.partialorder %v2061, 0.0
    %vm2078 = vcmp.ge.f32.partialorder %v2062, 0.0
    %vm2079 = vcmp.ge.f32.partialorder %v2063, 0.0
    %vm2080 = vcmp.ge.f32.partialorder %v2064, 0.0
    %vm2081 = vcmp.ge.f32.partialorder %v2065, 0.0
    %vm2082 = vcmp.ge.f32.partialorder %v2066, 0.0
    %vm2083 = vcmp.ge.f32.partialorder %v2067, 0.0
    %vm2084 = vcmp.ge.f32.partialorder %v2068, 0.0
    %vm2085 = vcmp.ge.f32.partialorder %v2069, 0.0
    %vm2086 = vcmp.ge.f32.partialorder %v2070, 0.0
    %vm2087 = vcmp.ge.f32.partialorder %v2071, 0.0
    %vm2088 = vcmp.ge.f32.partialorder %v2072, 0.0
    %vm2089 = vcmp.ge.f32.partialorder %v2073, 0.0
    %vm2090 = vcmp.ge.f32.partialorder %v2074, 0.0
    %vm2091 = vcmp.ge.f32.partialorder %v2075, 0.0
    %v2092 = vmul.f32 %v2060, 0.01
    %v2093 = vmul.f32 %v2061, 0.01
    %v2094 = vmul.f32 %v2062, 0.01
    %v2095 = vmul.f32 %v2063, 0.01
    %v2096 = vmul.f32 %v2064, 0.01
    %v2097 = vmul.f32 %v2065, 0.01
    %v2098 = vmul.f32 %v2066, 0.01
    %v2099 = vmul.f32 %v2067, 0.01
    %v2100 = vmul.f32 %v2068, 0.01
    %v2101 = vmul.f32 %v2069, 0.01
    %v2102 = vmul.f32 %v2070, 0.01
    %v2103 = vmul.f32 %v2071, 0.01
    %v2104 = vmul.f32 %v2072, 0.01
    %v2105 = vmul.f32 %v2073, 0.01
    %v2106 = vmul.f32 %v2074, 0.01
    %v2107 = vmul.f32 %v2075, 0.01
    %v2108 = vsel %vm2076, %v2060, %v2092
    %v2109 = vsel %vm2077, %v2061, %v2093
    %v2110 = vsel %vm2078, %v2062, %v2094
    %v2111 = vsel %vm2079, %v2063, %v2095
    %v2112 = vsel %vm2080, %v2064, %v2096
    %v2113 = vsel %vm2081, %v2065, %v2097
    %v2114 = vsel %vm2082, %v2066, %v2098
    %v2115 = vsel %vm2083, %v2067, %v2099
    %v2116 = vsel %vm2084, %v2068, %v2100
    %v2117 = vsel %vm2085, %v2069, %v2101
    %v2118 = vsel %vm2086, %v2070, %v2102
    %v2119 = vsel %vm2087, %v2071, %v2103
    %v2120 = vsel %vm2088, %v2072, %v2104
    %v2121 = vsel %vm2089, %v2073, %v2105
    %v2122 = vsel %vm2090, %v2074, %v2106
    %v2123 = vsel %vm2091, %v2075, %v2107
    %s2124 = scalar_lea.vmem %s2, 128
    %v2125 = vld [vmem:[%s2124] sm:$0xf]
    %v2126 = vld [vmem:[%s2124 + $0x4] sm:$0xf]
    %v2127 = vld [vmem:[%s2124 + $0x8] sm:$0xf]
    %v2128 = vld [vmem:[%s2124 + $0xc] sm:$0xf]
    %v2129 = vld [vmem:[%s2124 + $0x10] sm:$0xf]
    %v2130 = vld [vmem:[%s2124 + $0x14] sm:$0xf]
    %v2131 = vld [vmem:[%s2124 + $0x18] sm:$0xf]
    %v2132 = vld [vmem:[%s2124 + $0x1c] sm:$0xf]
    %v2133 = vld [vmem:[%s2124 + $0x20] sm:$0xf]
    %v2134 = vld [vmem:[%s2124 + $0x24] sm:$0xf]
    %v2135 = vld [vmem:[%s2124 + $0x28] sm:$0xf]
    %v2136 = vld [vmem:[%s2124 + $0x2c] sm:$0xf]
    %v2137 = vld [vmem:[%s2124 + $0x30] sm:$0xf]
    %v2138 = vld [vmem:[%s2124 + $0x34] sm:$0xf]
    %v2139 = vld [vmem:[%s2124 + $0x38] sm:$0xf]
    %v2140 = vld [vmem:[%s2124 + $0x3c] sm:$0xf]
    %v2141 = vpack.c.bf16 %v2109, %v2108
    %v2142 = vpack.c.bf16 %v2111, %v2110
    %v2143 = vpack.c.bf16 %v2113, %v2112
    %v2144 = vpack.c.bf16 %v2115, %v2114
    %v2145 = vpack.c.bf16 %v2117, %v2116
    %v2146 = vpack.c.bf16 %v2119, %v2118
    %v2147 = vpack.c.bf16 %v2121, %v2120
    %v2148 = vpack.c.bf16 %v2123, %v2122
    %2149 = vset.pattern.permute.xlu0 2
    %2150 = vperm.xlu0 %2149, %v1880
    %v2151 = vpop.permute.xlu0 %2150
    %2153 = vset.pattern.permute.xlu0 2
    %2154 = vperm.xlu0 %2153, %v1881
    %v2155 = vpop.permute.xlu0 %2154
    %2157 = vset.pattern.permute.xlu0 2
    %2158 = vperm.xlu0 %2157, %v1882
    %v2159 = vpop.permute.xlu0 %2158
    %2161 = vset.pattern.permute.xlu0 2
    %2162 = vperm.xlu0 %2161, %v1883
    %v2163 = vpop.permute.xlu0 %2162
    %2165 = vset.pattern.permute.xlu0 2
    %2166 = vperm.xlu0 %2165, %v1884
    %v2167 = vpop.permute.xlu0 %2166
    %2169 = vset.pattern.permute.xlu0 2
    %2170 = vperm.xlu0 %2169, %v1885
    %v2171 = vpop.permute.xlu0 %2170
    %2173 = vset.pattern.permute.xlu0 2
    %2174 = vperm.xlu0 %2173, %v1886
    %v2175 = vpop.permute.xlu0 %2174
    %2177 = vset.pattern.permute.xlu0 2
    %2178 = vperm.xlu0 %2177, %v1887
    %v2179 = vpop.permute.xlu0 %2178
    %2181 = vset.pattern.permute.xlu0 2
    %2182 = vperm.xlu0 %2181, %v1888
    %v2183 = vpop.permute.xlu0 %2182
    %2185 = vset.pattern.permute.xlu0 2
    %2186 = vperm.xlu0 %2185, %v1889
    %v2187 = vpop.permute.xlu0 %2186
    %2189 = vset.pattern.permute.xlu0 2
    %2190 = vperm.xlu0 %2189, %v1890
    %v2191 = vpop.permute.xlu0 %2190
    %2193 = vset.pattern.permute.xlu0 2
    %2194 = vperm.xlu0 %2193, %v1891
    %v2195 = vpop.permute.xlu0 %2194
    %2197 = vset.pattern.permute.xlu0 2
    %2198 = vperm.xlu0 %2197, %v1892
    %v2199 = vpop.permute.xlu0 %2198
    %2201 = vset.pattern.permute.xlu0 2
    %2202 = vperm.xlu0 %2201, %v1893
    %v2203 = vpop.permute.xlu0 %2202
    %2205 = vset.pattern.permute.xlu0 2
    %2206 = vperm.xlu0 %2205, %v1894
    %v2207 = vpop.permute.xlu0 %2206
    %2209 = vset.pattern.permute.xlu0 2
    %2210 = vperm.xlu0 %2209, %v1895
    %v2211 = vpop.permute.xlu0 %2210
    %v2229 = vunpack.c.l.b16 %v2125
    %v2230 = vunpack.c.l.b16 %v2126
    %v2231 = vunpack.c.l.b16 %v2127
    %v2232 = vunpack.c.l.b16 %v2128
    %v2233 = vunpack.c.l.b16 %v2129
    %v2234 = vunpack.c.l.b16 %v2130
    %v2235 = vunpack.c.l.b16 %v2131
    %v2236 = vunpack.c.l.b16 %v2132
    %v2237 = vunpack.c.l.b16 %v2133
    %v2238 = vunpack.c.l.b16 %v2134
    %v2239 = vunpack.c.l.b16 %v2135
    %v2240 = vunpack.c.l.b16 %v2136
    %v2241 = vunpack.c.l.b16 %v2137
    %v2242 = vunpack.c.l.b16 %v2138
    %v2243 = vunpack.c.l.b16 %v2139
    %v2244 = vunpack.c.l.b16 %v2140
    %v2245 = vpack.c.b16 %v2230, %v2229
    %v2246 = vpack.c.b16 %v2232, %v2231
    %v2247 = vpack.c.b16 %v2234, %v2233
    %v2248 = vpack.c.b16 %v2236, %v2235
    %v2249 = vpack.c.b16 %v2238, %v2237
    %v2250 = vpack.c.b16 %v2240, %v2239
    %v2251 = vpack.c.b16 %v2242, %v2241
    %v2252 = vpack.c.b16 %v2244, %v2243
    %2261 = vmatprep.subr.bf16.mxu0 0
    %2262 = vmatpush1.bf16.msra.mxu0 %v2141
    %2263 = vmatprep.subr.bf16.mxu0 0
    %2264 = vmatpush1.bf16.msra.mxu0 %v2142
    %2265 = vmatprep.subr.bf16.mxu0 0
    %2266 = vmatpush1.bf16.msra.mxu0 %v2143
    %2267 = vmatprep.subr.bf16.mxu0 0
    %2268 = vmatpush1.bf16.msra.mxu0 %v2144
    %2269 = vmatprep.subr.bf16.mxu0 0
    %2270 = vmatpush1.bf16.msra.mxu0 %v2145
    %2271 = vmatprep.subr.bf16.mxu0 0
    %2272 = vmatpush1.bf16.msra.mxu0 %v2146
    %2273 = vmatprep.subr.bf16.mxu0 0
    %2274 = vmatpush1.bf16.msra.mxu0 %v2147
    %2275 = vmatprep.subr.bf16.mxu0 0
    %2276 = vmatpush1.bf16.msra.mxu0 %v2148
    %2277 = vmatprep.subr.bf16.mxu0 0
    %2278 = vmatpush1.bf16.msra.mxu0 0
    %2279 = vmatprep.subr.bf16.mxu0 0
    %2280 = vmatpush1.bf16.msra.mxu0 0
    %2281 = vmatprep.subr.bf16.mxu0 0
    %2282 = vmatpush1.bf16.msra.mxu0 0
    %2283 = vmatprep.subr.bf16.mxu0 0
    %2284 = vmatpush1.bf16.msra.mxu0 0
    %2285 = vmatprep.subr.bf16.mxu0 0
    %2286 = vmatpush1.bf16.msra.mxu0 0
    %2287 = vmatprep.subr.bf16.mxu0 0
    %2288 = vmatpush1.bf16.msra.mxu0 0
    %2289 = vmatprep.subr.bf16.mxu0 0
    %2290 = vmatpush1.bf16.msra.mxu0 0
    %2291 = vmatprep.subr.bf16.mxu0 0
    %2292 = vmatpush1.bf16.msra.mxu0 0
    %2293 = vmatprep.mubr.bf16.mxu0 0
    %2294 = vmatmul.mubr.bf16.gmra.mrb[0].mxu0 %v2245
    %v2295 = vpop.f32.mrb[0].mxu0
    %v2296 = vadd.f32 %v2151, %v2295
    %v2297 = vpop.f32.mrb[0].mxu0
    %v2298 = vpop.f32.mrb[0].mxu0
    %v2299 = vadd.f32 %v2155, %v2298
    %v2300 = vpop.f32.mrb[0].mxu0
    %2301 = vmatprep.mubr.bf16.mxu0 0
    %2302 = vmatmul.mubr.bf16.gmra.mrb[0].mxu0 %v2246
    %v2303 = vpop.f32.mrb[0].mxu0
    %v2304 = vadd.f32 %v2159, %v2303
    %v2305 = vpop.f32.mrb[0].mxu0
    %v2306 = vpop.f32.mrb[0].mxu0
    %v2307 = vadd.f32 %v2163, %v2306
    %v2308 = vpop.f32.mrb[0].mxu0
    %2309 = vmatprep.mubr.bf16.mxu0 0
    %2310 = vmatmul.mubr.bf16.gmra.mrb[0].mxu0 %v2247
    %v2311 = vpop.f32.mrb[0].mxu0
    %v2312 = vadd.f32 %v2167, %v2311
    %v2313 = vpop.f32.mrb[0].mxu0
    %v2314 = vpop.f32.mrb[0].mxu0
    %v2315 = vadd.f32 %v2171, %v2314
    %v2316 = vpop.f32.mrb[0].mxu0
    %2317 = vmatprep.mubr.bf16.mxu0 0
    %2318 = vmatmul.mubr.bf16.gmra.mrb[0].mxu0 %v2248
    %v2319 = vpop.f32.mrb[0].mxu0
    %v2320 = vadd.f32 %v2175, %v2319
    %v2321 = vpop.f32.mrb[0].mxu0
    %v2322 = vpop.f32.mrb[0].mxu0
    %v2323 = vadd.f32 %v2179, %v2322
    %v2324 = vpop.f32.mrb[0].mxu0
    %2325 = vmatprep.mubr.bf16.mxu0 0
    %2326 = vmatmul.mubr.bf16.gmra.mrb[0].mxu0 %v2249
    %v2327 = vpop.f32.mrb[0].mxu0
    %v2328 = vadd.f32 %v2183, %v2327
    %v2329 = vpop.f32.mrb[0].mxu0
    %v2330 = vpop.f32.mrb[0].mxu0
    %v2331 = vadd.f32 %v2187, %v2330
    %v2332 = vpop.f32.mrb[0].mxu0
    %2333 = vmatprep.mubr.bf16.mxu0 0
    %2334 = vmatmul.mubr.bf16.gmra.mrb[0].mxu0 %v2250
    %v2335 = vpop.f32.mrb[0].mxu0
    %v2336 = vadd.f32 %v2191, %v2335
    %v2337 = vpop.f32.mrb[0].mxu0
    %v2338 = vpop.f32.mrb[0].mxu0
    %v2339 = vadd.f32 %v2195, %v2338
    %v2340 = vpop.f32.mrb[0].mxu0
    %2341 = vmatprep.mubr.bf16.mxu0 0
    %2342 = vmatmul.mubr.bf16.gmra.mrb[0].mxu0 %v2251
    %v2343 = vpop.f32.mrb[0].mxu0
    %v2344 = vadd.f32 %v2199, %v2343
    %v2345 = vpop.f32.mrb[0].mxu0
    %v2346 = vpop.f32.mrb[0].mxu0
    %v2347 = vadd.f32 %v2203, %v2346
    %v2348 = vpop.f32.mrb[0].mxu0
    %2349 = vmatprep.mubr.bf16.mxu0 0
    %2350 = vmatmul.mubr.bf16.gmra.mrb[0].mxu0 %v2252
    %v2351 = vpop.f32.mrb[0].mxu0
    %v2352 = vadd.f32 %v2207, %v2351
    %v2353 = vpop.f32.mrb[0].mxu0
    %v2354 = vpop.f32.mrb[0].mxu0
    %v2355 = vadd.f32 %v2211, %v2354
    %v2356 = vpop.f32.mrb[0].mxu0
    %2357 = vdwg.mxu0
    %vm2358 = vcmp.ge.f32.partialorder %v2296, 0.0
    %vm2359 = vcmp.ge.f32.partialorder %v2299, 0.0
    %vm2360 = vcmp.ge.f32.partialorder %v2304, 0.0
    %vm2361 = vcmp.ge.f32.partialorder %v2307, 0.0
    %vm2362 = vcmp.ge.f32.partialorder %v2312, 0.0
    %vm2363 = vcmp.ge.f32.partialorder %v2315, 0.0
    %vm2364 = vcmp.ge.f32.partialorder %v2320, 0.0
    %vm2365 = vcmp.ge.f32.partialorder %v2323, 0.0
    %vm2366 = vcmp.ge.f32.partialorder %v2328, 0.0
    %vm2367 = vcmp.ge.f32.partialorder %v2331, 0.0
    %vm2368 = vcmp.ge.f32.partialorder %v2336, 0.0
    %vm2369 = vcmp.ge.f32.partialorder %v2339, 0.0
    %vm2370 = vcmp.ge.f32.partialorder %v2344, 0.0
    %vm2371 = vcmp.ge.f32.partialorder %v2347, 0.0
    %vm2372 = vcmp.ge.f32.partialorder %v2352, 0.0
    %vm2373 = vcmp.ge.f32.partialorder %v2355, 0.0
    %v2374 = vmul.f32 %v2296, 0.01
    %v2375 = vmul.f32 %v2299, 0.01
    %v2376 = vmul.f32 %v2304, 0.01
    %v2377 = vmul.f32 %v2307, 0.01
    %v2378 = vmul.f32 %v2312, 0.01
    %v2379 = vmul.f32 %v2315, 0.01
    %v2380 = vmul.f32 %v2320, 0.01
    %v2381 = vmul.f32 %v2323, 0.01
    %v2382 = vmul.f32 %v2328, 0.01
    %v2383 = vmul.f32 %v2331, 0.01
    %v2384 = vmul.f32 %v2336, 0.01
    %v2385 = vmul.f32 %v2339, 0.01
    %v2386 = vmul.f32 %v2344, 0.01
    %v2387 = vmul.f32 %v2347, 0.01
    %v2388 = vmul.f32 %v2352, 0.01
    %v2389 = vmul.f32 %v2355, 0.01
    %v2390 = vsel %vm2358, %v2296, %v2374
    %v2391 = vsel %vm2359, %v2299, %v2375
    %v2392 = vsel %vm2360, %v2304, %v2376
    %v2393 = vsel %vm2361, %v2307, %v2377
    %v2394 = vsel %vm2362, %v2312, %v2378
    %v2395 = vsel %vm2363, %v2315, %v2379
    %v2396 = vsel %vm2364, %v2320, %v2380
    %v2397 = vsel %vm2365, %v2323, %v2381
    %v2398 = vsel %vm2366, %v2328, %v2382
    %v2399 = vsel %vm2367, %v2331, %v2383
    %v2400 = vsel %vm2368, %v2336, %v2384
    %v2401 = vsel %vm2369, %v2339, %v2385
    %v2402 = vsel %vm2370, %v2344, %v2386
    %v2403 = vsel %vm2371, %v2347, %v2387
    %v2404 = vsel %vm2372, %v2352, %v2388
    %v2405 = vsel %vm2373, %v2355, %v2389
    %s2406 = scalar_lea.vmem %s3, 8
    %v2407 = vld [vmem:[%s2406] sm:$0xf]
    %v2408 = vpack.c.bf16 %v2391, %v2390
    %v2409 = vpack.c.bf16 %v2393, %v2392
    %v2410 = vpack.c.bf16 %v2395, %v2394
    %v2411 = vpack.c.bf16 %v2397, %v2396
    %v2412 = vpack.c.bf16 %v2399, %v2398
    %v2413 = vpack.c.bf16 %v2401, %v2400
    %v2414 = vpack.c.bf16 %v2403, %v2402
    %v2415 = vpack.c.bf16 %v2405, %v2404
    %2416 = vmatprep.subr.bf16.mxu0 0
    %2417 = vmatpush1.bf16.msra.mxu0 %v2408
    %2418 = vmatprep.subr.bf16.mxu0 0
    %2419 = vmatpush1.bf16.msra.mxu0 %v2409
    %2420 = vmatprep.subr.bf16.mxu0 0
    %2421 = vmatpush1.bf16.msra.mxu0 %v2410
    %2422 = vmatprep.subr.bf16.mxu0 0
    %2423 = vmatpush1.bf16.msra.mxu0 %v2411
    %2424 = vmatprep.subr.bf16.mxu0 0
    %2425 = vmatpush1.bf16.msra.mxu0 %v2412
    %2426 = vmatprep.subr.bf16.mxu0 0
    %2427 = vmatpush1.bf16.msra.mxu0 %v2413
    %2428 = vmatprep.subr.bf16.mxu0 0
    %2429 = vmatpush1.bf16.msra.mxu0 %v2414
    %2430 = vmatprep.subr.bf16.mxu0 0
    %2431 = vmatpush1.bf16.msra.mxu0 %v2415
    %2432 = vmatprep.subr.bf16.mxu0 0
    %2433 = vmatpush1.bf16.msra.mxu0 0
    %2434 = vmatprep.subr.bf16.mxu0 0
    %2435 = vmatpush1.bf16.msra.mxu0 0
    %2436 = vmatprep.subr.bf16.mxu0 0
    %2437 = vmatpush1.bf16.msra.mxu0 0
    %2438 = vmatprep.subr.bf16.mxu0 0
    %2439 = vmatpush1.bf16.msra.mxu0 0
    %2440 = vmatprep.subr.bf16.mxu0 0
    %2441 = vmatpush1.bf16.msra.mxu0 0
    %2442 = vmatprep.subr.bf16.mxu0 0
    %2443 = vmatpush1.bf16.msra.mxu0 0
    %2444 = vmatprep.subr.bf16.mxu0 0
    %2445 = vmatpush1.bf16.msra.mxu0 0
    %2446 = vmatprep.subr.bf16.mxu0 0
    %2447 = vmatpush1.bf16.msra.mxu0 0
    %2448 = vmatprep.mubr.bf16.mxu0 0
    %2449 = vmatmul.mubr.bf16.gmra.mrb[0].mxu0 %v2407
    %v2450 = vpop.f32.mrb[0].mxu0
    %v2451 = vadd.f32 0.0, %v2450
    %v2452 = vpop.f32.mrb[0].mxu0
    %v2453 = vpop.f32.mrb[0].mxu0
    %v2454 = vpop.f32.mrb[0].mxu0
    %2455 = vdwg.mxu0
    %s2456 = sld [smem:[#allocation2 + $0x100]]
    %v2457 = vstv %s2456
    %v2458 = vadd.f32 %v2451, %v2457
    %v2459 = vtanh.pop %v2458
    %s2460 = sld [smem:[#allocation2 + $0x101]]
    %v2461 = vstv %s2460
    %v2462 = vadd.f32 %v2451, %v2461
    %v2464 = vrot.slane %v2462, 1
    %v2466 = vsub.f32 %v1284, %v2464
    %v2467 = vsub.f32 0.0, %v2459
    %v2468 = vmul.f32 %v2467, 1.442695
    %v2469 = vpow.pop %v2468
    %v2470 = vmul.f32 %v2466, %v2469
    %v2471 = vsub.f32 %v1878, %v2459
    %s2472 = scalar_lea.vmem %s4, 128
    %v2473 = vld [vmem:[%s2472] sm:$0xff]
    %v2474 = vld [vmem:[%s2472 + $0x8] sm:$0xff]
    %v2475 = vld [vmem:[%s2472 + $0x10] sm:$0xff]
    %v2476 = vld [vmem:[%s2472 + $0x18] sm:$0xff]
    %v2477 = vld [vmem:[%s2472 + $0x20] sm:$0xff]
    %v2478 = vld [vmem:[%s2472 + $0x28] sm:$0xff]
    %v2479 = vld [vmem:[%s2472 + $0x30] sm:$0xff]
    %v2480 = vld [vmem:[%s2472 + $0x38] sm:$0xff]
    %v2481 = vld [vmem:[%s2472 + $0x40] sm:$0xff]
    %v2482 = vld [vmem:[%s2472 + $0x48] sm:$0xff]
    %v2483 = vld [vmem:[%s2472 + $0x50] sm:$0xff]
    %v2484 = vld [vmem:[%s2472 + $0x58] sm:$0xff]
    %v2485 = vld [vmem:[%s2472 + $0x60] sm:$0xff]
    %v2486 = vld [vmem:[%s2472 + $0x68] sm:$0xff]
    %v2487 = vld [vmem:[%s2472 + $0x70] sm:$0xff]
    %v2488 = vld [vmem:[%s2472 + $0x78] sm:$0xff]
    %2490 = vset.pattern.permute.xlu0 0
    %2491 = vperm.xlu0 %2490, %v2473
    %v2492 = vpop.permute.xlu0 %2491
    %2495 = vset.pattern.permute.xlu0 0
    %2496 = vperm.xlu0 %2495, %v2474
    %v2497 = vpop.permute.xlu0 %2496
    %2500 = vset.pattern.permute.xlu0 0
    %2501 = vperm.xlu0 %2500, %v2475
    %v2502 = vpop.permute.xlu0 %2501
    %2505 = vset.pattern.permute.xlu0 0
    %2506 = vperm.xlu0 %2505, %v2476
    %v2507 = vpop.permute.xlu0 %2506
    %2510 = vset.pattern.permute.xlu0 0
    %2511 = vperm.xlu0 %2510, %v2477
    %v2512 = vpop.permute.xlu0 %2511
    %2515 = vset.pattern.permute.xlu0 0
    %2516 = vperm.xlu0 %2515, %v2478
    %v2517 = vpop.permute.xlu0 %2516
    %2520 = vset.pattern.permute.xlu0 0
    %2521 = vperm.xlu0 %2520, %v2479
    %v2522 = vpop.permute.xlu0 %2521
    %2525 = vset.pattern.permute.xlu0 0
    %2526 = vperm.xlu0 %2525, %v2480
    %v2527 = vpop.permute.xlu0 %2526
    %2530 = vset.pattern.permute.xlu0 0
    %2531 = vperm.xlu0 %2530, %v2481
    %v2532 = vpop.permute.xlu0 %2531
    %2535 = vset.pattern.permute.xlu0 0
    %2536 = vperm.xlu0 %2535, %v2482
    %v2537 = vpop.permute.xlu0 %2536
    %2540 = vset.pattern.permute.xlu0 0
    %2541 = vperm.xlu0 %2540, %v2483
    %v2542 = vpop.permute.xlu0 %2541
    %2545 = vset.pattern.permute.xlu0 0
    %2546 = vperm.xlu0 %2545, %v2484
    %v2547 = vpop.permute.xlu0 %2546
    %2550 = vset.pattern.permute.xlu0 0
    %2551 = vperm.xlu0 %2550, %v2485
    %v2552 = vpop.permute.xlu0 %2551
    %2555 = vset.pattern.permute.xlu0 0
    %2556 = vperm.xlu0 %2555, %v2486
    %v2557 = vpop.permute.xlu0 %2556
    %2560 = vset.pattern.permute.xlu0 0
    %2561 = vperm.xlu0 %2560, %v2487
    %v2562 = vpop.permute.xlu0 %2561
    %2565 = vset.pattern.permute.xlu0 0
    %2566 = vperm.xlu0 %2565, %v2488
    %v2567 = vpop.permute.xlu0 %2566
    %v2569 = vlaneseq
    %v2570 = vshrl.u32 %v2569, 7
    %v2571 = vsub.s32 0, %v2570
    %v2572 = vrot.slane %v2470, %v2571
    %v2573 = vmul.f32 %v2492, %v2572
    %v2574 = vmul.f32 %v2497, %v2572
    %v2575 = vmul.f32 %v2502, %v2572
    %v2576 = vmul.f32 %v2507, %v2572
    %v2577 = vmul.f32 %v2512, %v2572
    %v2578 = vmul.f32 %v2517, %v2572
    %v2579 = vmul.f32 %v2522, %v2572
    %v2580 = vmul.f32 %v2527, %v2572
    %v2581 = vmul.f32 %v2532, %v2572
    %v2582 = vmul.f32 %v2537, %v2572
    %v2583 = vmul.f32 %v2542, %v2572
    %v2584 = vmul.f32 %v2547, %v2572
    %v2585 = vmul.f32 %v2552, %v2572
    %v2586 = vmul.f32 %v2557, %v2572
    %v2587 = vmul.f32 %v2562, %v2572
    %v2588 = vmul.f32 %v2567, %v2572
    %2589 = vset.pattern.permute.xlu0 1
    %2590 = vperm.xlu0 %2589, %v2473
    %v2591 = vpop.permute.xlu0 %2590
    %2593 = vset.pattern.permute.xlu0 1
    %2594 = vperm.xlu0 %2593, %v2474
    %v2595 = vpop.permute.xlu0 %2594
    %2597 = vset.pattern.permute.xlu0 1
    %2598 = vperm.xlu0 %2597, %v2475
    %v2599 = vpop.permute.xlu0 %2598
    %2601 = vset.pattern.permute.xlu0 1
    %2602 = vperm.xlu0 %2601, %v2476
    %v2603 = vpop.permute.xlu0 %2602
    %2605 = vset.pattern.permute.xlu0 1
    %2606 = vperm.xlu0 %2605, %v2477
    %v2607 = vpop.permute.xlu0 %2606
    %2609 = vset.pattern.permute.xlu0 1
    %2610 = vperm.xlu0 %2609, %v2478
    %v2611 = vpop.permute.xlu0 %2610
    %2613 = vset.pattern.permute.xlu0 1
    %2614 = vperm.xlu0 %2613, %v2479
    %v2615 = vpop.permute.xlu0 %2614
    %2617 = vset.pattern.permute.xlu0 1
    %2618 = vperm.xlu0 %2617, %v2480
    %v2619 = vpop.permute.xlu0 %2618
    %2621 = vset.pattern.permute.xlu0 1
    %2622 = vperm.xlu0 %2621, %v2481
    %v2623 = vpop.permute.xlu0 %2622
    %2625 = vset.pattern.permute.xlu0 1
    %2626 = vperm.xlu0 %2625, %v2482
    %v2627 = vpop.permute.xlu0 %2626
    %2629 = vset.pattern.permute.xlu0 1
    %2630 = vperm.xlu0 %2629, %v2483
    %v2631 = vpop.permute.xlu0 %2630
    %2633 = vset.pattern.permute.xlu0 1
    %2634 = vperm.xlu0 %2633, %v2484
    %v2635 = vpop.permute.xlu0 %2634
    %2637 = vset.pattern.permute.xlu0 1
    %2638 = vperm.xlu0 %2637, %v2485
    %v2639 = vpop.permute.xlu0 %2638
    %2641 = vset.pattern.permute.xlu0 1
    %2642 = vperm.xlu0 %2641, %v2486
    %v2643 = vpop.permute.xlu0 %2642
    %2645 = vset.pattern.permute.xlu0 1
    %2646 = vperm.xlu0 %2645, %v2487
    %v2647 = vpop.permute.xlu0 %2646
    %2649 = vset.pattern.permute.xlu0 1
    %2650 = vperm.xlu0 %2649, %v2488
    %v2651 = vpop.permute.xlu0 %2650
    %v2653 = vadd.f32 %v2573, %v2591
    %v2654 = vadd.f32 %v2574, %v2595
    %v2655 = vadd.f32 %v2575, %v2599
    %v2656 = vadd.f32 %v2576, %v2603
    %v2657 = vadd.f32 %v2577, %v2607
    %v2658 = vadd.f32 %v2578, %v2611
    %v2659 = vadd.f32 %v2579, %v2615
    %v2660 = vadd.f32 %v2580, %v2619
    %v2661 = vadd.f32 %v2581, %v2623
    %v2662 = vadd.f32 %v2582, %v2627
    %v2663 = vadd.f32 %v2583, %v2631
    %v2664 = vadd.f32 %v2584, %v2635
    %v2665 = vadd.f32 %v2585, %v2639
    %v2666 = vadd.f32 %v2586, %v2643
    %v2667 = vadd.f32 %v2587, %v2647
    %v2668 = vadd.f32 %v2588, %v2651
    %vm2669 = vcmp.ge.f32.partialorder %v2653, 0.0
    %vm2670 = vcmp.ge.f32.partialorder %v2654, 0.0
    %vm2671 = vcmp.ge.f32.partialorder %v2655, 0.0
    %vm2672 = vcmp.ge.f32.partialorder %v2656, 0.0
    %vm2673 = vcmp.ge.f32.partialorder %v2657, 0.0
    %vm2674 = vcmp.ge.f32.partialorder %v2658, 0.0
    %vm2675 = vcmp.ge.f32.partialorder %v2659, 0.0
    %vm2676 = vcmp.ge.f32.partialorder %v2660, 0.0
    %vm2677 = vcmp.ge.f32.partialorder %v2661, 0.0
    %vm2678 = vcmp.ge.f32.partialorder %v2662, 0.0
    %vm2679 = vcmp.ge.f32.partialorder %v2663, 0.0
    %vm2680 = vcmp.ge.f32.partialorder %v2664, 0.0
    %vm2681 = vcmp.ge.f32.partialorder %v2665, 0.0
    %vm2682 = vcmp.ge.f32.partialorder %v2666, 0.0
    %vm2683 = vcmp.ge.f32.partialorder %v2667, 0.0
    %vm2684 = vcmp.ge.f32.partialorder %v2668, 0.0
    %v2685 = vmul.f32 %v2653, 0.01
    %v2686 = vmul.f32 %v2654, 0.01
    %v2687 = vmul.f32 %v2655, 0.01
    %v2688 = vmul.f32 %v2656, 0.01
    %v2689 = vmul.f32 %v2657, 0.01
    %v2690 = vmul.f32 %v2658, 0.01
    %v2691 = vmul.f32 %v2659, 0.01
    %v2692 = vmul.f32 %v2660, 0.01
    %v2693 = vmul.f32 %v2661, 0.01
    %v2694 = vmul.f32 %v2662, 0.01
    %v2695 = vmul.f32 %v2663, 0.01
    %v2696 = vmul.f32 %v2664, 0.01
    %v2697 = vmul.f32 %v2665, 0.01
    %v2698 = vmul.f32 %v2666, 0.01
    %v2699 = vmul.f32 %v2667, 0.01
    %v2700 = vmul.f32 %v2668, 0.01
    %v2701 = vsel %vm2669, %v2653, %v2685
    %v2702 = vsel %vm2670, %v2654, %v2686
    %v2703 = vsel %vm2671, %v2655, %v2687
    %v2704 = vsel %vm2672, %v2656, %v2688
    %v2705 = vsel %vm2673, %v2657, %v2689
    %v2706 = vsel %vm2674, %v2658, %v2690
    %v2707 = vsel %vm2675, %v2659, %v2691
    %v2708 = vsel %vm2676, %v2660, %v2692
    %v2709 = vsel %vm2677, %v2661, %v2693
    %v2710 = vsel %vm2678, %v2662, %v2694
    %v2711 = vsel %vm2679, %v2663, %v2695
    %v2712 = vsel %vm2680, %v2664, %v2696
    %v2713 = vsel %vm2681, %v2665, %v2697
    %v2714 = vsel %vm2682, %v2666, %v2698
    %v2715 = vsel %vm2683, %v2667, %v2699
    %v2716 = vsel %vm2684, %v2668, %v2700
    %s2717 = scalar_lea.vmem %s2, 64
    %v2718 = vld [vmem:[%s2717] sm:$0xf]
    %v2719 = vld [vmem:[%s2717 + $0x4] sm:$0xf]
    %v2720 = vld [vmem:[%s2717 + $0x8] sm:$0xf]
    %v2721 = vld [vmem:[%s2717 + $0xc] sm:$0xf]
    %v2722 = vld [vmem:[%s2717 + $0x10] sm:$0xf]
    %v2723 = vld [vmem:[%s2717 + $0x14] sm:$0xf]
    %v2724 = vld [vmem:[%s2717 + $0x18] sm:$0xf]
    %v2725 = vld [vmem:[%s2717 + $0x1c] sm:$0xf]
    %v2726 = vld [vmem:[%s2717 + $0x20] sm:$0xf]
    %v2727 = vld [vmem:[%s2717 + $0x24] sm:$0xf]
    %v2728 = vld [vmem:[%s2717 + $0x28] sm:$0xf]
    %v2729 = vld [vmem:[%s2717 + $0x2c] sm:$0xf]
    %v2730 = vld [vmem:[%s2717 + $0x30] sm:$0xf]
    %v2731 = vld [vmem:[%s2717 + $0x34] sm:$0xf]
    %v2732 = vld [vmem:[%s2717 + $0x38] sm:$0xf]
    %v2733 = vld [vmem:[%s2717 + $0x3c] sm:$0xf]
    %v2734 = vpack.c.bf16 %v2702, %v2701
    %v2735 = vpack.c.bf16 %v2704, %v2703
    %v2736 = vpack.c.bf16 %v2706, %v2705
    %v2737 = vpack.c.bf16 %v2708, %v2707
    %v2738 = vpack.c.bf16 %v2710, %v2709
    %v2739 = vpack.c.bf16 %v2712, %v2711
    %v2740 = vpack.c.bf16 %v2714, %v2713
    %v2741 = vpack.c.bf16 %v2716, %v2715
    %2742 = vset.pattern.permute.xlu0 2
    %2743 = vperm.xlu0 %2742, %v2473
    %v2744 = vpop.permute.xlu0 %2743
    %2746 = vset.pattern.permute.xlu0 2
    %2747 = vperm.xlu0 %2746, %v2474
    %v2748 = vpop.permute.xlu0 %2747
    %2750 = vset.pattern.permute.xlu0 2
    %2751 = vperm.xlu0 %2750, %v2475
    %v2752 = vpop.permute.xlu0 %2751
    %2754 = vset.pattern.permute.xlu0 2
    %2755 = vperm.xlu0 %2754, %v2476
    %v2756 = vpop.permute.xlu0 %2755
    %2758 = vset.pattern.permute.xlu0 2
    %2759 = vperm.xlu0 %2758, %v2477
    %v2760 = vpop.permute.xlu0 %2759
    %2762 = vset.pattern.permute.xlu0 2
    %2763 = vperm.xlu0 %2762, %v2478
    %v2764 = vpop.permute.xlu0 %2763
    %2766 = vset.pattern.permute.xlu0 2
    %2767 = vperm.xlu0 %2766, %v2479
    %v2768 = vpop.permute.xlu0 %2767
    %2770 = vset.pattern.permute.xlu0 2
    %2771 = vperm.xlu0 %2770, %v2480
    %v2772 = vpop.permute.xlu0 %2771
    %2774 = vset.pattern.permute.xlu0 2
    %2775 = vperm.xlu0 %2774, %v2481
    %v2776 = vpop.permute.xlu0 %2775
    %2778 = vset.pattern.permute.xlu0 2
    %2779 = vperm.xlu0 %2778, %v2482
    %v2780 = vpop.permute.xlu0 %2779
    %2782 = vset.pattern.permute.xlu0 2
    %2783 = vperm.xlu0 %2782, %v2483
    %v2784 = vpop.permute.xlu0 %2783
    %2786 = vset.pattern.permute.xlu0 2
    %2787 = vperm.xlu0 %2786, %v2484
    %v2788 = vpop.permute.xlu0 %2787
    %2790 = vset.pattern.permute.xlu0 2
    %2791 = vperm.xlu0 %2790, %v2485
    %v2792 = vpop.permute.xlu0 %2791
    %2794 = vset.pattern.permute.xlu0 2
    %2795 = vperm.xlu0 %2794, %v2486
    %v2796 = vpop.permute.xlu0 %2795
    %2798 = vset.pattern.permute.xlu0 2
    %2799 = vperm.xlu0 %2798, %v2487
    %v2800 = vpop.permute.xlu0 %2799
    %2802 = vset.pattern.permute.xlu0 2
    %2803 = vperm.xlu0 %2802, %v2488
    %v2804 = vpop.permute.xlu0 %2803
    %v2822 = vunpack.c.l.b16 %v2718
    %v2823 = vunpack.c.l.b16 %v2719
    %v2824 = vunpack.c.l.b16 %v2720
    %v2825 = vunpack.c.l.b16 %v2721
    %v2826 = vunpack.c.l.b16 %v2722
    %v2827 = vunpack.c.l.b16 %v2723
    %v2828 = vunpack.c.l.b16 %v2724
    %v2829 = vunpack.c.l.b16 %v2725
    %v2830 = vunpack.c.l.b16 %v2726
    %v2831 = vunpack.c.l.b16 %v2727
    %v2832 = vunpack.c.l.b16 %v2728
    %v2833 = vunpack.c.l.b16 %v2729
    %v2834 = vunpack.c.l.b16 %v2730
    %v2835 = vunpack.c.l.b16 %v2731
    %v2836 = vunpack.c.l.b16 %v2732
    %v2837 = vunpack.c.l.b16 %v2733
    %v2838 = vpack.c.b16 %v2823, %v2822
    %v2839 = vpack.c.b16 %v2825, %v2824
    %v2840 = vpack.c.b16 %v2827, %v2826
    %v2841 = vpack.c.b16 %v2829, %v2828
    %v2842 = vpack.c.b16 %v2831, %v2830
    %v2843 = vpack.c.b16 %v2833, %v2832
    %v2844 = vpack.c.b16 %v2835, %v2834
    %v2845 = vpack.c.b16 %v2837, %v2836
    %2854 = vmatprep.subr.bf16.mxu0 0
    %2855 = vmatpush1.bf16.msra.mxu0 %v2734
    %2856 = vmatprep.subr.bf16.mxu0 0
    %2857 = vmatpush1.bf16.msra.mxu0 %v2735
    %2858 = vmatprep.subr.bf16.mxu0 0
    %2859 = vmatpush1.bf16.msra.mxu0 %v2736
    %2860 = vmatprep.subr.bf16.mxu0 0
    %2861 = vmatpush1.bf16.msra.mxu0 %v2737
    %2862 = vmatprep.subr.bf16.mxu0 0
    %2863 = vmatpush1.bf16.msra.mxu0 %v2738
    %2864 = vmatprep.subr.bf16.mxu0 0
    %2865 = vmatpush1.bf16.msra.mxu0 %v2739
    %2866 = vmatprep.subr.bf16.mxu0 0
    %2867 = vmatpush1.bf16.msra.mxu0 %v2740
    %2868 = vmatprep.subr.bf16.mxu0 0
    %2869 = vmatpush1.bf16.msra.mxu0 %v2741
    %2870 = vmatprep.subr.bf16.mxu0 0
    %2871 = vmatpush1.bf16.msra.mxu0 0
    %2872 = vmatprep.subr.bf16.mxu0 0
    %2873 = vmatpush1.bf16.msra.mxu0 0
    %2874 = vmatprep.subr.bf16.mxu0 0
    %2875 = vmatpush1.bf16.msra.mxu0 0
    %2876 = vmatprep.subr.bf16.mxu0 0
    %2877 = vmatpush1.bf16.msra.mxu0 0
    %2878 = vmatprep.subr.bf16.mxu0 0
    %2879 = vmatpush1.bf16.msra.mxu0 0
    %2880 = vmatprep.subr.bf16.mxu0 0
    %2881 = vmatpush1.bf16.msra.mxu0 0
    %2882 = vmatprep.subr.bf16.mxu0 0
    %2883 = vmatpush1.bf16.msra.mxu0 0
    %2884 = vmatprep.subr.bf16.mxu0 0
    %2885 = vmatpush1.bf16.msra.mxu0 0
    %2886 = vmatprep.mubr.bf16.mxu0 0
    %2887 = vmatmul.mubr.bf16.gmra.mrb[0].mxu0 %v2838
    %v2888 = vpop.f32.mrb[0].mxu0
    %v2889 = vadd.f32 %v2744, %v2888
    %v2890 = vpop.f32.mrb[0].mxu0
    %v2891 = vpop.f32.mrb[0].mxu0
    %v2892 = vadd.f32 %v2748, %v2891
    %v2893 = vpop.f32.mrb[0].mxu0
    %2894 = vmatprep.mubr.bf16.mxu0 0
    %2895 = vmatmul.mubr.bf16.gmra.mrb[0].mxu0 %v2839
    %v2896 = vpop.f32.mrb[0].mxu0
    %v2897 = vadd.f32 %v2752, %v2896
    %v2898 = vpop.f32.mrb[0].mxu0
    %v2899 = vpop.f32.mrb[0].mxu0
    %v2900 = vadd.f32 %v2756, %v2899
    %v2901 = vpop.f32.mrb[0].mxu0
    %2902 = vmatprep.mubr.bf16.mxu0 0
    %2903 = vmatmul.mubr.bf16.gmra.mrb[0].mxu0 %v2840
    %v2904 = vpop.f32.mrb[0].mxu0
    %v2905 = vadd.f32 %v2760, %v2904
    %v2906 = vpop.f32.mrb[0].mxu0
    %v2907 = vpop.f32.mrb[0].mxu0
    %v2908 = vadd.f32 %v2764, %v2907
    %v2909 = vpop.f32.mrb[0].mxu0
    %2910 = vmatprep.mubr.bf16.mxu0 0
    %2911 = vmatmul.mubr.bf16.gmra.mrb[0].mxu0 %v2841
    %v2912 = vpop.f32.mrb[0].mxu0
    %v2913 = vadd.f32 %v2768, %v2912
    %v2914 = vpop.f32.mrb[0].mxu0
    %v2915 = vpop.f32.mrb[0].mxu0
    %v2916 = vadd.f32 %v2772, %v2915
    %v2917 = vpop.f32.mrb[0].mxu0
    %2918 = vmatprep.mubr.bf16.mxu0 0
    %2919 = vmatmul.mubr.bf16.gmra.mrb[0].mxu0 %v2842
    %v2920 = vpop.f32.mrb[0].mxu0
    %v2921 = vadd.f32 %v2776, %v2920
    %v2922 = vpop.f32.mrb[0].mxu0
    %v2923 = vpop.f32.mrb[0].mxu0
    %v2924 = vadd.f32 %v2780, %v2923
    %v2925 = vpop.f32.mrb[0].mxu0
    %2926 = vmatprep.mubr.bf16.mxu0 0
    %2927 = vmatmul.mubr.bf16.gmra.mrb[0].mxu0 %v2843
    %v2928 = vpop.f32.mrb[0].mxu0
    %v2929 = vadd.f32 %v2784, %v2928
    %v2930 = vpop.f32.mrb[0].mxu0
    %v2931 = vpop.f32.mrb[0].mxu0
    %v2932 = vadd.f32 %v2788, %v2931
    %v2933 = vpop.f32.mrb[0].mxu0
    %2934 = vmatprep.mubr.bf16.mxu0 0
    %2935 = vmatmul.mubr.bf16.gmra.mrb[0].mxu0 %v2844
    %v2936 = vpop.f32.mrb[0].mxu0
    %v2937 = vadd.f32 %v2792, %v2936
    %v2938 = vpop.f32.mrb[0].mxu0
    %v2939 = vpop.f32.mrb[0].mxu0
    %v2940 = vadd.f32 %v2796, %v2939
    %v2941 = vpop.f32.mrb[0].mxu0
    %2942 = vmatprep.mubr.bf16.mxu0 0
    %2943 = vmatmul.mubr.bf16.gmra.mrb[0].mxu0 %v2845
    %v2944 = vpop.f32.mrb[0].mxu0
    %v2945 = vadd.f32 %v2800, %v2944
    %v2946 = vpop.f32.mrb[0].mxu0
    %v2947 = vpop.f32.mrb[0].mxu0
    %v2948 = vadd.f32 %v2804, %v2947
    %v2949 = vpop.f32.mrb[0].mxu0
    %2950 = vdwg.mxu0
    %vm2951 = vcmp.ge.f32.partialorder %v2889, 0.0
    %vm2952 = vcmp.ge.f32.partialorder %v2892, 0.0
    %vm2953 = vcmp.ge.f32.partialorder %v2897, 0.0
    %vm2954 = vcmp.ge.f32.partialorder %v2900, 0.0
    %vm2955 = vcmp.ge.f32.partialorder %v2905, 0.0
    %vm2956 = vcmp.ge.f32.partialorder %v2908, 0.0
    %vm2957 = vcmp.ge.f32.partialorder %v2913, 0.0
    %vm2958 = vcmp.ge.f32.partialorder %v2916, 0.0
    %vm2959 = vcmp.ge.f32.partialorder %v2921, 0.0
    %vm2960 = vcmp.ge.f32.partialorder %v2924, 0.0
    %vm2961 = vcmp.ge.f32.partialorder %v2929, 0.0
    %vm2962 = vcmp.ge.f32.partialorder %v2932, 0.0
    %vm2963 = vcmp.ge.f32.partialorder %v2937, 0.0
    %vm2964 = vcmp.ge.f32.partialorder %v2940, 0.0
    %vm2965 = vcmp.ge.f32.partialorder %v2945, 0.0
    %vm2966 = vcmp.ge.f32.partialorder %v2948, 0.0
    %v2967 = vmul.f32 %v2889, 0.01
    %v2968 = vmul.f32 %v2892, 0.01
    %v2969 = vmul.f32 %v2897, 0.01
    %v2970 = vmul.f32 %v2900, 0.01
    %v2971 = vmul.f32 %v2905, 0.01
    %v2972 = vmul.f32 %v2908, 0.01
    %v2973 = vmul.f32 %v2913, 0.01
    %v2974 = vmul.f32 %v2916, 0.01
    %v2975 = vmul.f32 %v2921, 0.01
    %v2976 = vmul.f32 %v2924, 0.01
    %v2977 = vmul.f32 %v2929, 0.01
    %v2978 = vmul.f32 %v2932, 0.01
    %v2979 = vmul.f32 %v2937, 0.01
    %v2980 = vmul.f32 %v2940, 0.01
    %v2981 = vmul.f32 %v2945, 0.01
    %v2982 = vmul.f32 %v2948, 0.01
    %v2983 = vsel %vm2951, %v2889, %v2967
    %v2984 = vsel %vm2952, %v2892, %v2968
    %v2985 = vsel %vm2953, %v2897, %v2969
    %v2986 = vsel %vm2954, %v2900, %v2970
    %v2987 = vsel %vm2955, %v2905, %v2971
    %v2988 = vsel %vm2956, %v2908, %v2972
    %v2989 = vsel %vm2957, %v2913, %v2973
    %v2990 = vsel %vm2958, %v2916, %v2974
    %v2991 = vsel %vm2959, %v2921, %v2975
    %v2992 = vsel %vm2960, %v2924, %v2976
    %v2993 = vsel %vm2961, %v2929, %v2977
    %v2994 = vsel %vm2962, %v2932, %v2978
    %v2995 = vsel %vm2963, %v2937, %v2979
    %v2996 = vsel %vm2964, %v2940, %v2980
    %v2997 = vsel %vm2965, %v2945, %v2981
    %v2998 = vsel %vm2966, %v2948, %v2982
    %s2999 = scalar_lea.vmem %s3, 4
    %v3000 = vld [vmem:[%s2999] sm:$0xf]
    %v3001 = vpack.c.bf16 %v2984, %v2983
    %v3002 = vpack.c.bf16 %v2986, %v2985
    %v3003 = vpack.c.bf16 %v2988, %v2987
    %v3004 = vpack.c.bf16 %v2990, %v2989
    %v3005 = vpack.c.bf16 %v2992, %v2991
    %v3006 = vpack.c.bf16 %v2994, %v2993
    %v3007 = vpack.c.bf16 %v2996, %v2995
    %v3008 = vpack.c.bf16 %v2998, %v2997
    %3009 = vmatprep.subr.bf16.mxu0 0
    %3010 = vmatpush1.bf16.msra.mxu0 %v3001
    %3011 = vmatprep.subr.bf16.mxu0 0
    %3012 = vmatpush1.bf16.msra.mxu0 %v3002
    %3013 = vmatprep.subr.bf16.mxu0 0
    %3014 = vmatpush1.bf16.msra.mxu0 %v3003
    %3015 = vmatprep.subr.bf16.mxu0 0
    %3016 = vmatpush1.bf16.msra.mxu0 %v3004
    %3017 = vmatprep.subr.bf16.mxu0 0
    %3018 = vmatpush1.bf16.msra.mxu0 %v3005
    %3019 = vmatprep.subr.bf16.mxu0 0
    %3020 = vmatpush1.bf16.msra.mxu0 %v3006
    %3021 = vmatprep.subr.bf16.mxu0 0
    %3022 = vmatpush1.bf16.msra.mxu0 %v3007
    %3023 = vmatprep.subr.bf16.mxu0 0
    %3024 = vmatpush1.bf16.msra.mxu0 %v3008
    %3025 = vmatprep.subr.bf16.mxu0 0
    %3026 = vmatpush1.bf16.msra.mxu0 0
    %3027 = vmatprep.subr.bf16.mxu0 0
    %3028 = vmatpush1.bf16.msra.mxu0 0
    %3029 = vmatprep.subr.bf16.mxu0 0
    %3030 = vmatpush1.bf16.msra.mxu0 0
    %3031 = vmatprep.subr.bf16.mxu0 0
    %3032 = vmatpush1.bf16.msra.mxu0 0
    %3033 = vmatprep.subr.bf16.mxu0 0
    %3034 = vmatpush1.bf16.msra.mxu0 0
    %3035 = vmatprep.subr.bf16.mxu0 0
    %3036 = vmatpush1.bf16.msra.mxu0 0
    %3037 = vmatprep.subr.bf16.mxu0 0
    %3038 = vmatpush1.bf16.msra.mxu0 0
    %3039 = vmatprep.subr.bf16.mxu0 0
    %3040 = vmatpush1.bf16.msra.mxu0 0
    %3041 = vmatprep.mubr.bf16.mxu0 0
    %3042 = vmatmul.mubr.bf16.gmra.mrb[0].mxu0 %v3000
    %v3043 = vpop.f32.mrb[0].mxu0
    %v3044 = vadd.f32 0.0, %v3043
    %v3045 = vpop.f32.mrb[0].mxu0
    %v3046 = vpop.f32.mrb[0].mxu0
    %v3047 = vpop.f32.mrb[0].mxu0
    %3048 = vdwg.mxu0
    %s3049 = sld [smem:[#allocation2 + $0x80]]
    %v3050 = vstv %s3049
    %v3051 = vadd.f32 %v3044, %v3050
    %v3052 = vtanh.pop %v3051
    %s3053 = sld [smem:[#allocation2 + $0x81]]
    %v3054 = vstv %s3053
    %v3055 = vadd.f32 %v3044, %v3054
    %v3056 = vsub.f32 %v1877, %v3055
    %v3057 = vsub.f32 0.0, %v3052
    %v3058 = vmul.f32 %v3057, 1.442695
    %v3059 = vpow.pop %v3058
    %v3061 = vrot.slane %v3059, 7
    %v3063 = vmul.f32 %v3056, %v3061
    %v3064 = vsub.f32 %v2471, %v3052
    %v3065 = vld [vmem:[%s4] sm:$0xff]
    %v3066 = vld [vmem:[%s4 + $0x8] sm:$0xff]
    %v3067 = vld [vmem:[%s4 + $0x10] sm:$0xff]
    %v3068 = vld [vmem:[%s4 + $0x18] sm:$0xff]
    %v3069 = vld [vmem:[%s4 + $0x20] sm:$0xff]
    %v3070 = vld [vmem:[%s4 + $0x28] sm:$0xff]
    %v3071 = vld [vmem:[%s4 + $0x30] sm:$0xff]
    %v3072 = vld [vmem:[%s4 + $0x38] sm:$0xff]
    %v3073 = vld [vmem:[%s4 + $0x40] sm:$0xff]
    %v3074 = vld [vmem:[%s4 + $0x48] sm:$0xff]
    %v3075 = vld [vmem:[%s4 + $0x50] sm:$0xff]
    %v3076 = vld [vmem:[%s4 + $0x58] sm:$0xff]
    %v3077 = vld [vmem:[%s4 + $0x60] sm:$0xff]
    %v3078 = vld [vmem:[%s4 + $0x68] sm:$0xff]
    %v3079 = vld [vmem:[%s4 + $0x70] sm:$0xff]
    %v3080 = vld [vmem:[%s4 + $0x78] sm:$0xff]
    %3082 = vset.pattern.permute.xlu0 0
    %3083 = vperm.xlu0 %3082, %v3065
    %v3084 = vpop.permute.xlu0 %3083
    %3087 = vset.pattern.permute.xlu0 0
    %3088 = vperm.xlu0 %3087, %v3066
    %v3089 = vpop.permute.xlu0 %3088
    %3092 = vset.pattern.permute.xlu0 0
    %3093 = vperm.xlu0 %3092, %v3067
    %v3094 = vpop.permute.xlu0 %3093
    %3097 = vset.pattern.permute.xlu0 0
    %3098 = vperm.xlu0 %3097, %v3068
    %v3099 = vpop.permute.xlu0 %3098
    %3102 = vset.pattern.permute.xlu0 0
    %3103 = vperm.xlu0 %3102, %v3069
    %v3104 = vpop.permute.xlu0 %3103
    %3107 = vset.pattern.permute.xlu0 0
    %3108 = vperm.xlu0 %3107, %v3070
    %v3109 = vpop.permute.xlu0 %3108
    %3112 = vset.pattern.permute.xlu0 0
    %3113 = vperm.xlu0 %3112, %v3071
    %v3114 = vpop.permute.xlu0 %3113
    %3117 = vset.pattern.permute.xlu0 0
    %3118 = vperm.xlu0 %3117, %v3072
    %v3119 = vpop.permute.xlu0 %3118
    %3122 = vset.pattern.permute.xlu0 0
    %3123 = vperm.xlu0 %3122, %v3073
    %v3124 = vpop.permute.xlu0 %3123
    %3127 = vset.pattern.permute.xlu0 0
    %3128 = vperm.xlu0 %3127, %v3074
    %v3129 = vpop.permute.xlu0 %3128
    %3132 = vset.pattern.permute.xlu0 0
    %3133 = vperm.xlu0 %3132, %v3075
    %v3134 = vpop.permute.xlu0 %3133
    %3137 = vset.pattern.permute.xlu0 0
    %3138 = vperm.xlu0 %3137, %v3076
    %v3139 = vpop.permute.xlu0 %3138
    %3142 = vset.pattern.permute.xlu0 0
    %3143 = vperm.xlu0 %3142, %v3077
    %v3144 = vpop.permute.xlu0 %3143
    %3147 = vset.pattern.permute.xlu0 0
    %3148 = vperm.xlu0 %3147, %v3078
    %v3149 = vpop.permute.xlu0 %3148
    %3152 = vset.pattern.permute.xlu0 0
    %3153 = vperm.xlu0 %3152, %v3079
    %v3154 = vpop.permute.xlu0 %3153
    %3157 = vset.pattern.permute.xlu0 0
    %3158 = vperm.xlu0 %3157, %v3080
    %v3159 = vpop.permute.xlu0 %3158
    %v3161 = vlaneseq
    %v3162 = vshrl.u32 %v3161, 7
    %v3163 = vsub.s32 1, %v3162
    %v3164 = vrot.slane %v3063, %v3163
    %v3165 = vmul.f32 %v3084, %v3164
    %v3166 = vmul.f32 %v3089, %v3164
    %v3167 = vmul.f32 %v3094, %v3164
    %v3168 = vmul.f32 %v3099, %v3164
    %v3169 = vmul.f32 %v3104, %v3164
    %v3170 = vmul.f32 %v3109, %v3164
    %v3171 = vmul.f32 %v3114, %v3164
    %v3172 = vmul.f32 %v3119, %v3164
    %v3173 = vmul.f32 %v3124, %v3164
    %v3174 = vmul.f32 %v3129, %v3164
    %v3175 = vmul.f32 %v3134, %v3164
    %v3176 = vmul.f32 %v3139, %v3164
    %v3177 = vmul.f32 %v3144, %v3164
    %v3178 = vmul.f32 %v3149, %v3164
    %v3179 = vmul.f32 %v3154, %v3164
    %v3180 = vmul.f32 %v3159, %v3164
    %3181 = vset.pattern.permute.xlu0 1
    %3182 = vperm.xlu0 %3181, %v3065
    %v3183 = vpop.permute.xlu0 %3182
    %3185 = vset.pattern.permute.xlu0 1
    %3186 = vperm.xlu0 %3185, %v3066
    %v3187 = vpop.permute.xlu0 %3186
    %3189 = vset.pattern.permute.xlu0 1
    %3190 = vperm.xlu0 %3189, %v3067
    %v3191 = vpop.permute.xlu0 %3190
    %3193 = vset.pattern.permute.xlu0 1
    %3194 = vperm.xlu0 %3193, %v3068
    %v3195 = vpop.permute.xlu0 %3194
    %3197 = vset.pattern.permute.xlu0 1
    %3198 = vperm.xlu0 %3197, %v3069
    %v3199 = vpop.permute.xlu0 %3198
    %3201 = vset.pattern.permute.xlu0 1
    %3202 = vperm.xlu0 %3201, %v3070
    %v3203 = vpop.permute.xlu0 %3202
    %3205 = vset.pattern.permute.xlu0 1
    %3206 = vperm.xlu0 %3205, %v3071
    %v3207 = vpop.permute.xlu0 %3206
    %3209 = vset.pattern.permute.xlu0 1
    %3210 = vperm.xlu0 %3209, %v3072
    %v3211 = vpop.permute.xlu0 %3210
    %3213 = vset.pattern.permute.xlu0 1
    %3214 = vperm.xlu0 %3213, %v3073
    %v3215 = vpop.permute.xlu0 %3214
    %3217 = vset.pattern.permute.xlu0 1
    %3218 = vperm.xlu0 %3217, %v3074
    %v3219 = vpop.permute.xlu0 %3218
    %3221 = vset.pattern.permute.xlu0 1
    %3222 = vperm.xlu0 %3221, %v3075
    %v3223 = vpop.permute.xlu0 %3222
    %3225 = vset.pattern.permute.xlu0 1
    %3226 = vperm.xlu0 %3225, %v3076
    %v3227 = vpop.permute.xlu0 %3226
    %3229 = vset.pattern.permute.xlu0 1
    %3230 = vperm.xlu0 %3229, %v3077
    %v3231 = vpop.permute.xlu0 %3230
    %3233 = vset.pattern.permute.xlu0 1
    %3234 = vperm.xlu0 %3233, %v3078
    %v3235 = vpop.permute.xlu0 %3234
    %3237 = vset.pattern.permute.xlu0 1
    %3238 = vperm.xlu0 %3237, %v3079
    %v3239 = vpop.permute.xlu0 %3238
    %3241 = vset.pattern.permute.xlu0 1
    %3242 = vperm.xlu0 %3241, %v3080
    %v3243 = vpop.permute.xlu0 %3242
    %v3245 = vadd.f32 %v3165, %v3183
    %v3246 = vadd.f32 %v3166, %v3187
    %v3247 = vadd.f32 %v3167, %v3191
    %v3248 = vadd.f32 %v3168, %v3195
    %v3249 = vadd.f32 %v3169, %v3199
    %v3250 = vadd.f32 %v3170, %v3203
    %v3251 = vadd.f32 %v3171, %v3207
    %v3252 = vadd.f32 %v3172, %v3211
    %v3253 = vadd.f32 %v3173, %v3215
    %v3254 = vadd.f32 %v3174, %v3219
    %v3255 = vadd.f32 %v3175, %v3223
    %v3256 = vadd.f32 %v3176, %v3227
    %v3257 = vadd.f32 %v3177, %v3231
    %v3258 = vadd.f32 %v3178, %v3235
    %v3259 = vadd.f32 %v3179, %v3239
    %v3260 = vadd.f32 %v3180, %v3243
    %vm3261 = vcmp.ge.f32.partialorder %v3245, 0.0
    %vm3262 = vcmp.ge.f32.partialorder %v3246, 0.0
    %vm3263 = vcmp.ge.f32.partialorder %v3247, 0.0
    %vm3264 = vcmp.ge.f32.partialorder %v3248, 0.0
    %vm3265 = vcmp.ge.f32.partialorder %v3249, 0.0
    %vm3266 = vcmp.ge.f32.partialorder %v3250, 0.0
    %vm3267 = vcmp.ge.f32.partialorder %v3251, 0.0
    %vm3268 = vcmp.ge.f32.partialorder %v3252, 0.0
    %vm3269 = vcmp.ge.f32.partialorder %v3253, 0.0
    %vm3270 = vcmp.ge.f32.partialorder %v3254, 0.0
    %vm3271 = vcmp.ge.f32.partialorder %v3255, 0.0
    %vm3272 = vcmp.ge.f32.partialorder %v3256, 0.0
    %vm3273 = vcmp.ge.f32.partialorder %v3257, 0.0
    %vm3274 = vcmp.ge.f32.partialorder %v3258, 0.0
    %vm3275 = vcmp.ge.f32.partialorder %v3259, 0.0
    %vm3276 = vcmp.ge.f32.partialorder %v3260, 0.0
    %v3277 = vmul.f32 %v3245, 0.01
    %v3278 = vmul.f32 %v3246, 0.01
    %v3279 = vmul.f32 %v3247, 0.01
    %v3280 = vmul.f32 %v3248, 0.01
    %v3281 = vmul.f32 %v3249, 0.01
    %v3282 = vmul.f32 %v3250, 0.01
    %v3283 = vmul.f32 %v3251, 0.01
    %v3284 = vmul.f32 %v3252, 0.01
    %v3285 = vmul.f32 %v3253, 0.01
    %v3286 = vmul.f32 %v3254, 0.01
    %v3287 = vmul.f32 %v3255, 0.01
    %v3288 = vmul.f32 %v3256, 0.01
    %v3289 = vmul.f32 %v3257, 0.01
    %v3290 = vmul.f32 %v3258, 0.01
    %v3291 = vmul.f32 %v3259, 0.01
    %v3292 = vmul.f32 %v3260, 0.01
    %v3293 = vsel %vm3261, %v3245, %v3277
    %v3294 = vsel %vm3262, %v3246, %v3278
    %v3295 = vsel %vm3263, %v3247, %v3279
    %v3296 = vsel %vm3264, %v3248, %v3280
    %v3297 = vsel %vm3265, %v3249, %v3281
    %v3298 = vsel %vm3266, %v3250, %v3282
    %v3299 = vsel %vm3267, %v3251, %v3283
    %v3300 = vsel %vm3268, %v3252, %v3284
    %v3301 = vsel %vm3269, %v3253, %v3285
    %v3302 = vsel %vm3270, %v3254, %v3286
    %v3303 = vsel %vm3271, %v3255, %v3287
    %v3304 = vsel %vm3272, %v3256, %v3288
    %v3305 = vsel %vm3273, %v3257, %v3289
    %v3306 = vsel %vm3274, %v3258, %v3290
    %v3307 = vsel %vm3275, %v3259, %v3291
    %v3308 = vsel %vm3276, %v3260, %v3292
    %v3309 = vld [vmem:[%s2] sm:$0xf]
    %v3310 = vld [vmem:[%s2 + $0x4] sm:$0xf]
    %v3311 = vld [vmem:[%s2 + $0x8] sm:$0xf]
    %v3312 = vld [vmem:[%s2 + $0xc] sm:$0xf]
    %v3313 = vld [vmem:[%s2 + $0x10] sm:$0xf]
    %v3314 = vld [vmem:[%s2 + $0x14] sm:$0xf]
    %v3315 = vld [vmem:[%s2 + $0x18] sm:$0xf]
    %v3316 = vld [vmem:[%s2 + $0x1c] sm:$0xf]
    %v3317 = vld [vmem:[%s2 + $0x20] sm:$0xf]
    %v3318 = vld [vmem:[%s2 + $0x24] sm:$0xf]
    %v3319 = vld [vmem:[%s2 + $0x28] sm:$0xf]
    %v3320 = vld [vmem:[%s2 + $0x2c] sm:$0xf]
    %v3321 = vld [vmem:[%s2 + $0x30] sm:$0xf]
    %v3322 = vld [vmem:[%s2 + $0x34] sm:$0xf]
    %v3323 = vld [vmem:[%s2 + $0x38] sm:$0xf]
    %v3324 = vld [vmem:[%s2 + $0x3c] sm:$0xf]
    %v3325 = vpack.c.bf16 %v3294, %v3293
    %v3326 = vpack.c.bf16 %v3296, %v3295
    %v3327 = vpack.c.bf16 %v3298, %v3297
    %v3328 = vpack.c.bf16 %v3300, %v3299
    %v3329 = vpack.c.bf16 %v3302, %v3301
    %v3330 = vpack.c.bf16 %v3304, %v3303
    %v3331 = vpack.c.bf16 %v3306, %v3305
    %v3332 = vpack.c.bf16 %v3308, %v3307
    %3333 = vset.pattern.permute.xlu0 2
    %3334 = vperm.xlu0 %3333, %v3065
    %v3335 = vpop.permute.xlu0 %3334
    %3337 = vset.pattern.permute.xlu0 2
    %3338 = vperm.xlu0 %3337, %v3066
    %v3339 = vpop.permute.xlu0 %3338
    %3341 = vset.pattern.permute.xlu0 2
    %3342 = vperm.xlu0 %3341, %v3067
    %v3343 = vpop.permute.xlu0 %3342
    %3345 = vset.pattern.permute.xlu0 2
    %3346 = vperm.xlu0 %3345, %v3068
    %v3347 = vpop.permute.xlu0 %3346
    %3349 = vset.pattern.permute.xlu0 2
    %3350 = vperm.xlu0 %3349, %v3069
    %v3351 = vpop.permute.xlu0 %3350
    %3353 = vset.pattern.permute.xlu0 2
    %3354 = vperm.xlu0 %3353, %v3070
    %v3355 = vpop.permute.xlu0 %3354
    %3357 = vset.pattern.permute.xlu0 2
    %3358 = vperm.xlu0 %3357, %v3071
    %v3359 = vpop.permute.xlu0 %3358
    %3361 = vset.pattern.permute.xlu0 2
    %3362 = vperm.xlu0 %3361, %v3072
    %v3363 = vpop.permute.xlu0 %3362
    %3365 = vset.pattern.permute.xlu0 2
    %3366 = vperm.xlu0 %3365, %v3073
    %v3367 = vpop.permute.xlu0 %3366
    %3369 = vset.pattern.permute.xlu0 2
    %3370 = vperm.xlu0 %3369, %v3074
    %v3371 = vpop.permute.xlu0 %3370
    %3373 = vset.pattern.permute.xlu0 2
    %3374 = vperm.xlu0 %3373, %v3075
    %v3375 = vpop.permute.xlu0 %3374
    %3377 = vset.pattern.permute.xlu0 2
    %3378 = vperm.xlu0 %3377, %v3076
    %v3379 = vpop.permute.xlu0 %3378
    %3381 = vset.pattern.permute.xlu0 2
    %3382 = vperm.xlu0 %3381, %v3077
    %v3383 = vpop.permute.xlu0 %3382
    %3385 = vset.pattern.permute.xlu0 2
    %3386 = vperm.xlu0 %3385, %v3078
    %v3387 = vpop.permute.xlu0 %3386
    %3389 = vset.pattern.permute.xlu0 2
    %3390 = vperm.xlu0 %3389, %v3079
    %v3391 = vpop.permute.xlu0 %3390
    %3393 = vset.pattern.permute.xlu0 2
    %3394 = vperm.xlu0 %3393, %v3080
    %v3395 = vpop.permute.xlu0 %3394
    %v3413 = vunpack.c.l.b16 %v3309
    %v3414 = vunpack.c.l.b16 %v3310
    %v3415 = vunpack.c.l.b16 %v3311
    %v3416 = vunpack.c.l.b16 %v3312
    %v3417 = vunpack.c.l.b16 %v3313
    %v3418 = vunpack.c.l.b16 %v3314
    %v3419 = vunpack.c.l.b16 %v3315
    %v3420 = vunpack.c.l.b16 %v3316
    %v3421 = vunpack.c.l.b16 %v3317
    %v3422 = vunpack.c.l.b16 %v3318
    %v3423 = vunpack.c.l.b16 %v3319
    %v3424 = vunpack.c.l.b16 %v3320
    %v3425 = vunpack.c.l.b16 %v3321
    %v3426 = vunpack.c.l.b16 %v3322
    %v3427 = vunpack.c.l.b16 %v3323
    %v3428 = vunpack.c.l.b16 %v3324
    %v3429 = vpack.c.b16 %v3414, %v3413
    %v3430 = vpack.c.b16 %v3416, %v3415
    %v3431 = vpack.c.b16 %v3418, %v3417
    %v3432 = vpack.c.b16 %v3420, %v3419
    %v3433 = vpack.c.b16 %v3422, %v3421
    %v3434 = vpack.c.b16 %v3424, %v3423
    %v3435 = vpack.c.b16 %v3426, %v3425
    %v3436 = vpack.c.b16 %v3428, %v3427
    %3445 = vmatprep.subr.bf16.mxu0 0
    %3446 = vmatpush1.bf16.msra.mxu0 %v3325
    %3447 = vmatprep.subr.bf16.mxu0 0
    %3448 = vmatpush1.bf16.msra.mxu0 %v3326
    %3449 = vmatprep.subr.bf16.mxu0 0
    %3450 = vmatpush1.bf16.msra.mxu0 %v3327
    %3451 = vmatprep.subr.bf16.mxu0 0
    %3452 = vmatpush1.bf16.msra.mxu0 %v3328
    %3453 = vmatprep.subr.bf16.mxu0 0
    %3454 = vmatpush1.bf16.msra.mxu0 %v3329
    %3455 = vmatprep.subr.bf16.mxu0 0
    %3456 = vmatpush1.bf16.msra.mxu0 %v3330
    %3457 = vmatprep.subr.bf16.mxu0 0
    %3458 = vmatpush1.bf16.msra.mxu0 %v3331
    %3459 = vmatprep.subr.bf16.mxu0 0
    %3460 = vmatpush1.bf16.msra.mxu0 %v3332
    %3461 = vmatprep.subr.bf16.mxu0 0
    %3462 = vmatpush1.bf16.msra.mxu0 0
    %3463 = vmatprep.subr.bf16.mxu0 0
    %3464 = vmatpush1.bf16.msra.mxu0 0
    %3465 = vmatprep.subr.bf16.mxu0 0
    %3466 = vmatpush1.bf16.msra.mxu0 0
    %3467 = vmatprep.subr.bf16.mxu0 0
    %3468 = vmatpush1.bf16.msra.mxu0 0
    %3469 = vmatprep.subr.bf16.mxu0 0
    %3470 = vmatpush1.bf16.msra.mxu0 0
    %3471 = vmatprep.subr.bf16.mxu0 0
    %3472 = vmatpush1.bf16.msra.mxu0 0
    %3473 = vmatprep.subr.bf16.mxu0 0
    %3474 = vmatpush1.bf16.msra.mxu0 0
    %3475 = vmatprep.subr.bf16.mxu0 0
    %3476 = vmatpush1.bf16.msra.mxu0 0
    %3477 = vmatprep.mubr.bf16.mxu0 0
    %3478 = vmatmul.mubr.bf16.gmra.mrb[0].mxu0 %v3429
    %v3479 = vpop.f32.mrb[0].mxu0
    %v3480 = vadd.f32 %v3335, %v3479
    %v3481 = vpop.f32.mrb[0].mxu0
    %v3482 = vpop.f32.mrb[0].mxu0
    %v3483 = vadd.f32 %v3339, %v3482
    %v3484 = vpop.f32.mrb[0].mxu0
    %3485 = vmatprep.mubr.bf16.mxu0 0
    %3486 = vmatmul.mubr.bf16.gmra.mrb[0].mxu0 %v3430
    %v3487 = vpop.f32.mrb[0].mxu0
    %v3488 = vadd.f32 %v3343, %v3487
    %v3489 = vpop.f32.mrb[0].mxu0
    %v3490 = vpop.f32.mrb[0].mxu0
    %v3491 = vadd.f32 %v3347, %v3490
    %v3492 = vpop.f32.mrb[0].mxu0
    %3493 = vmatprep.mubr.bf16.mxu0 0
    %3494 = vmatmul.mubr.bf16.gmra.mrb[0].mxu0 %v3431
    %v3495 = vpop.f32.mrb[0].mxu0
    %v3496 = vadd.f32 %v3351, %v3495
    %v3497 = vpop.f32.mrb[0].mxu0
    %v3498 = vpop.f32.mrb[0].mxu0
    %v3499 = vadd.f32 %v3355, %v3498
    %v3500 = vpop.f32.mrb[0].mxu0
    %3501 = vmatprep.mubr.bf16.mxu0 0
    %3502 = vmatmul.mubr.bf16.gmra.mrb[0].mxu0 %v3432
    %v3503 = vpop.f32.mrb[0].mxu0
    %v3504 = vadd.f32 %v3359, %v3503
    %v3505 = vpop.f32.mrb[0].mxu0
    %v3506 = vpop.f32.mrb[0].mxu0
    %v3507 = vadd.f32 %v3363, %v3506
    %v3508 = vpop.f32.mrb[0].mxu0
    %3509 = vmatprep.mubr.bf16.mxu0 0
    %3510 = vmatmul.mubr.bf16.gmra.mrb[0].mxu0 %v3433
    %v3511 = vpop.f32.mrb[0].mxu0
    %v3512 = vadd.f32 %v3367, %v3511
    %v3513 = vpop.f32.mrb[0].mxu0
    %v3514 = vpop.f32.mrb[0].mxu0
    %v3515 = vadd.f32 %v3371, %v3514
    %v3516 = vpop.f32.mrb[0].mxu0
    %3517 = vmatprep.mubr.bf16.mxu0 0
    %3518 = vmatmul.mubr.bf16.gmra.mrb[0].mxu0 %v3434
    %v3519 = vpop.f32.mrb[0].mxu0
    %v3520 = vadd.f32 %v3375, %v3519
    %v3521 = vpop.f32.mrb[0].mxu0
    %v3522 = vpop.f32.mrb[0].mxu0
    %v3523 = vadd.f32 %v3379, %v3522
    %v3524 = vpop.f32.mrb[0].mxu0
    %3525 = vmatprep.mubr.bf16.mxu0 0
    %3526 = vmatmul.mubr.bf16.gmra.mrb[0].mxu0 %v3435
    %v3527 = vpop.f32.mrb[0].mxu0
    %v3528 = vadd.f32 %v3383, %v3527
    %v3529 = vpop.f32.mrb[0].mxu0
    %v3530 = vpop.f32.mrb[0].mxu0
    %v3531 = vadd.f32 %v3387, %v3530
    %v3532 = vpop.f32.mrb[0].mxu0
    %3533 = vmatprep.mubr.bf16.mxu0 0
    %3534 = vmatmul.mubr.bf16.gmra.mrb[0].mxu0 %v3436
    %v3535 = vpop.f32.mrb[0].mxu0
    %v3536 = vadd.f32 %v3391, %v3535
    %v3537 = vpop.f32.mrb[0].mxu0
    %v3538 = vpop.f32.mrb[0].mxu0
    %v3539 = vadd.f32 %v3395, %v3538
    %v3540 = vpop.f32.mrb[0].mxu0
    %3541 = vdwg.mxu0
    %vm3542 = vcmp.ge.f32.partialorder %v3480, 0.0
    %vm3543 = vcmp.ge.f32.partialorder %v3483, 0.0
    %vm3544 = vcmp.ge.f32.partialorder %v3488, 0.0
    %vm3545 = vcmp.ge.f32.partialorder %v3491, 0.0
    %vm3546 = vcmp.ge.f32.partialorder %v3496, 0.0
    %vm3547 = vcmp.ge.f32.partialorder %v3499, 0.0
    %vm3548 = vcmp.ge.f32.partialorder %v3504, 0.0
    %vm3549 = vcmp.ge.f32.partialorder %v3507, 0.0
    %vm3550 = vcmp.ge.f32.partialorder %v3512, 0.0
    %vm3551 = vcmp.ge.f32.partialorder %v3515, 0.0
    %vm3552 = vcmp.ge.f32.partialorder %v3520, 0.0
    %vm3553 = vcmp.ge.f32.partialorder %v3523, 0.0
    %vm3554 = vcmp.ge.f32.partialorder %v3528, 0.0
    %vm3555 = vcmp.ge.f32.partialorder %v3531, 0.0
    %vm3556 = vcmp.ge.f32.partialorder %v3536, 0.0
    %vm3557 = vcmp.ge.f32.partialorder %v3539, 0.0
    %v3558 = vmul.f32 %v3480, 0.01
    %v3559 = vmul.f32 %v3483, 0.01
    %v3560 = vmul.f32 %v3488, 0.01
    %v3561 = vmul.f32 %v3491, 0.01
    %v3562 = vmul.f32 %v3496, 0.01
    %v3563 = vmul.f32 %v3499, 0.01
    %v3564 = vmul.f32 %v3504, 0.01
    %v3565 = vmul.f32 %v3507, 0.01
    %v3566 = vmul.f32 %v3512, 0.01
    %v3567 = vmul.f32 %v3515, 0.01
    %v3568 = vmul.f32 %v3520, 0.01
    %v3569 = vmul.f32 %v3523, 0.01
    %v3570 = vmul.f32 %v3528, 0.01
    %v3571 = vmul.f32 %v3531, 0.01
    %v3572 = vmul.f32 %v3536, 0.01
    %v3573 = vmul.f32 %v3539, 0.01
    %v3574 = vsel %vm3542, %v3480, %v3558
    %v3575 = vsel %vm3543, %v3483, %v3559
    %v3576 = vsel %vm3544, %v3488, %v3560
    %v3577 = vsel %vm3545, %v3491, %v3561
    %v3578 = vsel %vm3546, %v3496, %v3562
    %v3579 = vsel %vm3547, %v3499, %v3563
    %v3580 = vsel %vm3548, %v3504, %v3564
    %v3581 = vsel %vm3549, %v3507, %v3565
    %v3582 = vsel %vm3550, %v3512, %v3566
    %v3583 = vsel %vm3551, %v3515, %v3567
    %v3584 = vsel %vm3552, %v3520, %v3568
    %v3585 = vsel %vm3553, %v3523, %v3569
    %v3586 = vsel %vm3554, %v3528, %v3570
    %v3587 = vsel %vm3555, %v3531, %v3571
    %v3588 = vsel %vm3556, %v3536, %v3572
    %v3589 = vsel %vm3557, %v3539, %v3573
    %v3590 = vld [vmem:[%s3] sm:$0xf]
    %v3591 = vpack.c.bf16 %v3575, %v3574
    %v3592 = vpack.c.bf16 %v3577, %v3576
    %v3593 = vpack.c.bf16 %v3579, %v3578
    %v3594 = vpack.c.bf16 %v3581, %v3580
    %v3595 = vpack.c.bf16 %v3583, %v3582
    %v3596 = vpack.c.bf16 %v3585, %v3584
    %v3597 = vpack.c.bf16 %v3587, %v3586
    %v3598 = vpack.c.bf16 %v3589, %v3588
    %3599 = vmatprep.subr.bf16.mxu0 0
    %3600 = vmatpush1.bf16.msra.mxu0 %v3591
    %3601 = vmatprep.subr.bf16.mxu0 0
    %3602 = vmatpush1.bf16.msra.mxu0 %v3592
    %3603 = vmatprep.subr.bf16.mxu0 0
    %3604 = vmatpush1.bf16.msra.mxu0 %v3593
    %3605 = vmatprep.subr.bf16.mxu0 0
    %3606 = vmatpush1.bf16.msra.mxu0 %v3594
    %3607 = vmatprep.subr.bf16.mxu0 0
    %3608 = vmatpush1.bf16.msra.mxu0 %v3595
    %3609 = vmatprep.subr.bf16.mxu0 0
    %3610 = vmatpush1.bf16.msra.mxu0 %v3596
    %3611 = vmatprep.subr.bf16.mxu0 0
    %3612 = vmatpush1.bf16.msra.mxu0 %v3597
    %3613 = vmatprep.subr.bf16.mxu0 0
    %3614 = vmatpush1.bf16.msra.mxu0 %v3598
    %3615 = vmatprep.subr.bf16.mxu0 0
    %3616 = vmatpush1.bf16.msra.mxu0 0
    %3617 = vmatprep.subr.bf16.mxu0 0
    %3618 = vmatpush1.bf16.msra.mxu0 0
    %3619 = vmatprep.subr.bf16.mxu0 0
    %3620 = vmatpush1.bf16.msra.mxu0 0
    %3621 = vmatprep.subr.bf16.mxu0 0
    %3622 = vmatpush1.bf16.msra.mxu0 0
    %3623 = vmatprep.subr.bf16.mxu0 0
    %3624 = vmatpush1.bf16.msra.mxu0 0
    %3625 = vmatprep.subr.bf16.mxu0 0
    %3626 = vmatpush1.bf16.msra.mxu0 0
    %3627 = vmatprep.subr.bf16.mxu0 0
    %3628 = vmatpush1.bf16.msra.mxu0 0
    %3629 = vmatprep.subr.bf16.mxu0 0
    %3630 = vmatpush1.bf16.msra.mxu0 0
    %3631 = vmatprep.mubr.bf16.mxu0 0
    %3632 = vmatmul.mubr.bf16.gmra.mrb[0].mxu0 %v3590
    %v3633 = vpop.f32.mrb[0].mxu0
    %v3634 = vadd.f32 0.0, %v3633
    %v3635 = vpop.f32.mrb[0].mxu0
    %v3636 = vpop.f32.mrb[0].mxu0
    %v3637 = vpop.f32.mrb[0].mxu0
    %3638 = vdwg.mxu0
    %s3639 = sld [smem:[#allocation2]]
    %v3640 = vstv %s3639
    %v3641 = vadd.f32 %v3634, %v3640
    %v3642 = vtanh.pop %v3641
    %s3643 = sld [smem:[#allocation2 + $0x1]]
    %v3644 = vstv %s3643
    %v3645 = vadd.f32 %v3634, %v3644
    %v3647 = vrot.slane %v3645, 1
    %v3649 = vsub.f32 %v2470, %v3647
    %v3650 = vsub.f32 0.0, %v3642
    %v3651 = vmul.f32 %v3650, 1.442695
    %v3652 = vpow.pop %v3651
    %v3653 = vmul.f32 %v3649, %v3652
    %v3654 = vsub.f32 %v3064, %v3642
    %v3655 = vmul.f32 %v3653, %v3653
    %v3656 = vmul.f32 %v3063, %v3063
    %v3658 = vrot.slane %v3656, 1
    %v3660 = vadd.f32 %v3655, %v3658
    %v3661 = vmul.f32 %v3660, -0.5
    %v3662 = vsub.f32 %v3661, 1.837877
    %v3663 = vadd.f32 %v3662, %v3654
    %v3665 = vrot.slane %v94, 2
    %v3667 = vsel %vm47, %v3665, 0.0
    %v3668 = vrot.slane %v3667, 4
    %v3669 = vadd.f32 %v3667, %v3668
    %v3670 = vrot.slane %v3669, 2
    %v3671 = vadd.f32 %v3669, %v3670
    %v3672 = vrot.slane %v3671, 1
    %v3673 = vadd.f32 %v3671, %v3672
    %v3674 = vmul.f32 %v3673, 2.0
    %v3675 = vadd.f32 %v3674, 1.3862944
    %v3676 = vand.u32 2147483647, %v100
    %v3677 = vsel %vm47, %v3676, 0.0
    %v3678 = vrot.slane %v3677, 4
    %v3679 = vadd.f32 %v3677, %v3678
    %v3680 = vrot.slane %v3679, 2
    %v3681 = vadd.f32 %v3679, %v3680
    %v3682 = vrot.slane %v3681, 1
    %v3683 = vadd.f32 %v3681, %v3682
    %v3684 = vadd.f32 %v3675, %v3683
    %v3685 = vmul.f32 %v3663, 2.0
    %v3686 = vsub.f32 %v3684, %v3685
    %v3687 = vrot.slane %v38, 6
    %v3689 = vmul.f32 %v3686, %v3687
    %vm3690 = vcmask 253952
    %v3691 = vsel %vm3690, %v3689, 0.0
    %3692 = vadd.xlane.f32.xlu0 %v3691
    %v3693 = vpop.xlane.xlu0 %3692
    %v3694 = vrot.slane %v3693, 4
    %v3695 = vadd.f32 %v3693, %v3694
    %v3696 = vrot.slane %v3695, 2
    %v3697 = vadd.f32 %v3695, %v3696
    %v3698 = vrot.slane %v3697, 1
    %v3699 = vadd.f32 %v3697, %v3698
    %s3700 = vtos %v3699
    %v3701 = vld [vmem:[%s1] sm:$0xff]
    %vm3702 = vcmask 58368
    %v3703 = vsel %vm3702, %v3701, -inf
    %v3704 = vrot.slane %v3703, 4
    %v3705 = vmax.f32 %v3703, %v3704
    %v3706 = vrot.slane %v3705, 2
    %v3707 = vmax.f32 %v3705, %v3706
    %v3708 = vrot.slane %v3707, 1
    %v3709 = vmax.f32 %v3707, %v3708
    %v3710 = vsub.f32 %v3701, %v3709
    %v3711 = vmul.f32 %v3710, 1.442695
    %v3712 = vpow.pop %v3711
    %v3713 = vsel %vm3702, %v3712, 0.0
    %v3714 = vrot.slane %v3713, 4
    %v3715 = vadd.f32 %v3713, %v3714
    %v3716 = vrot.slane %v3715, 2
    %v3717 = vadd.f32 %v3715, %v3716
    %v3718 = vrot.slane %v3717, 1
    %v3719 = vadd.f32 %v3717, %v3718
    %v3720 = vlog2.pop %v3719
    %v3721 = vmul.f32 %v3720, 0.6931472
    %v3722 = vadd.f32 %v3721, %v3709
    %v3723 = vsub.f32 %v3701, %v3722
    %v3725 = vrot.slane %v3723, 6
    %v3727 = vmul.f32 %v3701, %v3725
    %v3729 = vrot.slane %v3727, 2
    %v3731 = vsel %vm3702, %v3729, 0.0
    %3732 = vadd.xlane.f32.xlu0 %v3731
    %v3733 = vpop.xlane.xlu0 %3732
    %v3734 = vrot.slane %v3733, 4
    %v3735 = vadd.f32 %v3733, %v3734
    %v3736 = vrot.slane %v3735, 2
    %v3737 = vadd.f32 %v3735, %v3736
    %v3738 = vrot.slane %v3737, 1
    %v3739 = vadd.f32 %v3737, %v3738
    %s3740 = vtos %v3739
    %s3741 = ssub.f32 0.0, %s3740
    %s3742 = scalar_lea.smem [#allocation5], 0
    %3743 = sst [smem:[%s3742]] %s3700
    %s3744 = scalar_lea.smem [#allocation5], 1
    %3745 = sst [smem:[%s3744]] %s57
    %s3746 = scalar_lea.smem [#allocation5], 2
    %3747 = sst [smem:[%s3746]] %s86
    %s3748 = scalar_lea.smem [#allocation5], 3
    %3749 = sst [smem:[%s3748]] %s3741
    // Predicated region
    $region30: #{tpu_custom_call.1} parent=1 // pred_check
      _
    $region31: #{tpu_custom_call.1} parent=1 // pred_check_branch
      %3751 = sbr.rel (0) target = $region33
    $region32: #{tpu_custom_call.1} parent=1 // pred_region
      %s3753 = ssub.s32 16, 16
      %3754 = vsyncadd [#allocation3], %s3753
      %3757 = dma.smem_to_hbm [#allocation5], 16, %s6, [#allocation3]
    $region33: #{tpu_custom_call.1} parent=1 // pred_fallthru
      _
    // Predicated region
    $region34: #{tpu_custom_call.1} parent=1 // pred_check
      _
    $region35: #{tpu_custom_call.1} parent=1 // pred_check_branch
      %3759 = sbr.rel (0) target = $region37
    $region36: #{tpu_custom_call.1} parent=1 // pred_region
      %3760 = dma.done [#allocation3], 16
    $region37: #{tpu_custom_call.1} parent=1 // pred_fallthru
      _
    %3761 = sfence
    %3762 = vsyncpa [#allocation3], 1
    %3763 = vsyncpa [#allocation4], 1

</llo_original>
